<compile_context>
chip_gen: v5e
topology: v5e:2x2
jax: 0.10.0
libtpu: 0.0.40
codegen_flags: <defaults>
</compile_context>

<pallas_src>
from functools import partial

import jax
import jax.numpy as jnp
import numpy as np
from jax.experimental import pallas as pl
from jax.experimental.pallas import tpu as pltpu

# ----------------------------- configuration ------------------------------
ATOM_FDIM = 16                  # get_atom_fdim()
BOND_FDIM = 16 + ATOM_FDIM      # get_bond_fdim() + get_atom_fdim()
HIDDEN = 32                     # args.hidden_dim
DEPTH = 3                       # args.depth -> (DEPTH - 1) w_h layers
GRAPHS_PER_BLOCK = 8            # graphs packed per grid step (8 -> sublane-aligned out)
MAX_TILE_E = 128                # edge-chunk size: multiple of 128; per-chunk select
                                # intermediate is NB*16 KiB (fits v7x's 64 MiB VMEM
                                # with double-buffered inputs up to NB ~ 2k).
# bias=True (all biases zeroed by reset_parameters), dropout=0.0, activation=relu


# ------------------------------ Pallas kernel ------------------------------
def cmpnn_kernel(node_ref, edge_ref, S_ref, ST_ref, mask4_ref, P_ref,
                 w_atom_ref, w_bond_ref, w_h_ref, w_lin_o_ref,
                 w_fc1_ref, w_fc2_ref, out_ref):
    relu = lambda x: jnp.maximum(x, 0.0)
    dot = partial(jnp.dot, preferred_element_type=jnp.float32)

    # -------- hoisted, loop-invariant setup (once per grid step) --------
    ST = ST_ref[...]                          # (NB, EB) f32 one-hot scatter (src of h_sum)
    S = S_ref[...]                            # (EB, NB) f32 one-hot dst gather
    deg_pos = jnp.sum(ST, axis=1, keepdims=True) > 0.5   # (NB, 1) has-incoming-edge
    P = P_ref[...]                            # (GPB, NB) per-graph mean-readout weights
    w_h_all = w_h_ref[...]                    # (DEPTH-1, H, H)
    W_lo = w_lin_o_ref[...]                   # (3H, H) = w_lin @ w_o (folded in wrapper)

    n_nodes, n_edges = ST.shape
    pack = 128 // HIDDEN                      # nodes per 128-lane row (4 at H=32)
    nq = n_nodes // pack
    tile_e = min(n_edges, MAX_TILE_E)
    NEG = jnp.float32(-3.0e38)

    # even/odd selector for the reverse-edge pair swap, hoisted at (EB, H)
    e_idx = jax.lax.broadcasted_iota(jnp.int32, (n_edges, HIDDEN), 0)
    is_even_h = (e_idx % 2) == 0

    # -------- initial node / edge states (all f32) --------
    h0_node = relu(dot(node_ref[...], w_atom_ref[...]))      # (NB, H)
    hk_node = h0_node
    h0_edge = relu(dot(edge_ref[...], w_bond_ref[...]))      # (EB, H)
    hk_edge = h0_edge

    def node_message(hk_edge):
        # sum-reduce of incoming edge states: f32 MXU dot with the one-hot scatter
        h_sum = dot(ST, hk_edge)                              # (NB, H)
        # max-reduce of incoming edge states: lane-packed (pack nodes / 128-lane
        # row) tiled running max with a where-select mask; the lane-expanded
        # mask (mask4) is precomputed in the wrapper, loaded per chunk.
        v4 = jnp.tile(hk_edge, (1, pack))                     # (EB, 128)
        h_max_p = jnp.full((nq, 128), NEG, jnp.float32)
        # TODO(synk): switch this static unroll to lax.fori_loop (or another
        # grid axis with a VMEM accumulator) once n_edges // tile_e grows past
        # a handful of chunks.
        for e0 in range(0, n_edges, tile_e):
            m_c = mask4_ref[:, e0:e0 + tile_e, :] > 0.5       # (nq, tE, 128)
            cand = jnp.where(m_c, v4[None, e0:e0 + tile_e, :], NEG)
            h_max_p = jnp.maximum(h_max_p, jnp.max(cand, axis=1))
        # unpack lane groups back to node rows (node = q*nq + row)
        h_max = jnp.concatenate(
            [h_max_p[:, q * HIDDEN:(q + 1) * HIDDEN] for q in range(pack)],
            axis=0)                                           # (NB, H)
        h_max = jnp.where(deg_pos, h_max, 0.0)                # DGL: 0 for deg-0 nodes
        return h_sum * h_max                                  # m_k (node)

    for k in range(DEPTH - 1):
        hk_node = hk_node + node_message(hk_edge)
        dst_h = dot(S, hk_node)                               # (EB, H) dst gather
        # reverse edge = adjacent-pair swap rev[e] = hk_edge[e ^ 1]: two XLU
        # sublane rotations + hoisted even/odd select (E even -> the wrapped
        # rows are never selected).
        nxt = pltpu.roll(hk_edge, shift=n_edges - 1, axis=0)  # hk_edge[(e + 1) % E]
        prv = pltpu.roll(hk_edge, shift=1, axis=0)            # hk_edge[(e - 1) % E]
        rev_h = jnp.where(is_even_h, nxt, prv)
        m_edge = dst_h - rev_h
        hk_edge = relu(h0_edge + dot(m_edge, w_h_all[k]))     # dropout(p=0) = id

    # final aggregation: folded (w_lin @ w_o) weight, split into three summed
    # row-block matmuls (no lane concat, one fewer dependent MXU dot)
    m_node = node_message(hk_edge)
    hidden = relu(dot(m_node, W_lo[0:HIDDEN, :])
                  + dot(hk_node, W_lo[HIDDEN:2 * HIDDEN, :])
                  + dot(h0_node, W_lo[2 * HIDDEN:3 * HIDDEN, :]))    # (NB, H)

    # mean readout per graph, then MLP head (eval mode -> sigmoid)
    z = dot(P, hidden)                                              # (GPB, H)
    logits = dot(relu(dot(z, w_fc1_ref[...])), w_fc2_ref[...])      # (GPB, 1)
    # lane-dense store; the wrapper slices [:, :1]
    out_ref[...] = jnp.broadcast_to(jax.nn.sigmoid(logits), out_ref.shape)


# ------------------------------ JAX wrapper --------------------------------
def _round_up(x, m):
    return ((x + m - 1) // m) * m


def cmpnn_forward(node_attr, edge_attr, S, p, params):
    """Batched CMPNN forward.

    node_attr (G, N_pad, ATOM_FDIM), edge_attr (G, E_pad, BOND_FDIM),
    S (G, E_pad, N_pad) dst one-hot, p (G, N_pad) per-graph mean-readout
    weights (1/n_real for real nodes, 0 for pad nodes).

    Structural preconditions (required, not runtime-checked):
      * per graph, real edges are stored first as adjacent reverse pairs
        (rev(2i) = 2i + 1) and the real edge count is even;
      * padded node/edge rows of node_attr / edge_attr / S / p are exactly 0.
    """
    G, E_pad0, N_pad0 = S.shape
    assert 128 % HIDDEN == 0, "lane packing assumes HIDDEN divides 128"
    GPB = GRAPHS_PER_BLOCK
    pack = 128 // HIDDEN

    # pad per-graph node/edge dims to layout-friendly sizes (pads are inert:
    # zero attrs -> zero states, zero scatter rows/cols, pads pair with pads)
    N_pad = _round_up(N_pad0, 8)
    E_pad = _round_up(E_pad0, 128 // GPB)         # EB = GPB*E_pad multiple of 128
    node_attr = jnp.pad(node_attr, ((0, 0), (0, N_pad - N_pad0), (0, 0)))
    edge_attr = jnp.pad(edge_attr, ((0, 0), (0, E_pad - E_pad0), (0, 0)))
    S = jnp.pad(S, ((0, 0), (0, E_pad - E_pad0), (0, N_pad - N_pad0)))
    p = jnp.pad(p, ((0, 0), (0, N_pad - N_pad0)))

    # pad the graph axis to a whole number of blocks (pad graphs are inert
    # and sliced away at the end)
    G_blk = _round_up(G, GPB)
    if G_blk != G:
        gp = G_blk - G
        node_attr = jnp.pad(node_attr, ((0, gp), (0, 0), (0, 0)))
        edge_attr = jnp.pad(edge_attr, ((0, gp), (0, 0), (0, 0)))
        S = jnp.pad(S, ((0, gp), (0, 0), (0, 0)))
        p = jnp.pad(p, ((0, gp), (0, 0)))

    n_blocks = G_blk // GPB
    NB = GPB * N_pad                              # nodes per super-graph block
    EB = GPB * E_pad                              # edges per super-graph block
    assert EB % MAX_TILE_E == 0 and NB % pack == 0

    # ---- pack GPB graphs per block as a block-diagonal super-graph ----
    eye = jnp.eye(GPB, dtype=jnp.float32)
    S_r = S.reshape(n_blocks, GPB, E_pad, N_pad)
    S_blk = jnp.einsum('bgen,gh->bgehn', S_r, eye).reshape(n_blocks, EB, NB)
    ST_blk = jnp.swapaxes(S_blk, 1, 2)            # (n_blocks, NB, EB)

    # lane-packed node mask (precomputed / hoisted out of the kernel):
    #   mask4[b, row, e, q*H + h] = ST_blk[b, q*nq + row, e]
    nq = NB // pack
    m = ST_blk.reshape(n_blocks, pack, nq, EB)
    mask4 = jnp.broadcast_to(m[:, :, :, :, None],
                             (n_blocks, pack, nq, EB, HIDDEN))
    mask4 = mask4.transpose(0, 2, 3, 1, 4).reshape(n_blocks, nq, EB, pack * HIDDEN)

    p_r = p.reshape(n_blocks, GPB, N_pad)
    P_blk = jnp.einsum('bgn,gh->bghn', p_r, eye).reshape(n_blocks, GPB, NB)

    node_blk = node_attr.reshape(n_blocks, NB, ATOM_FDIM)
    edge_blk = edge_attr.reshape(n_blocks, EB, BOND_FDIM)

    # fold w_lin @ w_o (no nonlinearity between them); HIGHEST precision so
    # the fold itself adds no extra rounding
    w_lin_o = jnp.dot(params["w_lin"], params["w_o"],
                      precision=jax.lax.Precision.HIGHEST)

    blocked = (node_blk, edge_blk, S_blk, ST_blk, mask4, P_blk)
    weights = (params["w_atom"], params["w_bond"], params["w_h"],
               w_lin_o, params["w_fc1"], params["w_fc2"])

    def blk_spec(x):                    # one super-graph block per grid step
        rest = tuple(x.shape[1:])
        return pl.BlockSpec((None,) + rest,
                            lambda i, n=len(rest): (i,) + (0,) * n)

    def bcast_spec(x):                  # weights: same (whole) block every step
        return pl.BlockSpec(tuple(x.shape), lambda i, n=x.ndim: (0,) * n)

    OUT_LANES = 128                     # lane-dense output slab

    # TODO(synk): for ragged real-world batches, replace the fixed per-graph
    # padding with scalar-prefetched per-graph node/edge offsets in the
    # index_maps (PrefetchScalarGridSpec num_scalar_prefetch > 0).
    out = pl.pallas_call(
        cmpnn_kernel,
        out_shape=jax.ShapeDtypeStruct((n_blocks, GPB, OUT_LANES), jnp.float32),
        grid_spec=pltpu.PrefetchScalarGridSpec(
            num_scalar_prefetch=0,
            grid=(n_blocks,),
            in_specs=[blk_spec(x) for x in blocked]
                     + [bcast_spec(w) for w in weights],
            out_specs=pl.BlockSpec((None, GPB, OUT_LANES),
                                   lambda i: (i, 0, 0)),
        ),
        compiler_params=pltpu.CompilerParams(
            # "parallel" graph-block axis -> sharded across v7x's two TCs;
            # no effect (and no cost) on single-TC v5e/v6e.
            dimension_semantics=("parallel",),
            # load-bearing on v5e (16 MiB scoped default); < v7x's 64 MiB VMEM.
            vmem_limit_bytes=32 * 1024 * 1024),
    )(*blocked, *weights)
    return out.reshape(G_blk, OUT_LANES)[:G, :1]


# ------------------------ pure-JAX reference (check) ------------------------
def cmpnn_reference(node_attr, edge_attr, S, P, params):
    relu = lambda x: jnp.maximum(x, 0.0)
    mask = S.T
    deg = jnp.sum(mask, axis=1, keepdims=True)
    H = params["w_atom"].shape[1]

    def node_message(hk_edge):
        h_sum = mask @ hk_edge
        big = jnp.where(mask[:, :, None] > 0.5, hk_edge[None, :, :], -jnp.inf)
        h_max = jnp.max(big, axis=1)
        h_max = jnp.where(deg > 0.5, h_max, 0.0)
        return h_sum * h_max

    h0_node = relu(node_attr @ params["w_atom"]); hk_node = h0_node
    h0_edge = relu(edge_attr @ params["w_bond"]); hk_edge = h0_edge
    for k in range(DEPTH - 1):
        hk_node = hk_node + node_message(hk_edge)
        rev_h = hk_edge.reshape(-1, 2, H)[:, ::-1, :].reshape(-1, H)
        m_edge = (S @ hk_node) - rev_h
        hk_edge = relu(h0_edge + m_edge @ params["w_h"][k])
    m_node = node_message(hk_edge)
    hidden = jnp.concatenate([m_node, hk_node, h0_node], axis=1) @ params["w_lin"]
    hidden = relu(hidden @ params["w_o"])
    z = P @ hidden
    return jax.nn.sigmoid(relu(z @ params["w_fc1"]) @ params["w_fc2"])


# --------------------------------- main -------------------------------------
def xavier_normal(key, fan_in, fan_out, gain, shape=None):
    shape = (fan_in, fan_out) if shape is None else shape
    std = gain * (2.0 / (fan_in + fan_out)) ** 0.5
    return std * jax.random.normal(key, shape, jnp.float32)


if __name__ == "__main__":
    key = jax.random.PRNGKey(0)
    keys = jax.random.split(key, 10)
    gain = float(np.sqrt(2.0))   # nn.init.calculate_gain('relu')

    params = {
        "w_atom": xavier_normal(keys[1], ATOM_FDIM, HIDDEN, gain),
        "w_bond": xavier_normal(keys[2], BOND_FDIM, HIDDEN, gain),
        "w_h":    xavier_normal(keys[3], HIDDEN, HIDDEN, gain,
                                shape=(DEPTH - 1, HIDDEN, HIDDEN)),
        "w_o":    xavier_normal(keys[4], HIDDEN, HIDDEN, gain),
        "w_lin":  xavier_normal(keys[5], 3 * HIDDEN, HIDDEN, gain),
        "w_fc1":  xavier_normal(keys[6], HIDDEN, HIDDEN // 2, gain),
        "w_fc2":  xavier_normal(keys[7], HIDDEN // 2, 1, gain),
    }

    # synthetic batch of 12 small molecules (3 templates), padded per graph to
    # N_PAD=8 nodes / E_PAD=16 directed edges; 12 graphs -> 2 grid blocks of 8.
    templates = [
        [(0, 1), (1, 2), (2, 3), (3, 4), (4, 0)],   # 5-node cycle
        [(0, 1), (1, 2)],                           # 3-node path
        [(0, 1), (0, 2), (0, 3)],                   # 4-node star
    ]
    n_graphs = 12
    N_PAD, E_PAD = 8, 16
    feat_keys = jax.random.split(keys[0], 2 * n_graphs)

    node_list, edge_list, S_list, p_list, raw = [], [], [], [], []
    for g in range(n_graphs):
        bonds = templates[g % len(templates)]
        n = 1 + max(max(u, v) for (u, v) in bonds)
        src, dst = [], []
        for (u, v) in bonds:      # directed edges stored as reverse pairs (2i, 2i+1)
            src += [u, v]
            dst += [v, u]
        e = len(src)
        na = jax.random.normal(feat_keys[2 * g], (n, ATOM_FDIM), jnp.float32)
        ea = jax.random.normal(feat_keys[2 * g + 1], (e, BOND_FDIM), jnp.float32)
        S_np = np.zeros((e, n), np.float32)
        S_np[np.arange(e), np.array(dst)] = 1.0
        raw.append((n, na, ea, jnp.asarray(S_np)))

        node_list.append(jnp.pad(na, ((0, N_PAD - n), (0, 0))))
        edge_list.append(jnp.pad(ea, ((0, E_PAD - e), (0, 0))))
        S_list.append(jnp.pad(jnp.asarray(S_np),
                              ((0, E_PAD - e), (0, N_PAD - n))))
        p_np = np.zeros((N_PAD,), np.float32)
        p_np[:n] = 1.0 / n
        p_list.append(jnp.asarray(p_np))

    node_attr = jnp.stack(node_list)     # (12, 8, 16)
    edge_attr = jnp.stack(edge_list)     # (12, 16, 48)
    S = jnp.stack(S_list)                # (12, 16, 8)
    p = jnp.stack(p_list)                # (12, 8)

    out = jax.block_until_ready(cmpnn_forward(node_attr, edge_attr, S, p, params))

    refs = []
    for (n, na, ea, Sg) in raw:
        Pg = jnp.full((1, n), 1.0 / n, jnp.float32)
        refs.append(cmpnn_reference(na, ea, Sg, Pg, params))
    ref = jax.block_until_ready(jnp.concatenate(refs, axis=0))

    # structural one-hot dots stay f32 inside the kernel now (no bf16 state
    # rounding) -> tolerance tightened from 2e-2 to 1e-2; remaining delta is
    # default-precision MXU rounding present on both sides.
    np.testing.assert_allclose(np.asarray(out), np.asarray(ref),
                               rtol=1e-2, atol=1e-2)
    print("KERNEL_OK")
</pallas_src>

<mosaic_0001>
module attributes {stable_mosaic.version = 11 : i64} {
  func.func @cmpnn_kernel(%arg0: i32, %arg1: memref<1x64x16xf32, #tpu.memory_space<vmem>>, %arg2: memref<1x128x32xf32, #tpu.memory_space<vmem>>, %arg3: memref<1x128x64xf32, #tpu.memory_space<vmem>>, %arg4: memref<1x64x128xf32, #tpu.memory_space<vmem>>, %arg5: memref<1x16x128x128xf32, #tpu.memory_space<vmem>>, %arg6: memref<1x8x64xf32, #tpu.memory_space<vmem>>, %arg7: memref<16x32xf32, #tpu.memory_space<vmem>>, %arg8: memref<32x32xf32, #tpu.memory_space<vmem>>, %arg9: memref<2x32x32xf32, #tpu.memory_space<vmem>>, %arg10: memref<96x32xf32, #tpu.memory_space<vmem>>, %arg11: memref<32x16xf32, #tpu.memory_space<vmem>>, %arg12: memref<16x1xf32, #tpu.memory_space<vmem>>, %arg13: memref<1x8x128xf32, #tpu.memory_space<vmem>>) attributes {dimension_semantics = [#tpu.dimension_semantics<parallel>], iteration_bounds = array<i64: 2>, scalar_prefetch = 0 : i64, scratch_operands = 0 : i64, tpu.core_type = #tpu.core_type<tc>, window_params = [{transform_indices = @transform_0, window_bounds = array<i64: 1, 64, 16>}, {transform_indices = @transform_1, window_bounds = array<i64: 1, 128, 32>}, {transform_indices = @transform_2, window_bounds = array<i64: 1, 128, 64>}, {transform_indices = @transform_3, window_bounds = array<i64: 1, 64, 128>}, {transform_indices = @transform_4, window_bounds = array<i64: 1, 16, 128, 128>}, {transform_indices = @transform_5, window_bounds = array<i64: 1, 8, 64>}, {pipeline_mode = #tpu.pipeline_mode<synchronous>, transform_indices = @transform_6, window_bounds = array<i64: 16, 32>}, {pipeline_mode = #tpu.pipeline_mode<synchronous>, transform_indices = @transform_7, window_bounds = array<i64: 32, 32>}, {pipeline_mode = #tpu.pipeline_mode<synchronous>, transform_indices = @transform_8, window_bounds = array<i64: 2, 32, 32>}, {pipeline_mode = #tpu.pipeline_mode<synchronous>, transform_indices = @transform_9, window_bounds = array<i64: 96, 32>}, {pipeline_mode = #tpu.pipeline_mode<synchronous>, transform_indices = @transform_10, window_bounds = array<i64: 32, 16>}, {pipeline_mode = #tpu.pipeline_mode<synchronous>, transform_indices = @transform_11, window_bounds = array<i64: 16, 1>}, {transform_indices = @transform_12, window_bounds = array<i64: 1, 8, 128>}]} {
    %c0 = arith.constant 0 : index
    %c0_0 = arith.constant 0 : index
    %c0_1 = arith.constant 0 : index
    %0 = vector.load %arg4[%c0, %c0_0, %c0_1] : memref<1x64x128xf32, #tpu.memory_space<vmem>>, vector<1x64x128xf32>
    %1 = vector.shape_cast %0 : vector<1x64x128xf32> to vector<64x128xf32>
    %c0_2 = arith.constant 0 : index
    %c0_3 = arith.constant 0 : index
    %c0_4 = arith.constant 0 : index
    %2 = vector.load %arg3[%c0_2, %c0_3, %c0_4] : memref<1x128x64xf32, #tpu.memory_space<vmem>>, vector<1x128x64xf32>
    %3 = vector.shape_cast %2 : vector<1x128x64xf32> to vector<128x64xf32>
    %cst = arith.constant dense<0.000000e+00> : vector<64xf32>
    %4 = vector.multi_reduction <add>, %1, %cst [1] : vector<64x128xf32> to vector<64xf32>
    %5 = vector.shape_cast %4 : vector<64xf32> to vector<64x1xf32>
    %cst_5 = arith.constant 5.000000e-01 : f32
    %6 = vector.broadcast %cst_5 : f32 to vector<64x1xf32>
    %7 = arith.cmpf ogt, %5, %6 : vector<64x1xf32>
    %c0_6 = arith.constant 0 : index
    %c0_7 = arith.constant 0 : index
    %c0_8 = arith.constant 0 : index
    %8 = vector.load %arg6[%c0_6, %c0_7, %c0_8] : memref<1x8x64xf32, #tpu.memory_space<vmem>>, vector<1x8x64xf32>
    %9 = vector.shape_cast %8 : vector<1x8x64xf32> to vector<8x64xf32>
    %c0_9 = arith.constant 0 : index
    %c0_10 = arith.constant 0 : index
    %c0_11 = arith.constant 0 : index
    %10 = vector.load %arg9[%c0_9, %c0_10, %c0_11] : memref<2x32x32xf32, #tpu.memory_space<vmem>>, vector<2x32x32xf32>
    %c0_12 = arith.constant 0 : index
    %c0_13 = arith.constant 0 : index
    %11 = vector.load %arg10[%c0_12, %c0_13] : memref<96x32xf32, #tpu.memory_space<vmem>>, vector<96x32xf32>
    %12 = tpu.iota {dimensions = array<i32: 0>} : vector<128x32xi32>
    %c2_i32 = arith.constant 2 : i32
    %c0_i32 = arith.constant 0 : i32
    %13 = arith.cmpi eq, %c2_i32, %c0_i32 : i32
    %c1_i32 = arith.constant 1 : i32
    %14 = arith.select %13, %c1_i32, %c2_i32 : i32
    %15 = vector.broadcast %14 : i32 to vector<128x32xi32>
    %16 = arith.remsi %12, %15 : vector<128x32xi32>
    %c0_i32_14 = arith.constant 0 : i32
    %17 = vector.broadcast %c0_i32_14 : i32 to vector<128x32xi32>
    %18 = arith.cmpi ne, %16, %17 : vector<128x32xi32>
    %c0_i32_15 = arith.constant 0 : i32
    %19 = vector.broadcast %c0_i32_15 : i32 to vector<128x32xi32>
    %20 = arith.cmpi slt, %16, %19 : vector<128x32xi32>
    %c0_i32_16 = arith.constant 0 : i32
    %21 = arith.cmpi slt, %14, %c0_i32_16 : i32
    %22 = vector.broadcast %21 : i1 to vector<128x32xi1>
    %23 = vector.broadcast %22 : vector<128x32xi1> to vector<128x32xi1>
    %24 = arith.xori %20, %23 : vector<128x32xi1>
    %25 = arith.andi %24, %18 : vector<128x32xi1>
    %26 = vector.broadcast %14 : i32 to vector<128x32xi32>
    %27 = arith.addi %16, %26 : vector<128x32xi32>
    %28 = arith.select %25, %27, %16 : vector<128x32xi1>, vector<128x32xi32>
    %c0_i32_17 = arith.constant 0 : i32
    %29 = vector.broadcast %c0_i32_17 : i32 to vector<128x32xi32>
    %30 = arith.cmpi eq, %28, %29 : vector<128x32xi32>
    %c0_18 = arith.constant 0 : index
    %c0_19 = arith.constant 0 : index
    %c0_20 = arith.constant 0 : index
    %31 = vector.load %arg1[%c0_18, %c0_19, %c0_20] : memref<1x64x16xf32, #tpu.memory_space<vmem>>, vector<1x64x16xf32>
    %32 = vector.shape_cast %31 : vector<1x64x16xf32> to vector<64x16xf32>
    %c0_21 = arith.constant 0 : index
    %c0_22 = arith.constant 0 : index
    %33 = vector.load %arg7[%c0_21, %c0_22] : memref<16x32xf32, #tpu.memory_space<vmem>>, vector<16x32xf32>
    %cst_23 = arith.constant dense<0.000000e+00> : vector<64x32xf32>
    %34 = tpu.matmul %32, %33, %cst_23 {dimension_numbers = #tpu.dot_dimension_numbers<[1], [0], [0], [1], [0, 0, 1, 1], [], []>} : vector<64x16xf32>, vector<16x32xf32>, vector<64x32xf32> -> vector<64x32xf32>
    %cst_24 = arith.constant 0.000000e+00 : f32
    %35 = vector.broadcast %cst_24 : f32 to vector<64x32xf32>
    %36 = arith.maximumf %34, %35 : vector<64x32xf32>
    %c0_25 = arith.constant 0 : index
    %c0_26 = arith.constant 0 : index
    %c0_27 = arith.constant 0 : index
    %37 = vector.load %arg2[%c0_25, %c0_26, %c0_27] : memref<1x128x32xf32, #tpu.memory_space<vmem>>, vector<1x128x32xf32>
    %38 = vector.shape_cast %37 : vector<1x128x32xf32> to vector<128x32xf32>
    %c0_28 = arith.constant 0 : index
    %c0_29 = arith.constant 0 : index
    %39 = vector.load %arg8[%c0_28, %c0_29] : memref<32x32xf32, #tpu.memory_space<vmem>>, vector<32x32xf32>
    %cst_30 = arith.constant dense<0.000000e+00> : vector<128x32xf32>
    %40 = tpu.matmul %38, %39, %cst_30 {dimension_numbers = #tpu.dot_dimension_numbers<[1], [0], [0], [1], [0, 0, 1, 1], [], []>} : vector<128x32xf32>, vector<32x32xf32>, vector<128x32xf32> -> vector<128x32xf32>
    %cst_31 = arith.constant 0.000000e+00 : f32
    %41 = vector.broadcast %cst_31 : f32 to vector<128x32xf32>
    %42 = arith.maximumf %40, %41 : vector<128x32xf32>
    %cst_32 = arith.constant dense<0.000000e+00> : vector<64x32xf32>
    %43 = tpu.matmul %1, %42, %cst_32 {dimension_numbers = #tpu.dot_dimension_numbers<[1], [0], [0], [1], [0, 0, 1, 1], [], []>} : vector<64x128xf32>, vector<128x32xf32>, vector<64x32xf32> -> vector<64x32xf32>
    %44 = tpu.concatenate %42, %42, %42, %42 in 1 : vector<128x32xf32>, vector<128x32xf32>, vector<128x32xf32>, vector<128x32xf32> -> vector<128x128xf32>
    %cst_33 = arith.constant -3.000000e+38 : f32
    %45 = vector.broadcast %cst_33 : f32 to vector<16x128xf32>
    %c0_34 = arith.constant 0 : index
    %c0_35 = arith.constant 0 : index
    %c0_36 = arith.constant 0 : index
    %c0_37 = arith.constant 0 : index
    %46 = vector.load %arg5[%c0_34, %c0_35, %c0_36, %c0_37] : memref<1x16x128x128xf32, #tpu.memory_space<vmem>>, vector<1x16x128x128xf32>
    %47 = vector.shape_cast %46 : vector<1x16x128x128xf32> to vector<16x128x128xf32>
    %cst_38 = arith.constant 5.000000e-01 : f32
    %48 = vector.broadcast %cst_38 : f32 to vector<16x128x128xf32>
    %49 = arith.cmpf ogt, %47, %48 : vector<16x128x128xf32>
    %50 = vector.shape_cast %44 : vector<128x128xf32> to vector<1x128x128xf32>
    %cst_39 = arith.constant -3.000000e+38 : f32
    %51 = vector.shape_cast %50 : vector<1x128x128xf32> to vector<1x128x128xf32>
    %52 = vector.broadcast %51 : vector<1x128x128xf32> to vector<16x128x128xf32>
    %53 = vector.broadcast %cst_39 : f32 to vector<16x128x128xf32>
    %54 = arith.select %49, %52, %53 : vector<16x128x128xi1>, vector<16x128x128xf32>
    %cst_40 = arith.constant dense<0xFF800000> : vector<16x128xf32>
    %55 = vector.multi_reduction <maximumf>, %54, %cst_40 [1] : vector<16x128x128xf32> to vector<16x128xf32>
    %56 = arith.maximumf %45, %55 : vector<16x128xf32>
    %57 = vector.extract_strided_slice %56 {offsets = [0, 0], sizes = [16, 32], strides = [1, 1]} : vector<16x128xf32> to vector<16x32xf32>
    %58 = vector.extract_strided_slice %56 {offsets = [0, 32], sizes = [16, 32], strides = [1, 1]} : vector<16x128xf32> to vector<16x32xf32>
    %59 = vector.extract_strided_slice %56 {offsets = [0, 64], sizes = [16, 32], strides = [1, 1]} : vector<16x128xf32> to vector<16x32xf32>
    %60 = vector.extract_strided_slice %56 {offsets = [0, 96], sizes = [16, 32], strides = [1, 1]} : vector<16x128xf32> to vector<16x32xf32>
    %61 = tpu.concatenate %57, %58, %59, %60 in 0 : vector<16x32xf32>, vector<16x32xf32>, vector<16x32xf32>, vector<16x32xf32> -> vector<64x32xf32>
    %cst_41 = arith.constant 0.000000e+00 : f32
    %62 = vector.shape_cast %7 : vector<64x1xi1> to vector<64x1xi1>
    %63 = vector.broadcast %62 : vector<64x1xi1> to vector<64x32xi1>
    %64 = vector.broadcast %cst_41 : f32 to vector<64x32xf32>
    %65 = arith.select %63, %61, %64 : vector<64x32xi1>, vector<64x32xf32>
    %66 = arith.mulf %43, %65 : vector<64x32xf32>
    %67 = arith.addf %36, %66 : vector<64x32xf32>
    %cst_42 = arith.constant dense<0.000000e+00> : vector<128x32xf32>
    %68 = tpu.matmul %3, %67, %cst_42 {dimension_numbers = #tpu.dot_dimension_numbers<[1], [0], [0], [1], [0, 0, 1, 1], [], []>} : vector<128x64xf32>, vector<64x32xf32>, vector<128x32xf32> -> vector<128x32xf32>
    %c127_i32 = arith.constant 127 : i32
    %69 = tpu.dynamic_rotate %42 by %c127_i32 dim 0 : vector<128x32xf32>, i32 -> vector<128x32xf32>
    %c1_i32_43 = arith.constant 1 : i32
    %70 = tpu.dynamic_rotate %42 by %c1_i32_43 dim 0 : vector<128x32xf32>, i32 -> vector<128x32xf32>
    %71 = arith.select %30, %69, %70 : vector<128x32xi1>, vector<128x32xf32>
    %72 = arith.subf %68, %71 : vector<128x32xf32>
    %73 = vector.extract_strided_slice %10 {offsets = [0, 0, 0], sizes = [1, 32, 32], strides = [1, 1, 1]} : vector<2x32x32xf32> to vector<1x32x32xf32>
    %74 = vector.shape_cast %73 : vector<1x32x32xf32> to vector<32x32xf32>
    %cst_44 = arith.constant dense<0.000000e+00> : vector<128x32xf32>
    %75 = tpu.matmul %72, %74, %cst_44 {dimension_numbers = #tpu.dot_dimension_numbers<[1], [0], [0], [1], [0, 0, 1, 1], [], []>} : vector<128x32xf32>, vector<32x32xf32>, vector<128x32xf32> -> vector<128x32xf32>
    %76 = arith.addf %42, %75 : vector<128x32xf32>
    %cst_45 = arith.constant 0.000000e+00 : f32
    %77 = vector.broadcast %cst_45 : f32 to vector<128x32xf32>
    %78 = arith.maximumf %76, %77 : vector<128x32xf32>
    %cst_46 = arith.constant dense<0.000000e+00> : vector<64x32xf32>
    %79 = tpu.matmul %1, %78, %cst_46 {dimension_numbers = #tpu.dot_dimension_numbers<[1], [0], [0], [1], [0, 0, 1, 1], [], []>} : vector<64x128xf32>, vector<128x32xf32>, vector<64x32xf32> -> vector<64x32xf32>
    %80 = tpu.concatenate %78, %78, %78, %78 in 1 : vector<128x32xf32>, vector<128x32xf32>, vector<128x32xf32>, vector<128x32xf32> -> vector<128x128xf32>
    %cst_47 = arith.constant -3.000000e+38 : f32
    %81 = vector.broadcast %cst_47 : f32 to vector<16x128xf32>
    %c0_48 = arith.constant 0 : index
    %c0_49 = arith.constant 0 : index
    %c0_50 = arith.constant 0 : index
    %c0_51 = arith.constant 0 : index
    %82 = vector.load %arg5[%c0_48, %c0_49, %c0_50, %c0_51] : memref<1x16x128x128xf32, #tpu.memory_space<vmem>>, vector<1x16x128x128xf32>
    %83 = vector.shape_cast %82 : vector<1x16x128x128xf32> to vector<16x128x128xf32>
    %cst_52 = arith.constant 5.000000e-01 : f32
    %84 = vector.broadcast %cst_52 : f32 to vector<16x128x128xf32>
    %85 = arith.cmpf ogt, %83, %84 : vector<16x128x128xf32>
    %86 = vector.shape_cast %80 : vector<128x128xf32> to vector<1x128x128xf32>
    %cst_53 = arith.constant -3.000000e+38 : f32
    %87 = vector.shape_cast %86 : vector<1x128x128xf32> to vector<1x128x128xf32>
    %88 = vector.broadcast %87 : vector<1x128x128xf32> to vector<16x128x128xf32>
    %89 = vector.broadcast %cst_53 : f32 to vector<16x128x128xf32>
    %90 = arith.select %85, %88, %89 : vector<16x128x128xi1>, vector<16x128x128xf32>
    %cst_54 = arith.constant dense<0xFF800000> : vector<16x128xf32>
    %91 = vector.multi_reduction <maximumf>, %90, %cst_54 [1] : vector<16x128x128xf32> to vector<16x128xf32>
    %92 = arith.maximumf %81, %91 : vector<16x128xf32>
    %93 = vector.extract_strided_slice %92 {offsets = [0, 0], sizes = [16, 32], strides = [1, 1]} : vector<16x128xf32> to vector<16x32xf32>
    %94 = vector.extract_strided_slice %92 {offsets = [0, 32], sizes = [16, 32], strides = [1, 1]} : vector<16x128xf32> to vector<16x32xf32>
    %95 = vector.extract_strided_slice %92 {offsets = [0, 64], sizes = [16, 32], strides = [1, 1]} : vector<16x128xf32> to vector<16x32xf32>
    %96 = vector.extract_strided_slice %92 {offsets = [0, 96], sizes = [16, 32], strides = [1, 1]} : vector<16x128xf32> to vector<16x32xf32>
    %97 = tpu.concatenate %93, %94, %95, %96 in 0 : vector<16x32xf32>, vector<16x32xf32>, vector<16x32xf32>, vector<16x32xf32> -> vector<64x32xf32>
    %cst_55 = arith.constant 0.000000e+00 : f32
    %98 = vector.shape_cast %7 : vector<64x1xi1> to vector<64x1xi1>
    %99 = vector.broadcast %98 : vector<64x1xi1> to vector<64x32xi1>
    %100 = vector.broadcast %cst_55 : f32 to vector<64x32xf32>
    %101 = arith.select %99, %97, %100 : vector<64x32xi1>, vector<64x32xf32>
    %102 = arith.mulf %79, %101 : vector<64x32xf32>
    %103 = arith.addf %67, %102 : vector<64x32xf32>
    %cst_56 = arith.constant dense<0.000000e+00> : vector<128x32xf32>
    %104 = tpu.matmul %3, %103, %cst_56 {dimension_numbers = #tpu.dot_dimension_numbers<[1], [0], [0], [1], [0, 0, 1, 1], [], []>} : vector<128x64xf32>, vector<64x32xf32>, vector<128x32xf32> -> vector<128x32xf32>
    %c127_i32_57 = arith.constant 127 : i32
    %105 = tpu.dynamic_rotate %78 by %c127_i32_57 dim 0 : vector<128x32xf32>, i32 -> vector<128x32xf32>
    %c1_i32_58 = arith.constant 1 : i32
    %106 = tpu.dynamic_rotate %78 by %c1_i32_58 dim 0 : vector<128x32xf32>, i32 -> vector<128x32xf32>
    %107 = arith.select %30, %105, %106 : vector<128x32xi1>, vector<128x32xf32>
    %108 = arith.subf %104, %107 : vector<128x32xf32>
    %109 = vector.extract_strided_slice %10 {offsets = [1, 0, 0], sizes = [1, 32, 32], strides = [1, 1, 1]} : vector<2x32x32xf32> to vector<1x32x32xf32>
    %110 = vector.shape_cast %109 : vector<1x32x32xf32> to vector<32x32xf32>
    %cst_59 = arith.constant dense<0.000000e+00> : vector<128x32xf32>
    %111 = tpu.matmul %108, %110, %cst_59 {dimension_numbers = #tpu.dot_dimension_numbers<[1], [0], [0], [1], [0, 0, 1, 1], [], []>} : vector<128x32xf32>, vector<32x32xf32>, vector<128x32xf32> -> vector<128x32xf32>
    %112 = arith.addf %42, %111 : vector<128x32xf32>
    %cst_60 = arith.constant 0.000000e+00 : f32
    %113 = vector.broadcast %cst_60 : f32 to vector<128x32xf32>
    %114 = arith.maximumf %112, %113 : vector<128x32xf32>
    %cst_61 = arith.constant dense<0.000000e+00> : vector<64x32xf32>
    %115 = tpu.matmul %1, %114, %cst_61 {dimension_numbers = #tpu.dot_dimension_numbers<[1], [0], [0], [1], [0, 0, 1, 1], [], []>} : vector<64x128xf32>, vector<128x32xf32>, vector<64x32xf32> -> vector<64x32xf32>
    %116 = tpu.concatenate %114, %114, %114, %114 in 1 : vector<128x32xf32>, vector<128x32xf32>, vector<128x32xf32>, vector<128x32xf32> -> vector<128x128xf32>
    %cst_62 = arith.constant -3.000000e+38 : f32
    %117 = vector.broadcast %cst_62 : f32 to vector<16x128xf32>
    %c0_63 = arith.constant 0 : index
    %c0_64 = arith.constant 0 : index
    %c0_65 = arith.constant 0 : index
    %c0_66 = arith.constant 0 : index
    %118 = vector.load %arg5[%c0_63, %c0_64, %c0_65, %c0_66] : memref<1x16x128x128xf32, #tpu.memory_space<vmem>>, vector<1x16x128x128xf32>
    %119 = vector.shape_cast %118 : vector<1x16x128x128xf32> to vector<16x128x128xf32>
    %cst_67 = arith.constant 5.000000e-01 : f32
    %120 = vector.broadcast %cst_67 : f32 to vector<16x128x128xf32>
    %121 = arith.cmpf ogt, %119, %120 : vector<16x128x128xf32>
    %122 = vector.shape_cast %116 : vector<128x128xf32> to vector<1x128x128xf32>
    %cst_68 = arith.constant -3.000000e+38 : f32
    %123 = vector.shape_cast %122 : vector<1x128x128xf32> to vector<1x128x128xf32>
    %124 = vector.broadcast %123 : vector<1x128x128xf32> to vector<16x128x128xf32>
    %125 = vector.broadcast %cst_68 : f32 to vector<16x128x128xf32>
    %126 = arith.select %121, %124, %125 : vector<16x128x128xi1>, vector<16x128x128xf32>
    %cst_69 = arith.constant dense<0xFF800000> : vector<16x128xf32>
    %127 = vector.multi_reduction <maximumf>, %126, %cst_69 [1] : vector<16x128x128xf32> to vector<16x128xf32>
    %128 = arith.maximumf %117, %127 : vector<16x128xf32>
    %129 = vector.extract_strided_slice %128 {offsets = [0, 0], sizes = [16, 32], strides = [1, 1]} : vector<16x128xf32> to vector<16x32xf32>
    %130 = vector.extract_strided_slice %128 {offsets = [0, 32], sizes = [16, 32], strides = [1, 1]} : vector<16x128xf32> to vector<16x32xf32>
    %131 = vector.extract_strided_slice %128 {offsets = [0, 64], sizes = [16, 32], strides = [1, 1]} : vector<16x128xf32> to vector<16x32xf32>
    %132 = vector.extract_strided_slice %128 {offsets = [0, 96], sizes = [16, 32], strides = [1, 1]} : vector<16x128xf32> to vector<16x32xf32>
    %133 = tpu.concatenate %129, %130, %131, %132 in 0 : vector<16x32xf32>, vector<16x32xf32>, vector<16x32xf32>, vector<16x32xf32> -> vector<64x32xf32>
    %cst_70 = arith.constant 0.000000e+00 : f32
    %134 = vector.shape_cast %7 : vector<64x1xi1> to vector<64x1xi1>
    %135 = vector.broadcast %134 : vector<64x1xi1> to vector<64x32xi1>
    %136 = vector.broadcast %cst_70 : f32 to vector<64x32xf32>
    %137 = arith.select %135, %133, %136 : vector<64x32xi1>, vector<64x32xf32>
    %138 = arith.mulf %115, %137 : vector<64x32xf32>
    %139 = vector.extract_strided_slice %11 {offsets = [0, 0], sizes = [32, 32], strides = [1, 1]} : vector<96x32xf32> to vector<32x32xf32>
    %cst_71 = arith.constant dense<0.000000e+00> : vector<64x32xf32>
    %140 = tpu.matmul %138, %139, %cst_71 {dimension_numbers = #tpu.dot_dimension_numbers<[1], [0], [0], [1], [0, 0, 1, 1], [], []>} : vector<64x32xf32>, vector<32x32xf32>, vector<64x32xf32> -> vector<64x32xf32>
    %141 = vector.extract_strided_slice %11 {offsets = [32, 0], sizes = [32, 32], strides = [1, 1]} : vector<96x32xf32> to vector<32x32xf32>
    %cst_72 = arith.constant dense<0.000000e+00> : vector<64x32xf32>
    %142 = tpu.matmul %103, %141, %cst_72 {dimension_numbers = #tpu.dot_dimension_numbers<[1], [0], [0], [1], [0, 0, 1, 1], [], []>} : vector<64x32xf32>, vector<32x32xf32>, vector<64x32xf32> -> vector<64x32xf32>
    %143 = arith.addf %140, %142 : vector<64x32xf32>
    %144 = vector.extract_strided_slice %11 {offsets = [64, 0], sizes = [32, 32], strides = [1, 1]} : vector<96x32xf32> to vector<32x32xf32>
    %cst_73 = arith.constant dense<0.000000e+00> : vector<64x32xf32>
    %145 = tpu.matmul %36, %144, %cst_73 {dimension_numbers = #tpu.dot_dimension_numbers<[1], [0], [0], [1], [0, 0, 1, 1], [], []>} : vector<64x32xf32>, vector<32x32xf32>, vector<64x32xf32> -> vector<64x32xf32>
    %146 = arith.addf %143, %145 : vector<64x32xf32>
    %cst_74 = arith.constant 0.000000e+00 : f32
    %147 = vector.broadcast %cst_74 : f32 to vector<64x32xf32>
    %148 = arith.maximumf %146, %147 : vector<64x32xf32>
    %cst_75 = arith.constant dense<0.000000e+00> : vector<8x32xf32>
    %149 = tpu.matmul %9, %148, %cst_75 {dimension_numbers = #tpu.dot_dimension_numbers<[1], [0], [0], [1], [0, 0, 1, 1], [], []>} : vector<8x64xf32>, vector<64x32xf32>, vector<8x32xf32> -> vector<8x32xf32>
    %c0_76 = arith.constant 0 : index
    %c0_77 = arith.constant 0 : index
    %150 = vector.load %arg11[%c0_76, %c0_77] : memref<32x16xf32, #tpu.memory_space<vmem>>, vector<32x16xf32>
    %cst_78 = arith.constant dense<0.000000e+00> : vector<8x16xf32>
    %151 = tpu.matmul %149, %150, %cst_78 {dimension_numbers = #tpu.dot_dimension_numbers<[1], [0], [0], [1], [0, 0, 1, 1], [], []>} : vector<8x32xf32>, vector<32x16xf32>, vector<8x16xf32> -> vector<8x16xf32>
    %cst_79 = arith.constant 0.000000e+00 : f32
    %152 = vector.broadcast %cst_79 : f32 to vector<8x16xf32>
    %153 = arith.maximumf %151, %152 : vector<8x16xf32>
    %c0_80 = arith.constant 0 : index
    %c0_81 = arith.constant 0 : index
    %154 = vector.load %arg12[%c0_80, %c0_81] : memref<16x1xf32, #tpu.memory_space<vmem>>, vector<16x1xf32>
    %cst_82 = arith.constant dense<0.000000e+00> : vector<8x1xf32>
    %155 = tpu.matmul %153, %154, %cst_82 {dimension_numbers = #tpu.dot_dimension_numbers<[1], [0], [0], [1], [0, 0, 1, 1], [], []>} : vector<8x16xf32>, vector<16x1xf32>, vector<8x1xf32> -> vector<8x1xf32>
    %156 = arith.negf %155 : vector<8x1xf32>
    %157 = math.exp %156 : vector<8x1xf32>
    %cst_83 = arith.constant 1.000000e+00 : f32
    %158 = vector.broadcast %cst_83 : f32 to vector<8x1xf32>
    %159 = arith.addf %158, %157 : vector<8x1xf32>
    %160 = arith.divf %158, %159 : vector<8x1xf32>
    %161 = vector.shape_cast %160 : vector<8x1xf32> to vector<8x1xf32>
    %162 = vector.broadcast %161 : vector<8x1xf32> to vector<8x128xf32>
    %c0_84 = arith.constant 0 : index
    %c0_85 = arith.constant 0 : index
    %c0_86 = arith.constant 0 : index
    %163 = vector.load %arg13[%c0_84, %c0_85, %c0_86] : memref<1x8x128xf32, #tpu.memory_space<vmem>>, vector<1x8x128xf32>
    %164 = vector.shape_cast %163 : vector<1x8x128xf32> to vector<8x128xf32>
    %165 = vector.shape_cast %162 : vector<8x128xf32> to vector<1x8x128xf32>
    tpu.vector_store %arg13[%c0_84, %c0_85, %c0_86], %165 {strides = array<i32>} : memref<1x8x128xf32, #tpu.memory_space<vmem>>, vector<1x8x128xf32>,
    return
  }
  func.func @transform_0(%arg0: i32) -> (i32, i32, i32) {
    %c0_i32 = arith.constant 0 : i32
    %c0_i32_0 = arith.constant 0 : i32
    %c0_i32_1 = arith.constant 0 : i32
    return %arg0, %c0_i32, %c0_i32_0 : i32, i32, i32
  }
  func.func @transform_1(%arg0: i32) -> (i32, i32, i32) {
    %c0_i32 = arith.constant 0 : i32
    %c0_i32_0 = arith.constant 0 : i32
    %c0_i32_1 = arith.constant 0 : i32
    return %arg0, %c0_i32, %c0_i32_0 : i32, i32, i32
  }
  func.func @transform_2(%arg0: i32) -> (i32, i32, i32) {
    %c0_i32 = arith.constant 0 : i32
    %c0_i32_0 = arith.constant 0 : i32
    %c0_i32_1 = arith.constant 0 : i32
    return %arg0, %c0_i32, %c0_i32_0 : i32, i32, i32
  }
  func.func @transform_3(%arg0: i32) -> (i32, i32, i32) {
    %c0_i32 = arith.constant 0 : i32
    %c0_i32_0 = arith.constant 0 : i32
    %c0_i32_1 = arith.constant 0 : i32
    return %arg0, %c0_i32, %c0_i32_0 : i32, i32, i32
  }
  func.func @transform_4(%arg0: i32) -> (i32, i32, i32, i32) {
    %c0_i32 = arith.constant 0 : i32
    %c0_i32_0 = arith.constant 0 : i32
    %c0_i32_1 = arith.constant 0 : i32
    %c0_i32_2 = arith.constant 0 : i32
    return %arg0, %c0_i32, %c0_i32_0, %c0_i32_1 : i32, i32, i32, i32
  }
  func.func @transform_5(%arg0: i32) -> (i32, i32, i32) {
    %c0_i32 = arith.constant 0 : i32
    %c0_i32_0 = arith.constant 0 : i32
    %c0_i32_1 = arith.constant 0 : i32
    return %arg0, %c0_i32, %c0_i32_0 : i32, i32, i32
  }
  func.func @transform_6(%arg0: i32) -> (i32, i32) {
    %c0_i32 = arith.constant 0 : i32
    %c0_i32_0 = arith.constant 0 : i32
    %c0_i32_1 = arith.constant 0 : i32
    return %c0_i32, %c0_i32_0 : i32, i32
  }
  func.func @transform_7(%arg0: i32) -> (i32, i32) {
    %c0_i32 = arith.constant 0 : i32
    %c0_i32_0 = arith.constant 0 : i32
    %c0_i32_1 = arith.constant 0 : i32
    return %c0_i32, %c0_i32_0 : i32, i32
  }
  func.func @transform_8(%arg0: i32) -> (i32, i32, i32) {
    %c0_i32 = arith.constant 0 : i32
    %c0_i32_0 = arith.constant 0 : i32
    %c0_i32_1 = arith.constant 0 : i32
    %c0_i32_2 = arith.constant 0 : i32
    return %c0_i32, %c0_i32_0, %c0_i32_1 : i32, i32, i32
  }
  func.func @transform_9(%arg0: i32) -> (i32, i32) {
    %c0_i32 = arith.constant 0 : i32
    %c0_i32_0 = arith.constant 0 : i32
    %c0_i32_1 = arith.constant 0 : i32
    return %c0_i32, %c0_i32_0 : i32, i32
  }
  func.func @transform_10(%arg0: i32) -> (i32, i32) {
    %c0_i32 = arith.constant 0 : i32
    %c0_i32_0 = arith.constant 0 : i32
    %c0_i32_1 = arith.constant 0 : i32
    return %c0_i32, %c0_i32_0 : i32, i32
  }
  func.func @transform_11(%arg0: i32) -> (i32, i32) {
    %c0_i32 = arith.constant 0 : i32
    %c0_i32_0 = arith.constant 0 : i32
    %c0_i32_1 = arith.constant 0 : i32
    return %c0_i32, %c0_i32_0 : i32, i32
  }
  func.func @transform_12(%arg0: i32) -> (i32, i32, i32) {
    %c0_i32 = arith.constant 0 : i32
    %c0_i32_0 = arith.constant 0 : i32
    %c0_i32_1 = arith.constant 0 : i32
    return %arg0, %c0_i32, %c0_i32_0 : i32, i32, i32
  }
}

</mosaic_0001>

<llo_original>
// kernel: tpu_custom_call.1
$region0: #{tpu_custom_call.1}
  #allocation0 [shape = 'u32[]', space=smem, size = 0x4, offset = 0x4, fixed_abs, tag = 'smem constant byte address 0x4 - core index']
  #allocation1 [shape = 'u32[72,128]{1,0:T(1,128)}', space=vmem, size = 0x9000, scoped, tag = 'internal scratch']
  %s0 = inlined_call_operand.vmem [shape: f32[2,64,16], index: 0, kind: input, shape index: {}]
  %s1 = inlined_call_operand.vmem [shape: f32[2,128,32], index: 1, kind: input, shape index: {}]
  %s2 = inlined_call_operand.vmem [shape: f32[2,128,64], index: 2, kind: input, shape index: {}]
  %s3 = inlined_call_operand.hbm [shape: f32[2,64,128], index: 3, kind: input, shape index: {}]
  %s4 = inlined_call_operand.hbm [shape: f32[2,16,128,128], index: 4, kind: input, shape index: {}]
  %s5 = inlined_call_operand.hbm [shape: f32[2,8,64], index: 5, kind: input, shape index: {}]
  %s6 = inlined_call_operand.hbm [shape: f32[16,32], index: 6, kind: input, shape index: {}]
  %s7 = inlined_call_operand.hbm [shape: f32[32,32], index: 7, kind: input, shape index: {}]
  %s8 = inlined_call_operand.hbm [shape: f32[2,32,32], index: 8, kind: input, shape index: {}]
  %s9 = inlined_call_operand.vmem [shape: f32[96,32], index: 9, kind: input, shape index: {}]
  %s10 = inlined_call_operand.vmem [shape: f32[32,16], index: 10, kind: input, shape index: {}]
  %s11 = inlined_call_operand.vmem [shape: f32[16,1], index: 11, kind: input, shape index: {}]
  %s12 = inlined_call_operand.hbm [shape: f32[2,8,128], index: 12, kind: output, shape index: {}]
  %s13 = sld [smem:[#allocation0]]
  $region105: #{tpu_custom_call.1} parent=0
    _
  %s15 = ssub.s32 1, %s13
  %s16 = scalar_select 0, %s15, %s13
  $region1: #{tpu_custom_call.1} parent=0
    #allocation2 [shape = 'u8[65536]{0}', space=vmem, size = 0x10000, scoped, tag = 'input window, operand 3']
    #allocation3 [shape = 's32[2]{0}', space=sflag, size = 0x8, scoped, tag = 'scoped memory for tpu_custom_call.1']
    #allocation4 [shape = 's32[2]{0}', space=sflag, size = 0x8, scoped, tag = 'scoped memory for tpu_custom_call.1']
    #allocation5 [shape = 'u8[2097152]{0}', space=vmem, size = 0x200000, scoped, tag = 'input window, operand 4']
    #allocation6 [shape = 's32[2]{0}', space=sflag, size = 0x8, scoped, tag = 'scoped memory for tpu_custom_call.1']
    #allocation7 [shape = 'u8[8192]{0}', space=vmem, size = 0x2000, scoped, tag = 'input window, operand 5']
    #allocation8 [shape = 'u8[8192]{0}', space=vmem, size = 0x2000, scoped, tag = 'input window, operand 6, single buffered']
    #allocation9 [shape = 's32[1]{0}', space=sflag, size = 0x4, scoped, tag = 'scoped memory for tpu_custom_call.1']
    #allocation10 [shape = 'u8[16384]{0}', space=vmem, size = 0x4000, scoped, tag = 'input window, operand 7, single buffered']
    #allocation11 [shape = 'u8[32768]{0}', space=vmem, size = 0x8000, scoped, tag = 'input window, operand 8, single buffered']
    #allocation12 [shape = 's32[1]{0}', space=sflag, size = 0x4, scoped, tag = 'scoped memory for tpu_custom_call.1']
    #allocation13 [shape = 'u8[8192]{0}', space=vmem, size = 0x2000, scoped, tag = 'output window, operand 0']
    %17 = vsyncpa [#allocation3], 0
    %s18 = scalar_lea.sflag [#allocation3], 1
    %19 = vsyncpa %s18, 0
    %20 = vsyncpa [#allocation6], 0
    %s21 = scalar_lea.sflag [#allocation6], 1
    %22 = vsyncpa %s21, 0
    %23 = vsyncpa [#allocation9], 0
    %24 = vsyncpa [#allocation12], 0
    %25 = vsyncpa [#allocation4], 0
    %s26 = scalar_lea.sflag [#allocation4], 1
    %27 = vsyncpa %s26, 0
    loop: start=0, step=1, limit=4
    $region2: #{tpu_custom_call.1} parent=1 // loop_pre_header
      _
    $region3: #{tpu_custom_call.1} parent=1 // loop_header
      %s29 = sphi 0, %s33
      %p30 = scmp.ge.s32.totalorder %s29, 4
      %s39 = sphi 0, %s41
      %s42 = sphi 0, %s39
      %s43 = sphi 0, %s42
      %s59 = sphi 0, %s43
      %s65 = sphi 0, %s67
      %s68 = sphi 0, %s65
      %s69 = sphi 0, %s68
      %s85 = sphi 0, %s69
      %s91 = sphi 0, %s93
      %s94 = sphi 0, %s91
      %s95 = sphi 0, %s94
      %s111 = sphi 0, %s95
      %s117 = sphi 0, %s119
      %s120 = sphi 0, %s117
      %s121 = sphi 0, %s120
      %s137 = sphi 0, %s121
      %s143 = sphi 0, %s145
      %s146 = sphi 0, %s143
      %s147 = sphi 0, %s146
      %s163 = sphi 0, %s147
      %s169 = sphi 0, %s171
      %s172 = sphi 0, %s169
      %s173 = sphi 0, %s172
      %s189 = sphi 0, %s173
      %s193 = sphi 0, %s193
      %s195 = sphi 0, %s193
      %s196 = sphi 0, %s195
      %s210 = sphi 0, %s196
      %s214 = sphi 0, %s214
      %s216 = sphi 0, %s214
      %s217 = sphi 0, %s216
      %s231 = sphi 0, %s217
      %s235 = sphi 0, %s235
      %s237 = sphi 0, %s235
      %s238 = sphi 0, %s237
      %s252 = sphi 0, %s238
      %s256 = sphi 0, %s256
      %s258 = sphi 0, %s256
      %s259 = sphi 0, %s258
      %s273 = sphi 0, %s259
      %s277 = sphi 0, %s277
      %s279 = sphi 0, %s277
      %s280 = sphi 0, %s279
      %s294 = sphi 0, %s280
      %s298 = sphi 0, %s298
      %s300 = sphi 0, %s298
      %s301 = sphi 0, %s300
      %s315 = sphi 0, %s301
      %s321 = sphi 0, %s323
      %s324 = sphi 0, %s321
      %s325 = sphi 0, %s324
      %s341 = sphi 0, %s325
    $region4: #{tpu_custom_call.1} parent=1 // loop_header_branch
      %32 = sbr.rel (%p30) target = $region8
    $region5: #{tpu_custom_call.1} parent=1 // loop_body
      %s34 = ssub.s32 %s29, 1
      %s35 = ssub.s32 %s29, 2
      %s36 = sadd.s32 %s29, 1
      %s37 = ssub.s32 %s29, %s36
      %p38 = scmp.eq.s32.totalorder %s37, 0
      %s40 = sadd.s32 %s39, 1
      %s41 = scalar_select %p38, %s39, %s40
      %p44 = pneg %p38
      %p45 = scmp.eq.s32.totalorder %s29, 1
      %p46 = por %p44, %p45
      %p47 = scmp.ne.s32.totalorder %s39, %s42
      %p48 = scmp.eq.s32.totalorder %s29, 0
      %p49 = por %p47, %p48
      %p50 = scmp.ne.s32.totalorder %s39, %s42
      %p51 = scmp.eq.s32.totalorder %s34, 1
      %p52 = por %p50, %p51
      %p53 = scmp.ne.s32.totalorder %s42, %s43
      %p54 = scmp.eq.s32.totalorder %s34, 0
      %p55 = por %p53, %p54
      %p56 = scmp.ne.s32.totalorder %s42, %s43
      %p57 = scmp.eq.s32.totalorder %s35, 1
      %p58 = por %p56, %p57
      %p60 = scmp.ne.s32.totalorder %s43, %s59
      %p61 = scmp.eq.s32.totalorder %s35, 0
      %p62 = por %p60, %p61
      %s63 = ssub.s32 %s29, %s36
      %p64 = scmp.eq.s32.totalorder %s63, 0
      %s66 = sadd.s32 %s65, 1
      %s67 = scalar_select %p64, %s65, %s66
      %p70 = pneg %p64
      %p71 = scmp.eq.s32.totalorder %s29, 1
      %p72 = por %p70, %p71
      %p73 = scmp.ne.s32.totalorder %s65, %s68
      %p74 = scmp.eq.s32.totalorder %s29, 0
      %p75 = por %p73, %p74
      %p76 = scmp.ne.s32.totalorder %s65, %s68
      %p77 = scmp.eq.s32.totalorder %s34, 1
      %p78 = por %p76, %p77
      %p79 = scmp.ne.s32.totalorder %s68, %s69
      %p80 = scmp.eq.s32.totalorder %s34, 0
      %p81 = por %p79, %p80
      %p82 = scmp.ne.s32.totalorder %s68, %s69
      %p83 = scmp.eq.s32.totalorder %s35, 1
      %p84 = por %p82, %p83
      %p86 = scmp.ne.s32.totalorder %s69, %s85
      %p87 = scmp.eq.s32.totalorder %s35, 0
      %p88 = por %p86, %p87
      %s89 = ssub.s32 %s29, %s36
      %p90 = scmp.eq.s32.totalorder %s89, 0
      %s92 = sadd.s32 %s91, 1
      %s93 = scalar_select %p90, %s91, %s92
      %p96 = pneg %p90
      %p97 = scmp.eq.s32.totalorder %s29, 1
      %p98 = por %p96, %p97
      %p99 = scmp.ne.s32.totalorder %s91, %s94
      %p100 = scmp.eq.s32.totalorder %s29, 0
      %p101 = por %p99, %p100
      %p102 = scmp.ne.s32.totalorder %s91, %s94
      %p103 = scmp.eq.s32.totalorder %s34, 1
      %p104 = por %p102, %p103
      %p105 = scmp.ne.s32.totalorder %s94, %s95
      %p106 = scmp.eq.s32.totalorder %s34, 0
      %p107 = por %p105, %p106
      %p108 = scmp.ne.s32.totalorder %s94, %s95
      %p109 = scmp.eq.s32.totalorder %s35, 1
      %p110 = por %p108, %p109
      %p112 = scmp.ne.s32.totalorder %s95, %s111
      %p113 = scmp.eq.s32.totalorder %s35, 0
      %p114 = por %p112, %p113
      %s115 = ssub.s32 %s29, %s36
      %p116 = scmp.eq.s32.totalorder %s115, 0
      %s118 = sadd.s32 %s117, 1
      %s119 = scalar_select %p116, %s117, %s118
      %p122 = pneg %p116
      %p123 = scmp.eq.s32.totalorder %s29, 1
      %p124 = por %p122, %p123
      %p125 = scmp.ne.s32.totalorder %s117, %s120
      %p126 = scmp.eq.s32.totalorder %s29, 0
      %p127 = por %p125, %p126
      %p128 = scmp.ne.s32.totalorder %s117, %s120
      %p129 = scmp.eq.s32.totalorder %s34, 1
      %p130 = por %p128, %p129
      %p131 = scmp.ne.s32.totalorder %s120, %s121
      %p132 = scmp.eq.s32.totalorder %s34, 0
      %p133 = por %p131, %p132
      %p134 = scmp.ne.s32.totalorder %s120, %s121
      %p135 = scmp.eq.s32.totalorder %s35, 1
      %p136 = por %p134, %p135
      %p138 = scmp.ne.s32.totalorder %s121, %s137
      %p139 = scmp.eq.s32.totalorder %s35, 0
      %p140 = por %p138, %p139
      %s141 = ssub.s32 %s29, %s36
      %p142 = scmp.eq.s32.totalorder %s141, 0
      %s144 = sadd.s32 %s143, 1
      %s145 = scalar_select %p142, %s143, %s144
      %p148 = pneg %p142
      %p149 = scmp.eq.s32.totalorder %s29, 1
      %p150 = por %p148, %p149
      %p151 = scmp.ne.s32.totalorder %s143, %s146
      %p152 = scmp.eq.s32.totalorder %s29, 0
      %p153 = por %p151, %p152
      %p154 = scmp.ne.s32.totalorder %s143, %s146
      %p155 = scmp.eq.s32.totalorder %s34, 1
      %p156 = por %p154, %p155
      %p157 = scmp.ne.s32.totalorder %s146, %s147
      %p158 = scmp.eq.s32.totalorder %s34, 0
      %p159 = por %p157, %p158
      %p160 = scmp.ne.s32.totalorder %s146, %s147
      %p161 = scmp.eq.s32.totalorder %s35, 1
      %p162 = por %p160, %p161
      %p164 = scmp.ne.s32.totalorder %s147, %s163
      %p165 = scmp.eq.s32.totalorder %s35, 0
      %p166 = por %p164, %p165
      %s167 = ssub.s32 %s29, %s36
      %p168 = scmp.eq.s32.totalorder %s167, 0
      %s170 = sadd.s32 %s169, 1
      %s171 = scalar_select %p168, %s169, %s170
      %p174 = pneg %p168
      %p175 = scmp.eq.s32.totalorder %s29, 1
      %p176 = por %p174, %p175
      %p177 = scmp.ne.s32.totalorder %s169, %s172
      %p178 = scmp.eq.s32.totalorder %s29, 0
      %p179 = por %p177, %p178
      %p180 = scmp.ne.s32.totalorder %s169, %s172
      %p181 = scmp.eq.s32.totalorder %s34, 1
      %p182 = por %p180, %p181
      %p183 = scmp.ne.s32.totalorder %s172, %s173
      %p184 = scmp.eq.s32.totalorder %s34, 0
      %p185 = por %p183, %p184
      %p186 = scmp.ne.s32.totalorder %s172, %s173
      %p187 = scmp.eq.s32.totalorder %s35, 1
      %p188 = por %p186, %p187
      %p190 = scmp.ne.s32.totalorder %s173, %s189
      %p191 = scmp.eq.s32.totalorder %s35, 0
      %p192 = por %p190, %p191
      %s194 = sadd.s32 %s193, 1
      %p197 = scmp.eq.s32.totalorder %s29, 1
      %p198 = scmp.ne.s32.totalorder %s193, %s195
      %p199 = scmp.eq.s32.totalorder %s29, 0
      %p200 = por %p198, %p199
      %p201 = scmp.ne.s32.totalorder %s193, %s195
      %p202 = scmp.eq.s32.totalorder %s34, 1
      %p203 = por %p201, %p202
      %p204 = scmp.ne.s32.totalorder %s195, %s196
      %p205 = scmp.eq.s32.totalorder %s34, 0
      %p206 = por %p204, %p205
      %p207 = scmp.ne.s32.totalorder %s195, %s196
      %p208 = scmp.eq.s32.totalorder %s35, 1
      %p209 = por %p207, %p208
      %p211 = scmp.ne.s32.totalorder %s196, %s210
      %p212 = scmp.eq.s32.totalorder %s35, 0
      %p213 = por %p211, %p212
      %s215 = sadd.s32 %s214, 1
      %p218 = scmp.eq.s32.totalorder %s29, 1
      %p219 = scmp.ne.s32.totalorder %s214, %s216
      %p220 = scmp.eq.s32.totalorder %s29, 0
      %p221 = por %p219, %p220
      %p222 = scmp.ne.s32.totalorder %s214, %s216
      %p223 = scmp.eq.s32.totalorder %s34, 1
      %p224 = por %p222, %p223
      %p225 = scmp.ne.s32.totalorder %s216, %s217
      %p226 = scmp.eq.s32.totalorder %s34, 0
      %p227 = por %p225, %p226
      %p228 = scmp.ne.s32.totalorder %s216, %s217
      %p229 = scmp.eq.s32.totalorder %s35, 1
      %p230 = por %p228, %p229
      %p232 = scmp.ne.s32.totalorder %s217, %s231
      %p233 = scmp.eq.s32.totalorder %s35, 0
      %p234 = por %p232, %p233
      %s236 = sadd.s32 %s235, 1
      %p239 = scmp.eq.s32.totalorder %s29, 1
      %p240 = scmp.ne.s32.totalorder %s235, %s237
      %p241 = scmp.eq.s32.totalorder %s29, 0
      %p242 = por %p240, %p241
      %p243 = scmp.ne.s32.totalorder %s235, %s237
      %p244 = scmp.eq.s32.totalorder %s34, 1
      %p245 = por %p243, %p244
      %p246 = scmp.ne.s32.totalorder %s237, %s238
      %p247 = scmp.eq.s32.totalorder %s34, 0
      %p248 = por %p246, %p247
      %p249 = scmp.ne.s32.totalorder %s237, %s238
      %p250 = scmp.eq.s32.totalorder %s35, 1
      %p251 = por %p249, %p250
      %p253 = scmp.ne.s32.totalorder %s238, %s252
      %p254 = scmp.eq.s32.totalorder %s35, 0
      %p255 = por %p253, %p254
      %s257 = sadd.s32 %s256, 1
      %p260 = scmp.eq.s32.totalorder %s29, 1
      %p261 = scmp.ne.s32.totalorder %s256, %s258
      %p262 = scmp.eq.s32.totalorder %s29, 0
      %p263 = por %p261, %p262
      %p264 = scmp.ne.s32.totalorder %s256, %s258
      %p265 = scmp.eq.s32.totalorder %s34, 1
      %p266 = por %p264, %p265
      %p267 = scmp.ne.s32.totalorder %s258, %s259
      %p268 = scmp.eq.s32.totalorder %s34, 0
      %p269 = por %p267, %p268
      %p270 = scmp.ne.s32.totalorder %s258, %s259
      %p271 = scmp.eq.s32.totalorder %s35, 1
      %p272 = por %p270, %p271
      %p274 = scmp.ne.s32.totalorder %s259, %s273
      %p275 = scmp.eq.s32.totalorder %s35, 0
      %p276 = por %p274, %p275
      %s278 = sadd.s32 %s277, 1
      %p281 = scmp.eq.s32.totalorder %s29, 1
      %p282 = scmp.ne.s32.totalorder %s277, %s279
      %p283 = scmp.eq.s32.totalorder %s29, 0
      %p284 = por %p282, %p283
      %p285 = scmp.ne.s32.totalorder %s277, %s279
      %p286 = scmp.eq.s32.totalorder %s34, 1
      %p287 = por %p285, %p286
      %p288 = scmp.ne.s32.totalorder %s279, %s280
      %p289 = scmp.eq.s32.totalorder %s34, 0
      %p290 = por %p288, %p289
      %p291 = scmp.ne.s32.totalorder %s279, %s280
      %p292 = scmp.eq.s32.totalorder %s35, 1
      %p293 = por %p291, %p292
      %p295 = scmp.ne.s32.totalorder %s280, %s294
      %p296 = scmp.eq.s32.totalorder %s35, 0
      %p297 = por %p295, %p296
      %s299 = sadd.s32 %s298, 1
      %p302 = scmp.eq.s32.totalorder %s29, 1
      %p303 = scmp.ne.s32.totalorder %s298, %s300
      %p304 = scmp.eq.s32.totalorder %s29, 0
      %p305 = por %p303, %p304
      %p306 = scmp.ne.s32.totalorder %s298, %s300
      %p307 = scmp.eq.s32.totalorder %s34, 1
      %p308 = por %p306, %p307
      %p309 = scmp.ne.s32.totalorder %s300, %s301
      %p310 = scmp.eq.s32.totalorder %s34, 0
      %p311 = por %p309, %p310
      %p312 = scmp.ne.s32.totalorder %s300, %s301
      %p313 = scmp.eq.s32.totalorder %s35, 1
      %p314 = por %p312, %p313
      %p316 = scmp.ne.s32.totalorder %s301, %s315
      %p317 = scmp.eq.s32.totalorder %s35, 0
      %p318 = por %p316, %p317
      %s319 = ssub.s32 %s29, %s36
      %p320 = scmp.eq.s32.totalorder %s319, 0
      %s322 = sadd.s32 %s321, 1
      %s323 = scalar_select %p320, %s321, %s322
      %p326 = pneg %p320
      %p327 = scmp.eq.s32.totalorder %s29, 1
      %p328 = por %p326, %p327
      %p329 = scmp.ne.s32.totalorder %s321, %s324
      %p330 = scmp.eq.s32.totalorder %s29, 0
      %p331 = por %p329, %p330
      %p332 = scmp.ne.s32.totalorder %s321, %s324
      %p333 = scmp.eq.s32.totalorder %s34, 1
      %p334 = por %p332, %p333
      %p335 = scmp.ne.s32.totalorder %s324, %s325
      %p336 = scmp.eq.s32.totalorder %s34, 0
      %p337 = por %p335, %p336
      %p338 = scmp.ne.s32.totalorder %s324, %s325
      %p339 = scmp.eq.s32.totalorder %s35, 1
      %p340 = por %p338, %p339
      %p342 = scmp.ne.s32.totalorder %s325, %s341
      %p343 = scmp.eq.s32.totalorder %s35, 0
      %p344 = por %p342, %p343
      %p345 = scmp.le.s32.totalorder 1, %s29
      %p346 = scmp.lt.s32.totalorder %s29, 3
      %p347 = pnand %p345, %p346
      %p348 = pneg %p347
      // Predicated region
      $region9: #{tpu_custom_call.1} parent=5 // pred_check
        _
      $region10: #{tpu_custom_call.1} parent=5 // pred_check_branch
        %350 = sbr.rel (%p347) target = $region12
      $region11: #{tpu_custom_call.1} parent=5 // pred_region
        %s351 = ssub.s32 %s29, 1
        // Predicated region
        $region13: #{tpu_custom_call.1} parent=11 // pred_check
          %p352 = pneg %p206
        $region14: #{tpu_custom_call.1} parent=11 // pred_check_branch
          %354 = sbr.rel (%p352) target = $region16
        $region15: #{tpu_custom_call.1} parent=11 // pred_region
          %356 = vsyncadd [#allocation9], 0
          %s357 = sshll.u32 %s6, 4
          %s358 = int_to_ptr.hbm [resolvable:$true] %s357
          %s359 = sshll.u32 [#allocation8], 4
          %s360 = int_to_ptr.vmem [resolvable:$true] %s359
          %365 = dma.hbm_to_vmem [thread:$0]  %s358, 256, %s360, [#allocation9], 128, 128, 8
        $region16: #{tpu_custom_call.1} parent=11 // pred_fallthru
          _
        // Predicated region
        $region17: #{tpu_custom_call.1} parent=11 // pred_check
          %p366 = pneg %p227
        $region18: #{tpu_custom_call.1} parent=11 // pred_check_branch
          %368 = sbr.rel (%p366) target = $region20
        $region19: #{tpu_custom_call.1} parent=11 // pred_region
          %370 = vsyncadd [#allocation9], 0
          %s371 = sshll.u32 %s7, 4
          %s372 = int_to_ptr.hbm [resolvable:$true] %s371
          %s373 = sshll.u32 [#allocation10], 4
          %s374 = int_to_ptr.vmem [resolvable:$true] %s373
          %379 = dma.hbm_to_vmem [thread:$0]  %s372, 512, %s374, [#allocation9], 128, 128, 8
        $region20: #{tpu_custom_call.1} parent=11 // pred_fallthru
          _
        // Predicated region
        $region21: #{tpu_custom_call.1} parent=11 // pred_check
          %p380 = pneg %p248
        $region22: #{tpu_custom_call.1} parent=11 // pred_check_branch
          %382 = sbr.rel (%p380) target = $region24
        $region23: #{tpu_custom_call.1} parent=11 // pred_region
          %384 = vsyncadd [#allocation12], 0
          %s385 = sshll.u32 %s8, 4
          %s386 = int_to_ptr.hbm [resolvable:$true] %s385
          %s387 = sshll.u32 [#allocation11], 4
          %s388 = int_to_ptr.vmem [resolvable:$true] %s387
          %393 = dma.hbm_to_vmem [thread:$0]  %s386, 1024, %s388, [#allocation12], 128, 128, 8
        $region24: #{tpu_custom_call.1} parent=11 // pred_fallthru
          _
        // Predicated region
        $region25: #{tpu_custom_call.1} parent=11 // pred_check
          %p394 = pneg %p269
        $region26: #{tpu_custom_call.1} parent=11 // pred_check_branch
          %396 = sbr.rel (%p394) target = $region28
        $region27: #{tpu_custom_call.1} parent=11 // pred_region
          _
        $region28: #{tpu_custom_call.1} parent=11 // pred_fallthru
          _
        // Predicated region
        $region29: #{tpu_custom_call.1} parent=11 // pred_check
          %p397 = pneg %p290
        $region30: #{tpu_custom_call.1} parent=11 // pred_check_branch
          %399 = sbr.rel (%p397) target = $region32
        $region31: #{tpu_custom_call.1} parent=11 // pred_region
          _
        $region32: #{tpu_custom_call.1} parent=11 // pred_fallthru
          _
        // Predicated region
        $region33: #{tpu_custom_call.1} parent=11 // pred_check
          %p400 = pneg %p311
        $region34: #{tpu_custom_call.1} parent=11 // pred_check_branch
          %402 = sbr.rel (%p400) target = $region36
        $region35: #{tpu_custom_call.1} parent=11 // pred_region
          _
        $region36: #{tpu_custom_call.1} parent=11 // pred_fallthru
          _
      $region12: #{tpu_custom_call.1} parent=5 // pred_fallthru
        _
      %p403 = scmp.lt.s32.totalorder %s29, 2
      // Predicated region
      $region37: #{tpu_custom_call.1} parent=5 // pred_check
        %p404 = pneg %p403
      $region38: #{tpu_custom_call.1} parent=5 // pred_check_branch
        %406 = sbr.rel (%p404) target = $region40
      $region39: #{tpu_custom_call.1} parent=5 // pred_region
        // Predicated region
        $region41: #{tpu_custom_call.1} parent=39 // pred_check
          %p407 = pneg %p49
        $region42: #{tpu_custom_call.1} parent=39 // pred_check_branch
          %409 = sbr.rel (%p407) target = $region44
        $region43: #{tpu_custom_call.1} parent=39 // pred_region
          %p410 = scmp.lt.s32.totalorder %s29, 1
          %s411 = scalar_select %p410, %s29, 1
          %s412 = smul.addr %s411, 8
          %s413 = smul.addr %s412, 8
          %s414 = scalar_lea.vmem %s0, %s413
        $region44: #{tpu_custom_call.1} parent=39 // pred_fallthru
          _
        // Predicated region
        $region45: #{tpu_custom_call.1} parent=39 // pred_check
          %p415 = pneg %p75
        $region46: #{tpu_custom_call.1} parent=39 // pred_check_branch
          %417 = sbr.rel (%p415) target = $region48
        $region47: #{tpu_custom_call.1} parent=39 // pred_region
          %p418 = scmp.lt.s32.totalorder %s29, 1
          %s419 = scalar_select %p418, %s29, 1
          %s420 = smul.addr %s419, 16
          %s421 = smul.addr %s420, 8
          %s422 = scalar_lea.vmem %s1, %s421
        $region48: #{tpu_custom_call.1} parent=39 // pred_fallthru
          _
        // Predicated region
        $region49: #{tpu_custom_call.1} parent=39 // pred_check
          %p423 = pneg %p101
        $region50: #{tpu_custom_call.1} parent=39 // pred_check_branch
          %425 = sbr.rel (%p423) target = $region52
        $region51: #{tpu_custom_call.1} parent=39 // pred_region
          %p426 = scmp.lt.s32.totalorder %s29, 1
          %s427 = scalar_select %p426, %s29, 1
          %s428 = smul.addr %s427, 16
          %s429 = smul.addr %s428, 8
          %s430 = scalar_lea.vmem %s2, %s429
        $region52: #{tpu_custom_call.1} parent=39 // pred_fallthru
          _
        // Predicated region
        $region53: #{tpu_custom_call.1} parent=39 // pred_check
          %p431 = pneg %p127
        $region54: #{tpu_custom_call.1} parent=39 // pred_check_branch
          %433 = sbr.rel (%p431) target = $region56
        $region55: #{tpu_custom_call.1} parent=39 // pred_region
          %s434 = sand.u32 %s117, 1
          %s435 = scalar_lea.sflag [#allocation3], %s434
          %s436 = sand.u32 %s117, 1
          %s437 = smul.addr %s436, 64
          %s438 = scalar_lea.vmem [#allocation2], %s437
          %440 = vsyncadd %s435, 0
          %s441 = smul.addr %s29, 8
          %s442 = smul.addr %s441, 8
          %s443 = scalar_lea.hbm %s3, %s442
          %s444 = sshll.u32 %s443, 4
          %s445 = int_to_ptr.hbm [resolvable:$true] %s444
          %s446 = sshll.u32 %s438, 4
          %s447 = int_to_ptr.vmem [resolvable:$true] %s446
          %452 = dma.hbm_to_vmem [thread:$0]  %s445, 1024, %s447, %s435, 128, 128, 8
        $region56: #{tpu_custom_call.1} parent=39 // pred_fallthru
          _
        // Predicated region
        $region57: #{tpu_custom_call.1} parent=39 // pred_check
          %p453 = pneg %p153
        $region58: #{tpu_custom_call.1} parent=39 // pred_check_branch
          %455 = sbr.rel (%p453) target = $region60
        $region59: #{tpu_custom_call.1} parent=39 // pred_region
          %s456 = sand.u32 %s29, 1
          %s457 = scalar_lea.sflag [#allocation6], %s456
          %s458 = sand.u32 %s143, 1
          %s459 = smul.addr %s458, 2048
          %s460 = scalar_lea.vmem [#allocation5], %s459
          %462 = vsyncadd %s457, 0
          %s463 = smul.addr %s29, 256
          %s464 = smul.addr %s463, 8
          %s465 = scalar_lea.hbm %s4, %s464
          %s466 = sshll.u32 %s465, 4
          %s467 = int_to_ptr.hbm [resolvable:$true] %s466
          %s468 = sshll.u32 %s460, 4
          %s469 = int_to_ptr.vmem [resolvable:$true] %s468
          %474 = dma.hbm_to_vmem [thread:$0]  %s467, 32768, %s469, %s457, 128, 128, 8
        $region60: #{tpu_custom_call.1} parent=39 // pred_fallthru
          _
        // Predicated region
        $region61: #{tpu_custom_call.1} parent=39 // pred_check
          %p475 = pneg %p179
        $region62: #{tpu_custom_call.1} parent=39 // pred_check_branch
          %477 = sbr.rel (%p475) target = $region64
        $region63: #{tpu_custom_call.1} parent=39 // pred_region
          %s478 = sand.u32 %s29, 1
          %s479 = scalar_lea.sflag [#allocation6], %s478
          %s480 = sand.u32 %s169, 1
          %s481 = smul.addr %s480, 8
          %s482 = scalar_lea.vmem [#allocation7], %s481
          %484 = vsyncadd %s479, 0
          %s485 = smul.addr %s29, 8
          %s486 = scalar_lea.hbm %s5, %s485
          %s488 = sshll.u32 %s486, 4
          %s489 = int_to_ptr.hbm [resolvable:$true] %s488
          %s490 = sshll.u32 %s482, 4
          %s491 = int_to_ptr.vmem [resolvable:$true] %s490
          %493 = dma.hbm_to_vmem [thread:$0]  %s489, 128, %s491, %s479
        $region64: #{tpu_custom_call.1} parent=39 // pred_fallthru
          _
      $region40: #{tpu_custom_call.1} parent=5 // pred_fallthru
        _
      %p494 = scmp.le.s32.totalorder 1, %s29
      %p495 = scmp.lt.s32.totalorder %s29, 3
      %p496 = pnand %p494, %p495
      %p497 = pneg %p496
      // Predicated region
      $region65: #{tpu_custom_call.1} parent=5 // pred_check
        _
      $region66: #{tpu_custom_call.1} parent=5 // pred_check_branch
        %499 = sbr.rel (%p496) target = $region68
      $region67: #{tpu_custom_call.1} parent=5 // pred_region
        %s500 = ssub.s32 %s29, 1
        %s501 = sand.u32 %s120, 1
        %s502 = scalar_lea.sflag [#allocation3], %s501
        %s503 = sand.u32 %s120, 1
        %s504 = smul.addr %s503, 64
        %s505 = scalar_lea.vmem [#allocation2], %s504
        // Predicated region
        $region69: #{tpu_custom_call.1} parent=67 // pred_check
          %p506 = pneg %p133
        $region70: #{tpu_custom_call.1} parent=67 // pred_check_branch
          %508 = sbr.rel (%p506) target = $region72
        $region71: #{tpu_custom_call.1} parent=67 // pred_region
          %510 = dma.done %s502, 1024
        $region72: #{tpu_custom_call.1} parent=67 // pred_fallthru
          _
        %s511 = sand.u32 %s34, 1
        %s512 = scalar_lea.sflag [#allocation6], %s511
        %s513 = sand.u32 %s146, 1
        %s514 = smul.addr %s513, 2048
        %s515 = scalar_lea.vmem [#allocation5], %s514
        // Predicated region
        $region73: #{tpu_custom_call.1} parent=67 // pred_check
          %p516 = pneg %p159
        $region74: #{tpu_custom_call.1} parent=67 // pred_check_branch
          %518 = sbr.rel (%p516) target = $region76
        $region75: #{tpu_custom_call.1} parent=67 // pred_region
          %520 = dma.done %s512, 32768
        $region76: #{tpu_custom_call.1} parent=67 // pred_fallthru
          _
        %s521 = sand.u32 %s34, 1
        %s522 = scalar_lea.sflag [#allocation6], %s521
        %s523 = sand.u32 %s172, 1
        %s524 = smul.addr %s523, 8
        %s525 = scalar_lea.vmem [#allocation7], %s524
        // Predicated region
        $region77: #{tpu_custom_call.1} parent=67 // pred_check
          %p526 = pneg %p185
        $region78: #{tpu_custom_call.1} parent=67 // pred_check_branch
          %528 = sbr.rel (%p526) target = $region80
        $region79: #{tpu_custom_call.1} parent=67 // pred_region
          %530 = dma.done %s522, 128
        $region80: #{tpu_custom_call.1} parent=67 // pred_fallthru
          _
        // Predicated region
        $region81: #{tpu_custom_call.1} parent=67 // pred_check
          %p531 = pneg %p206
        $region82: #{tpu_custom_call.1} parent=67 // pred_check_branch
          %533 = sbr.rel (%p531) target = $region84
        $region83: #{tpu_custom_call.1} parent=67 // pred_region
          %535 = dma.done [#allocation9], 256
        $region84: #{tpu_custom_call.1} parent=67 // pred_fallthru
          _
        // Predicated region
        $region85: #{tpu_custom_call.1} parent=67 // pred_check
          %p536 = pneg %p227
        $region86: #{tpu_custom_call.1} parent=67 // pred_check_branch
          %538 = sbr.rel (%p536) target = $region88
        $region87: #{tpu_custom_call.1} parent=67 // pred_region
          %540 = dma.done [#allocation9], 512
        $region88: #{tpu_custom_call.1} parent=67 // pred_fallthru
          _
        // Predicated region
        $region89: #{tpu_custom_call.1} parent=67 // pred_check
          %p541 = pneg %p248
        $region90: #{tpu_custom_call.1} parent=67 // pred_check_branch
          %543 = sbr.rel (%p541) target = $region92
        $region91: #{tpu_custom_call.1} parent=67 // pred_region
          %545 = dma.done [#allocation12], 1024
        $region92: #{tpu_custom_call.1} parent=67 // pred_fallthru
          _
        %p546 = scmp.lt.s32.totalorder %s34, 1
        %s547 = scalar_select %p546, %s34, 1
        %s548 = smul.addr %s547, 8
        %s549 = smul.addr %s548, 8
        %s550 = scalar_lea.vmem %s0, %s549
        %p551 = pneg %p55
        %p552 = pneg %p52
        %p553 = scmp.lt.s32.totalorder %s34, 1
        %s554 = scalar_select %p553, %s34, 1
        %s555 = smul.addr %s554, 16
        %s556 = smul.addr %s555, 8
        %s557 = scalar_lea.vmem %s1, %s556
        %p558 = pneg %p81
        %p559 = pneg %p78
        %p560 = scmp.lt.s32.totalorder %s34, 1
        %s561 = scalar_select %p560, %s34, 1
        %s562 = smul.addr %s561, 16
        %s563 = smul.addr %s562, 8
        %s564 = scalar_lea.vmem %s2, %s563
        %p565 = pneg %p107
        %p566 = pneg %p104
        %s567 = sand.u32 %s120, 1
        %s568 = scalar_lea.sflag [#allocation3], %s567
        %s569 = sand.u32 %s120, 1
        %s570 = smul.addr %s569, 64
        %s571 = scalar_lea.vmem [#allocation2], %s570
        %p572 = pneg %p133
        %p573 = pneg %p130
        %s574 = sand.u32 %s34, 1
        %s575 = scalar_lea.sflag [#allocation6], %s574
        %s576 = sand.u32 %s146, 1
        %s577 = smul.addr %s576, 2048
        %s578 = scalar_lea.vmem [#allocation5], %s577
        %p579 = pneg %p159
        %p580 = pneg %p156
        %s581 = sand.u32 %s34, 1
        %s582 = scalar_lea.sflag [#allocation6], %s581
        %s583 = sand.u32 %s172, 1
        %s584 = smul.addr %s583, 8
        %s585 = scalar_lea.vmem [#allocation7], %s584
        %p586 = pneg %p185
        %p587 = pneg %p182
        %p588 = pneg %p206
        %p589 = pneg %p203
        %p590 = pneg %p227
        %p591 = pneg %p224
        %p592 = pneg %p248
        %p593 = pneg %p245
        %p594 = pneg %p269
        %p595 = pneg %p266
        %p596 = pneg %p290
        %p597 = pneg %p287
        %p598 = pneg %p311
        %p599 = pneg %p308
        %p600 = pneg %p337
        %p601 = pneg %p334
        %s602 = sand.u32 %s324, 1
        %s603 = scalar_lea.sflag [#allocation4], %s602
        %s604 = sand.u32 %s324, 1
        %s605 = smul.addr %s604, 8
        %s606 = scalar_lea.vmem [#allocation13], %s605
        %p607 = scmp.lt.s32.totalorder %s34, 1
        %s608 = scalar_select %p607, %s34, 1
        %s609 = smul.addr %s608, 8
        %s610 = smul.addr %s609, 8
        %s611 = scalar_lea.vmem %s0, %s610
        %p612 = scmp.lt.s32.totalorder %s34, 1
        %s613 = scalar_select %p612, %s34, 1
        %s614 = smul.addr %s613, 16
        %s615 = smul.addr %s614, 8
        %s616 = scalar_lea.vmem %s1, %s615
        %p617 = scmp.lt.s32.totalorder %s34, 1
        %s618 = scalar_select %p617, %s34, 1
        %s619 = smul.addr %s618, 16
        %s620 = smul.addr %s619, 8
        %s621 = scalar_lea.vmem %s2, %s620
        %v622 = vld [vmem:[%s505] sm:$0xff]
        %v623 = vld [vmem:[%s505 + $0x8] sm:$0xff]
        %v624 = vld [vmem:[%s505 + $0x10] sm:$0xff]
        %v625 = vld [vmem:[%s505 + $0x18] sm:$0xff]
        %v626 = vld [vmem:[%s505 + $0x20] sm:$0xff]
        %v627 = vld [vmem:[%s505 + $0x28] sm:$0xff]
        %v628 = vld [vmem:[%s505 + $0x30] sm:$0xff]
        %v629 = vld [vmem:[%s505 + $0x38] sm:$0xff]
        %v630 = vld [vmem:[%s621] sm:$0xff]
        %v631 = vld [vmem:[%s621 + $0x8] sm:$0xff]
        %v632 = vld [vmem:[%s621 + $0x10] sm:$0xff]
        %v633 = vld [vmem:[%s621 + $0x18] sm:$0xff]
        %v634 = vld [vmem:[%s621 + $0x20] sm:$0xff]
        %v635 = vld [vmem:[%s621 + $0x28] sm:$0xff]
        %v636 = vld [vmem:[%s621 + $0x30] sm:$0xff]
        %v637 = vld [vmem:[%s621 + $0x38] sm:$0xff]
        %v638 = vld [vmem:[%s621 + $0x40] sm:$0xff]
        %v639 = vld [vmem:[%s621 + $0x48] sm:$0xff]
        %v640 = vld [vmem:[%s621 + $0x50] sm:$0xff]
        %v641 = vld [vmem:[%s621 + $0x58] sm:$0xff]
        %v642 = vld [vmem:[%s621 + $0x60] sm:$0xff]
        %v643 = vld [vmem:[%s621 + $0x68] sm:$0xff]
        %v644 = vld [vmem:[%s621 + $0x70] sm:$0xff]
        %v645 = vld [vmem:[%s621 + $0x78] sm:$0xff]
        %646 = vadd.xlane.f32.xlu0 %v622
        %v647 = vpop.xlane.xlu0 %646
        %648 = vadd.xlane.f32.xlu0 %v623
        %v649 = vpop.xlane.xlu0 %648
        %650 = vadd.xlane.f32.xlu0 %v624
        %v651 = vpop.xlane.xlu0 %650
        %652 = vadd.xlane.f32.xlu0 %v625
        %v653 = vpop.xlane.xlu0 %652
        %654 = vadd.xlane.f32.xlu0 %v626
        %v655 = vpop.xlane.xlu0 %654
        %656 = vadd.xlane.f32.xlu0 %v627
        %v657 = vpop.xlane.xlu0 %656
        %658 = vadd.xlane.f32.xlu0 %v628
        %v659 = vpop.xlane.xlu0 %658
        %660 = vadd.xlane.f32.xlu0 %v629
        %v661 = vpop.xlane.xlu0 %660
        %vm662 = vcmp.gt.f32.partialorder %v647, 0.5
        %vm663 = vcmp.gt.f32.partialorder %v649, 0.5
        %vm664 = vcmp.gt.f32.partialorder %v651, 0.5
        %vm665 = vcmp.gt.f32.partialorder %v653, 0.5
        %vm666 = vcmp.gt.f32.partialorder %v655, 0.5
        %vm667 = vcmp.gt.f32.partialorder %v657, 0.5
        %vm668 = vcmp.gt.f32.partialorder %v659, 0.5
        %vm669 = vcmp.gt.f32.partialorder %v661, 0.5
        %v670 = vld [vmem:[%s525] sm:$0xff]
        %v671 = vld [vmem:[#allocation11] sm:$0xff]
        %v672 = vld [vmem:[#allocation11 + $0x8] sm:$0xff]
        %v673 = vld [vmem:[#allocation11 + $0x10] sm:$0xff]
        %v674 = vld [vmem:[#allocation11 + $0x18] sm:$0xff]
        %v675 = vld [vmem:[#allocation11 + $0x20] sm:$0xff]
        %v676 = vld [vmem:[#allocation11 + $0x28] sm:$0xff]
        %v677 = vld [vmem:[#allocation11 + $0x30] sm:$0xff]
        %v678 = vld [vmem:[#allocation11 + $0x38] sm:$0xff]
        %v679 = vld [vmem:[%s9] sm:$0xff]
        %v680 = vld [vmem:[%s9 + $0x8] sm:$0xff]
        %v681 = vld [vmem:[%s9 + $0x10] sm:$0xff]
        %v682 = vld [vmem:[%s9 + $0x18] sm:$0xff]
        %v683 = vld [vmem:[%s9 + $0x20] sm:$0xff]
        %v684 = vld [vmem:[%s9 + $0x28] sm:$0xff]
        %v685 = vld [vmem:[%s9 + $0x30] sm:$0xff]
        %v686 = vld [vmem:[%s9 + $0x38] sm:$0xff]
        %v687 = vld [vmem:[%s9 + $0x40] sm:$0xff]
        %v688 = vld [vmem:[%s9 + $0x48] sm:$0xff]
        %v689 = vld [vmem:[%s9 + $0x50] sm:$0xff]
        %v690 = vld [vmem:[%s9 + $0x58] sm:$0xff]
        %v691 = vlaneseq
        %v692 = vshrl.u32 %v691, 7
        %v693 = vadd.s32 %v692, 8
        %v694 = vadd.s32 %v692, 16
        %v695 = vadd.s32 %v692, 24
        %v696 = vadd.s32 %v692, 32
        %v697 = vadd.s32 %v692, 40
        %v698 = vadd.s32 %v692, 48
        %v699 = vadd.s32 %v692, 56
        %v700 = vadd.s32 %v692, 64
        %v701 = vadd.s32 %v692, 72
        %v702 = vadd.s32 %v692, 80
        %v703 = vadd.s32 %v692, 88
        %v704 = vadd.s32 %v692, 96
        %v705 = vadd.s32 %v692, 104
        %v706 = vadd.s32 %v692, 112
        %v707 = vadd.s32 %v692, 120
        %vm708 = vcmp.lt.s32.totalorder %v692, 0
        %v709 = vsub.s32 0, %v692
        %v710 = vsel %vm708, %v709, %v692
        %v711 = vshrl.u32 %v710, 1
        %v712 = vand.u32 %v710, 1
        %v713 = vsub.s32 0, %v712
        %v714 = vsel %vm708, %v713, %v712
        %vm715 = vcmp.lt.s32.totalorder %v693, 0
        %v716 = vsub.s32 0, %v693
        %v717 = vsel %vm715, %v716, %v693
        %v718 = vshrl.u32 %v717, 1
        %v719 = vand.u32 %v717, 1
        %v720 = vsub.s32 0, %v719
        %v721 = vsel %vm715, %v720, %v719
        %vm722 = vcmp.lt.s32.totalorder %v694, 0
        %v723 = vsub.s32 0, %v694
        %v724 = vsel %vm722, %v723, %v694
        %v725 = vshrl.u32 %v724, 1
        %v726 = vand.u32 %v724, 1
        %v727 = vsub.s32 0, %v726
        %v728 = vsel %vm722, %v727, %v726
        %vm729 = vcmp.lt.s32.totalorder %v695, 0
        %v730 = vsub.s32 0, %v695
        %v731 = vsel %vm729, %v730, %v695
        %v732 = vshrl.u32 %v731, 1
        %v733 = vand.u32 %v731, 1
        %v734 = vsub.s32 0, %v733
        %v735 = vsel %vm729, %v734, %v733
        %vm736 = vcmp.lt.s32.totalorder %v696, 0
        %v737 = vsub.s32 0, %v696
        %v738 = vsel %vm736, %v737, %v696
        %v739 = vshrl.u32 %v738, 1
        %v740 = vand.u32 %v738, 1
        %v741 = vsub.s32 0, %v740
        %v742 = vsel %vm736, %v741, %v740
        %vm743 = vcmp.lt.s32.totalorder %v697, 0
        %v744 = vsub.s32 0, %v697
        %v745 = vsel %vm743, %v744, %v697
        %v746 = vshrl.u32 %v745, 1
        %v747 = vand.u32 %v745, 1
        %v748 = vsub.s32 0, %v747
        %v749 = vsel %vm743, %v748, %v747
        %vm750 = vcmp.lt.s32.totalorder %v698, 0
        %v751 = vsub.s32 0, %v698
        %v752 = vsel %vm750, %v751, %v698
        %v753 = vshrl.u32 %v752, 1
        %v754 = vand.u32 %v752, 1
        %v755 = vsub.s32 0, %v754
        %v756 = vsel %vm750, %v755, %v754
        %vm757 = vcmp.lt.s32.totalorder %v699, 0
        %v758 = vsub.s32 0, %v699
        %v759 = vsel %vm757, %v758, %v699
        %v760 = vshrl.u32 %v759, 1
        %v761 = vand.u32 %v759, 1
        %v762 = vsub.s32 0, %v761
        %v763 = vsel %vm757, %v762, %v761
        %vm764 = vcmp.lt.s32.totalorder %v700, 0
        %v765 = vsub.s32 0, %v700
        %v766 = vsel %vm764, %v765, %v700
        %v767 = vshrl.u32 %v766, 1
        %v768 = vand.u32 %v766, 1
        %v769 = vsub.s32 0, %v768
        %v770 = vsel %vm764, %v769, %v768
        %vm771 = vcmp.lt.s32.totalorder %v701, 0
        %v772 = vsub.s32 0, %v701
        %v773 = vsel %vm771, %v772, %v701
        %v774 = vshrl.u32 %v773, 1
        %v775 = vand.u32 %v773, 1
        %v776 = vsub.s32 0, %v775
        %v777 = vsel %vm771, %v776, %v775
        %vm778 = vcmp.lt.s32.totalorder %v702, 0
        %v779 = vsub.s32 0, %v702
        %v780 = vsel %vm778, %v779, %v702
        %v781 = vshrl.u32 %v780, 1
        %v782 = vand.u32 %v780, 1
        %v783 = vsub.s32 0, %v782
        %v784 = vsel %vm778, %v783, %v782
        %vm785 = vcmp.lt.s32.totalorder %v703, 0
        %v786 = vsub.s32 0, %v703
        %v787 = vsel %vm785, %v786, %v703
        %v788 = vshrl.u32 %v787, 1
        %v789 = vand.u32 %v787, 1
        %v790 = vsub.s32 0, %v789
        %v791 = vsel %vm785, %v790, %v789
        %vm792 = vcmp.lt.s32.totalorder %v704, 0
        %v793 = vsub.s32 0, %v704
        %v794 = vsel %vm792, %v793, %v704
        %v795 = vshrl.u32 %v794, 1
        %v796 = vand.u32 %v794, 1
        %v797 = vsub.s32 0, %v796
        %v798 = vsel %vm792, %v797, %v796
        %vm799 = vcmp.lt.s32.totalorder %v705, 0
        %v800 = vsub.s32 0, %v705
        %v801 = vsel %vm799, %v800, %v705
        %v802 = vshrl.u32 %v801, 1
        %v803 = vand.u32 %v801, 1
        %v804 = vsub.s32 0, %v803
        %v805 = vsel %vm799, %v804, %v803
        %vm806 = vcmp.lt.s32.totalorder %v706, 0
        %v807 = vsub.s32 0, %v706
        %v808 = vsel %vm806, %v807, %v706
        %v809 = vshrl.u32 %v808, 1
        %v810 = vand.u32 %v808, 1
        %v811 = vsub.s32 0, %v810
        %v812 = vsel %vm806, %v811, %v810
        %vm813 = vcmp.lt.s32.totalorder %v707, 0
        %v814 = vsub.s32 0, %v707
        %v815 = vsel %vm813, %v814, %v707
        %v816 = vshrl.u32 %v815, 1
        %v817 = vand.u32 %v815, 1
        %v818 = vsub.s32 0, %v817
        %v819 = vsel %vm813, %v818, %v817
        %vm820 = vcmp.ne.s32.totalorder %v714, 0
        %vm821 = vcmp.ne.s32.totalorder %v721, 0
        %vm822 = vcmp.ne.s32.totalorder %v728, 0
        %vm823 = vcmp.ne.s32.totalorder %v735, 0
        %vm824 = vcmp.ne.s32.totalorder %v742, 0
        %vm825 = vcmp.ne.s32.totalorder %v749, 0
        %vm826 = vcmp.ne.s32.totalorder %v756, 0
        %vm827 = vcmp.ne.s32.totalorder %v763, 0
        %vm828 = vcmp.ne.s32.totalorder %v770, 0
        %vm829 = vcmp.ne.s32.totalorder %v777, 0
        %vm830 = vcmp.ne.s32.totalorder %v784, 0
        %vm831 = vcmp.ne.s32.totalorder %v791, 0
        %vm832 = vcmp.ne.s32.totalorder %v798, 0
        %vm833 = vcmp.ne.s32.totalorder %v805, 0
        %vm834 = vcmp.ne.s32.totalorder %v812, 0
        %vm835 = vcmp.ne.s32.totalorder %v819, 0
        %vm836 = vcmp.lt.s32.totalorder %v714, 0
        %vm837 = vcmp.lt.s32.totalorder %v721, 0
        %vm838 = vcmp.lt.s32.totalorder %v728, 0
        %vm839 = vcmp.lt.s32.totalorder %v735, 0
        %vm840 = vcmp.lt.s32.totalorder %v742, 0
        %vm841 = vcmp.lt.s32.totalorder %v749, 0
        %vm842 = vcmp.lt.s32.totalorder %v756, 0
        %vm843 = vcmp.lt.s32.totalorder %v763, 0
        %vm844 = vcmp.lt.s32.totalorder %v770, 0
        %vm845 = vcmp.lt.s32.totalorder %v777, 0
        %vm846 = vcmp.lt.s32.totalorder %v784, 0
        %vm847 = vcmp.lt.s32.totalorder %v791, 0
        %vm848 = vcmp.lt.s32.totalorder %v798, 0
        %vm849 = vcmp.lt.s32.totalorder %v805, 0
        %vm850 = vcmp.lt.s32.totalorder %v812, 0
        %vm851 = vcmp.lt.s32.totalorder %v819, 0
        %vm852 = vmand %vm836, %vm820
        %vm853 = vmand %vm837, %vm821
        %vm854 = vmand %vm838, %vm822
        %vm855 = vmand %vm839, %vm823
        %vm856 = vmand %vm840, %vm824
        %vm857 = vmand %vm841, %vm825
        %vm858 = vmand %vm842, %vm826
        %vm859 = vmand %vm843, %vm827
        %vm860 = vmand %vm844, %vm828
        %vm861 = vmand %vm845, %vm829
        %vm862 = vmand %vm846, %vm830
        %vm863 = vmand %vm847, %vm831
        %vm864 = vmand %vm848, %vm832
        %vm865 = vmand %vm849, %vm833
        %vm866 = vmand %vm850, %vm834
        %vm867 = vmand %vm851, %vm835
        %v868 = vadd.s32 %v714, 2
        %v869 = vadd.s32 %v721, 2
        %v870 = vadd.s32 %v728, 2
        %v871 = vadd.s32 %v735, 2
        %v872 = vadd.s32 %v742, 2
        %v873 = vadd.s32 %v749, 2
        %v874 = vadd.s32 %v756, 2
        %v875 = vadd.s32 %v763, 2
        %v876 = vadd.s32 %v770, 2
        %v877 = vadd.s32 %v777, 2
        %v878 = vadd.s32 %v784, 2
        %v879 = vadd.s32 %v791, 2
        %v880 = vadd.s32 %v798, 2
        %v881 = vadd.s32 %v805, 2
        %v882 = vadd.s32 %v812, 2
        %v883 = vadd.s32 %v819, 2
        %v884 = vsel %vm852, %v868, %v714
        %v885 = vsel %vm853, %v869, %v721
        %v886 = vsel %vm854, %v870, %v728
        %v887 = vsel %vm855, %v871, %v735
        %v888 = vsel %vm856, %v872, %v742
        %v889 = vsel %vm857, %v873, %v749
        %v890 = vsel %vm858, %v874, %v756
        %v891 = vsel %vm859, %v875, %v763
        %v892 = vsel %vm860, %v876, %v770
        %v893 = vsel %vm861, %v877, %v777
        %v894 = vsel %vm862, %v878, %v784
        %v895 = vsel %vm863, %v879, %v791
        %v896 = vsel %vm864, %v880, %v798
        %v897 = vsel %vm865, %v881, %v805
        %v898 = vsel %vm866, %v882, %v812
        %v899 = vsel %vm867, %v883, %v819
        %vm900 = vcmp.eq.s32.totalorder %v884, 0
        %vm901 = vcmp.eq.s32.totalorder %v885, 0
        %vm902 = vcmp.eq.s32.totalorder %v886, 0
        %vm903 = vcmp.eq.s32.totalorder %v887, 0
        %vm904 = vcmp.eq.s32.totalorder %v888, 0
        %vm905 = vcmp.eq.s32.totalorder %v889, 0
        %vm906 = vcmp.eq.s32.totalorder %v890, 0
        %vm907 = vcmp.eq.s32.totalorder %v891, 0
        %vm908 = vcmp.eq.s32.totalorder %v892, 0
        %vm909 = vcmp.eq.s32.totalorder %v893, 0
        %vm910 = vcmp.eq.s32.totalorder %v894, 0
        %vm911 = vcmp.eq.s32.totalorder %v895, 0
        %vm912 = vcmp.eq.s32.totalorder %v896, 0
        %vm913 = vcmp.eq.s32.totalorder %v897, 0
        %vm914 = vcmp.eq.s32.totalorder %v898, 0
        %vm915 = vcmp.eq.s32.totalorder %v899, 0
        %v916 = vld [vmem:[%s611] sm:$0xff]
        %v917 = vld [vmem:[%s611 + $0x8] sm:$0xff]
        %v918 = vld [vmem:[%s611 + $0x10] sm:$0xff]
        %v919 = vld [vmem:[%s611 + $0x18] sm:$0xff]
        %v920 = vld [vmem:[%s611 + $0x20] sm:$0xff]
        %v921 = vld [vmem:[%s611 + $0x28] sm:$0xff]
        %v922 = vld [vmem:[%s611 + $0x30] sm:$0xff]
        %v923 = vld [vmem:[%s611 + $0x38] sm:$0xff]
        %v924 = vld [vmem:[#allocation8] sm:$0xff]
        %v925 = vld [vmem:[#allocation8 + $0x8] sm:$0xff]
        %vm926 = vcmask 130048
        %v928 = vsel %vm926, %v916, 0
        %v931 = vsel %vm926, %v917, 0
        %v934 = vsel %vm926, %v918, 0
        %v937 = vsel %vm926, %v919, 0
        %v940 = vsel %vm926, %v920, 0
        %v943 = vsel %vm926, %v921, 0
        %v946 = vsel %vm926, %v922, 0
        %v949 = vsel %vm926, %v923, 0
        %951 = vmatpush.msra.mxu0 0.0
        %952 = vmatpush.msra.mxu0 0.0
        %953 = vmatpush.msra.mxu0 0.0
        %954 = vmatpush.msra.mxu0 0.0
        %955 = vmatpush.msra.mxu0 0.0
        %956 = vmatpush.msra.mxu0 0.0
        %957 = vmatpush.msra.mxu0 0.0
        %958 = vmatpush.msra.mxu0 0.0
        %959 = vmatpush.msra.mxu0 0.0
        %960 = vmatpush.msra.mxu0 0.0
        %961 = vmatpush.msra.mxu0 0.0
        %962 = vmatpush.msra.mxu0 0.0
        %963 = vmatpush.msra.mxu0 0.0
        %964 = vmatpush.msra.mxu0 0.0
        %965 = vmatpush.msra.mxu0 %v925
        %966 = vmatpush.msra.mxu0 %v924
        %967 = vmatmul.f32.gmra.mxu0 %v928
        %v968 = vpop.f32.mrf.mxu0
        %v969 = vadd.f32 0.0, %v968
        %970 = vmatmul.f32.gmra.mxu0 %v931
        %v971 = vpop.f32.mrf.mxu0
        %v972 = vadd.f32 0.0, %v971
        %973 = vmatmul.f32.gmra.mxu0 %v934
        %v974 = vpop.f32.mrf.mxu0
        %v975 = vadd.f32 0.0, %v974
        %976 = vmatmul.f32.gmra.mxu0 %v937
        %v977 = vpop.f32.mrf.mxu0
        %v978 = vadd.f32 0.0, %v977
        %979 = vmatmul.f32.gmra.mxu0 %v940
        %v980 = vpop.f32.mrf.mxu0
        %v981 = vadd.f32 0.0, %v980
        %982 = vmatmul.f32.gmra.mxu0 %v943
        %v983 = vpop.f32.mrf.mxu0
        %v984 = vadd.f32 0.0, %v983
        %985 = vmatmul.f32.gmra.mxu0 %v946
        %v986 = vpop.f32.mrf.mxu0
        %v987 = vadd.f32 0.0, %v986
        %988 = vmatmul.f32.gmra.mxu0 %v949
        %v989 = vpop.f32.mrf.mxu0
        %v990 = vadd.f32 0.0, %v989
        %991 = vdwg.mxu0
        %v992 = vmax.f32 %v969, 0.0
        %v993 = vmax.f32 %v972, 0.0
        %v994 = vmax.f32 %v975, 0.0
        %v995 = vmax.f32 %v978, 0.0
        %v996 = vmax.f32 %v981, 0.0
        %v997 = vmax.f32 %v984, 0.0
        %v998 = vmax.f32 %v987, 0.0
        %v999 = vmax.f32 %v990, 0.0
        %v1000 = vld [vmem:[%s616] sm:$0xff]
        %v1001 = vld [vmem:[%s616 + $0x8] sm:$0xff]
        %v1002 = vld [vmem:[%s616 + $0x10] sm:$0xff]
        %v1003 = vld [vmem:[%s616 + $0x18] sm:$0xff]
        %v1004 = vld [vmem:[%s616 + $0x20] sm:$0xff]
        %v1005 = vld [vmem:[%s616 + $0x28] sm:$0xff]
        %v1006 = vld [vmem:[%s616 + $0x30] sm:$0xff]
        %v1007 = vld [vmem:[%s616 + $0x38] sm:$0xff]
        %v1008 = vld [vmem:[%s616 + $0x40] sm:$0xff]
        %v1009 = vld [vmem:[%s616 + $0x48] sm:$0xff]
        %v1010 = vld [vmem:[%s616 + $0x50] sm:$0xff]
        %v1011 = vld [vmem:[%s616 + $0x58] sm:$0xff]
        %v1012 = vld [vmem:[%s616 + $0x60] sm:$0xff]
        %v1013 = vld [vmem:[%s616 + $0x68] sm:$0xff]
        %v1014 = vld [vmem:[%s616 + $0x70] sm:$0xff]
        %v1015 = vld [vmem:[%s616 + $0x78] sm:$0xff]
        %v1016 = vld [vmem:[#allocation10] sm:$0xff]
        %v1017 = vld [vmem:[#allocation10 + $0x8] sm:$0xff]
        %v1018 = vld [vmem:[#allocation10 + $0x10] sm:$0xff]
        %v1019 = vld [vmem:[#allocation10 + $0x18] sm:$0xff]
        %vm1020 = vcmask 261120
        %v1022 = vsel %vm1020, %v1000, 0
        %v1025 = vsel %vm1020, %v1001, 0
        %v1028 = vsel %vm1020, %v1002, 0
        %v1031 = vsel %vm1020, %v1003, 0
        %v1034 = vsel %vm1020, %v1004, 0
        %v1037 = vsel %vm1020, %v1005, 0
        %v1040 = vsel %vm1020, %v1006, 0
        %v1043 = vsel %vm1020, %v1007, 0
        %v1046 = vsel %vm1020, %v1008, 0
        %v1049 = vsel %vm1020, %v1009, 0
        %v1052 = vsel %vm1020, %v1010, 0
        %v1055 = vsel %vm1020, %v1011, 0
        %v1058 = vsel %vm1020, %v1012, 0
        %v1061 = vsel %vm1020, %v1013, 0
        %v1064 = vsel %vm1020, %v1014, 0
        %v1067 = vsel %vm1020, %v1015, 0
        %1069 = vmatpush.msra.mxu0 0.0
        %1070 = vmatpush.msra.mxu0 0.0
        %1071 = vmatpush.msra.mxu0 0.0
        %1072 = vmatpush.msra.mxu0 0.0
        %1073 = vmatpush.msra.mxu0 0.0
        %1074 = vmatpush.msra.mxu0 0.0
        %1075 = vmatpush.msra.mxu0 0.0
        %1076 = vmatpush.msra.mxu0 0.0
        %1077 = vmatpush.msra.mxu0 0.0
        %1078 = vmatpush.msra.mxu0 0.0
        %1079 = vmatpush.msra.mxu0 0.0
        %1080 = vmatpush.msra.mxu0 0.0
        %1081 = vmatpush.msra.mxu0 %v1019
        %1082 = vmatpush.msra.mxu0 %v1018
        %1083 = vmatpush.msra.mxu0 %v1017
        %1084 = vmatpush.msra.mxu0 %v1016
        %1085 = vmatmul.f32.gmra.mxu0 %v1022
        %v1086 = vpop.f32.mrf.mxu0
        %v1087 = vadd.f32 0.0, %v1086
        %1088 = vmatmul.f32.gmra.mxu0 %v1025
        %v1089 = vpop.f32.mrf.mxu0
        %v1090 = vadd.f32 0.0, %v1089
        %1091 = vmatmul.f32.gmra.mxu0 %v1028
        %v1092 = vpop.f32.mrf.mxu0
        %v1093 = vadd.f32 0.0, %v1092
        %1094 = vmatmul.f32.gmra.mxu0 %v1031
        %v1095 = vpop.f32.mrf.mxu0
        %v1096 = vadd.f32 0.0, %v1095
        %1097 = vmatmul.f32.gmra.mxu0 %v1034
        %v1098 = vpop.f32.mrf.mxu0
        %v1099 = vadd.f32 0.0, %v1098
        %1100 = vmatmul.f32.gmra.mxu0 %v1037
        %v1101 = vpop.f32.mrf.mxu0
        %v1102 = vadd.f32 0.0, %v1101
        %1103 = vmatmul.f32.gmra.mxu0 %v1040
        %v1104 = vpop.f32.mrf.mxu0
        %v1105 = vadd.f32 0.0, %v1104
        %1106 = vmatmul.f32.gmra.mxu0 %v1043
        %v1107 = vpop.f32.mrf.mxu0
        %v1108 = vadd.f32 0.0, %v1107
        %1109 = vmatmul.f32.gmra.mxu0 %v1046
        %v1110 = vpop.f32.mrf.mxu0
        %v1111 = vadd.f32 0.0, %v1110
        %1112 = vmatmul.f32.gmra.mxu0 %v1049
        %v1113 = vpop.f32.mrf.mxu0
        %v1114 = vadd.f32 0.0, %v1113
        %1115 = vmatmul.f32.gmra.mxu0 %v1052
        %v1116 = vpop.f32.mrf.mxu0
        %v1117 = vadd.f32 0.0, %v1116
        %1118 = vmatmul.f32.gmra.mxu0 %v1055
        %v1119 = vpop.f32.mrf.mxu0
        %v1120 = vadd.f32 0.0, %v1119
        %1121 = vmatmul.f32.gmra.mxu0 %v1058
        %v1122 = vpop.f32.mrf.mxu0
        %v1123 = vadd.f32 0.0, %v1122
        %1124 = vmatmul.f32.gmra.mxu0 %v1061
        %v1125 = vpop.f32.mrf.mxu0
        %v1126 = vadd.f32 0.0, %v1125
        %1127 = vmatmul.f32.gmra.mxu0 %v1064
        %v1128 = vpop.f32.mrf.mxu0
        %v1129 = vadd.f32 0.0, %v1128
        %1130 = vmatmul.f32.gmra.mxu0 %v1067
        %v1131 = vpop.f32.mrf.mxu0
        %v1132 = vadd.f32 0.0, %v1131
        %1133 = vdwg.mxu0
        %v1134 = vmax.f32 %v1087, 0.0
        %v1135 = vmax.f32 %v1090, 0.0
        %v1136 = vmax.f32 %v1093, 0.0
        %v1137 = vmax.f32 %v1096, 0.0
        %v1138 = vmax.f32 %v1099, 0.0
        %v1139 = vmax.f32 %v1102, 0.0
        %v1140 = vmax.f32 %v1105, 0.0
        %v1141 = vmax.f32 %v1108, 0.0
        %v1142 = vmax.f32 %v1111, 0.0
        %v1143 = vmax.f32 %v1114, 0.0
        %v1144 = vmax.f32 %v1117, 0.0
        %v1145 = vmax.f32 %v1120, 0.0
        %v1146 = vmax.f32 %v1123, 0.0
        %v1147 = vmax.f32 %v1126, 0.0
        %v1148 = vmax.f32 %v1129, 0.0
        %v1149 = vmax.f32 %v1132, 0.0
        %1150 = vmatpush.msra.mxu0 %v1149
        %1151 = vmatpush.msra.mxu0 %v1148
        %1152 = vmatpush.msra.mxu0 %v1147
        %1153 = vmatpush.msra.mxu0 %v1146
        %1154 = vmatpush.msra.mxu0 %v1145
        %1155 = vmatpush.msra.mxu0 %v1144
        %1156 = vmatpush.msra.mxu0 %v1143
        %1157 = vmatpush.msra.mxu0 %v1142
        %1158 = vmatpush.msra.mxu0 %v1141
        %1159 = vmatpush.msra.mxu0 %v1140
        %1160 = vmatpush.msra.mxu0 %v1139
        %1161 = vmatpush.msra.mxu0 %v1138
        %1162 = vmatpush.msra.mxu0 %v1137
        %1163 = vmatpush.msra.mxu0 %v1136
        %1164 = vmatpush.msra.mxu0 %v1135
        %1165 = vmatpush.msra.mxu0 %v1134
        %1166 = vmatmul.f32.gmra.mxu0 %v622
        %v1167 = vpop.f32.mrf.mxu0
        %v1168 = vadd.f32 0.0, %v1167
        %1169 = vmatmul.f32.gmra.mxu0 %v623
        %v1170 = vpop.f32.mrf.mxu0
        %v1171 = vadd.f32 0.0, %v1170
        %1172 = vmatmul.f32.gmra.mxu0 %v624
        %v1173 = vpop.f32.mrf.mxu0
        %v1174 = vadd.f32 0.0, %v1173
        %1175 = vmatmul.f32.gmra.mxu0 %v625
        %v1176 = vpop.f32.mrf.mxu0
        %v1177 = vadd.f32 0.0, %v1176
        %1178 = vmatmul.f32.gmra.mxu0 %v626
        %v1179 = vpop.f32.mrf.mxu0
        %v1180 = vadd.f32 0.0, %v1179
        %1181 = vmatmul.f32.gmra.mxu0 %v627
        %v1182 = vpop.f32.mrf.mxu0
        %v1183 = vadd.f32 0.0, %v1182
        %1184 = vmatmul.f32.gmra.mxu0 %v628
        %v1185 = vpop.f32.mrf.mxu0
        %v1186 = vadd.f32 0.0, %v1185
        %1187 = vmatmul.f32.gmra.mxu0 %v629
        %v1188 = vpop.f32.mrf.mxu0
        %v1189 = vadd.f32 0.0, %v1188
        %1190 = vdwg.mxu0
        %1207 = vrot.lane.b32.xlu0 %v1134, 32
        %v1208 = vpop.permute.xlu0 %1207
        %1209 = vrot.lane.b32.xlu0 %v1135, 32
        %v1210 = vpop.permute.xlu0 %1209
        %1211 = vrot.lane.b32.xlu0 %v1136, 32
        %v1212 = vpop.permute.xlu0 %1211
        %1213 = vrot.lane.b32.xlu0 %v1137, 32
        %v1214 = vpop.permute.xlu0 %1213
        %1215 = vrot.lane.b32.xlu0 %v1138, 32
        %v1216 = vpop.permute.xlu0 %1215
        %1217 = vrot.lane.b32.xlu0 %v1139, 32
        %v1218 = vpop.permute.xlu0 %1217
        %1219 = vrot.lane.b32.xlu0 %v1140, 32
        %v1220 = vpop.permute.xlu0 %1219
        %1221 = vrot.lane.b32.xlu0 %v1141, 32
        %v1222 = vpop.permute.xlu0 %1221
        %1223 = vrot.lane.b32.xlu0 %v1142, 32
        %v1224 = vpop.permute.xlu0 %1223
        %1225 = vrot.lane.b32.xlu0 %v1143, 32
        %v1226 = vpop.permute.xlu0 %1225
        %1227 = vrot.lane.b32.xlu0 %v1144, 32
        %v1228 = vpop.permute.xlu0 %1227
        %1229 = vrot.lane.b32.xlu0 %v1145, 32
        %v1230 = vpop.permute.xlu0 %1229
        %1231 = vrot.lane.b32.xlu0 %v1146, 32
        %v1232 = vpop.permute.xlu0 %1231
        %1233 = vrot.lane.b32.xlu0 %v1147, 32
        %v1234 = vpop.permute.xlu0 %1233
        %1235 = vrot.lane.b32.xlu0 %v1148, 32
        %v1236 = vpop.permute.xlu0 %1235
        %1237 = vrot.lane.b32.xlu0 %v1149, 32
        %v1238 = vpop.permute.xlu0 %1237
        %1255 = vrot.lane.b32.xlu0 %v1134, 64
        %v1256 = vpop.permute.xlu0 %1255
        %1257 = vrot.lane.b32.xlu0 %v1135, 64
        %v1258 = vpop.permute.xlu0 %1257
        %1259 = vrot.lane.b32.xlu0 %v1136, 64
        %v1260 = vpop.permute.xlu0 %1259
        %1261 = vrot.lane.b32.xlu0 %v1137, 64
        %v1262 = vpop.permute.xlu0 %1261
        %1263 = vrot.lane.b32.xlu0 %v1138, 64
        %v1264 = vpop.permute.xlu0 %1263
        %1265 = vrot.lane.b32.xlu0 %v1139, 64
        %v1266 = vpop.permute.xlu0 %1265
        %1267 = vrot.lane.b32.xlu0 %v1140, 64
        %v1268 = vpop.permute.xlu0 %1267
        %1269 = vrot.lane.b32.xlu0 %v1141, 64
        %v1270 = vpop.permute.xlu0 %1269
        %1271 = vrot.lane.b32.xlu0 %v1142, 64
        %v1272 = vpop.permute.xlu0 %1271
        %1273 = vrot.lane.b32.xlu0 %v1143, 64
        %v1274 = vpop.permute.xlu0 %1273
        %1275 = vrot.lane.b32.xlu0 %v1144, 64
        %v1276 = vpop.permute.xlu0 %1275
        %1277 = vrot.lane.b32.xlu0 %v1145, 64
        %v1278 = vpop.permute.xlu0 %1277
        %1279 = vrot.lane.b32.xlu0 %v1146, 64
        %v1280 = vpop.permute.xlu0 %1279
        %1281 = vrot.lane.b32.xlu0 %v1147, 64
        %v1282 = vpop.permute.xlu0 %1281
        %1283 = vrot.lane.b32.xlu0 %v1148, 64
        %v1284 = vpop.permute.xlu0 %1283
        %1285 = vrot.lane.b32.xlu0 %v1149, 64
        %v1286 = vpop.permute.xlu0 %1285
        %1303 = vrot.lane.b32.xlu0 %v1134, 96
        %v1304 = vpop.permute.xlu0 %1303
        %1305 = vrot.lane.b32.xlu0 %v1135, 96
        %v1306 = vpop.permute.xlu0 %1305
        %1307 = vrot.lane.b32.xlu0 %v1136, 96
        %v1308 = vpop.permute.xlu0 %1307
        %1309 = vrot.lane.b32.xlu0 %v1137, 96
        %v1310 = vpop.permute.xlu0 %1309
        %1311 = vrot.lane.b32.xlu0 %v1138, 96
        %v1312 = vpop.permute.xlu0 %1311
        %1313 = vrot.lane.b32.xlu0 %v1139, 96
        %v1314 = vpop.permute.xlu0 %1313
        %1315 = vrot.lane.b32.xlu0 %v1140, 96
        %v1316 = vpop.permute.xlu0 %1315
        %1317 = vrot.lane.b32.xlu0 %v1141, 96
        %v1318 = vpop.permute.xlu0 %1317
        %1319 = vrot.lane.b32.xlu0 %v1142, 96
        %v1320 = vpop.permute.xlu0 %1319
        %1321 = vrot.lane.b32.xlu0 %v1143, 96
        %v1322 = vpop.permute.xlu0 %1321
        %1323 = vrot.lane.b32.xlu0 %v1144, 96
        %v1324 = vpop.permute.xlu0 %1323
        %1325 = vrot.lane.b32.xlu0 %v1145, 96
        %v1326 = vpop.permute.xlu0 %1325
        %1327 = vrot.lane.b32.xlu0 %v1146, 96
        %v1328 = vpop.permute.xlu0 %1327
        %1329 = vrot.lane.b32.xlu0 %v1147, 96
        %v1330 = vpop.permute.xlu0 %1329
        %1331 = vrot.lane.b32.xlu0 %v1148, 96
        %v1332 = vpop.permute.xlu0 %1331
        %1333 = vrot.lane.b32.xlu0 %v1149, 96
        %v1334 = vpop.permute.xlu0 %1333
        %v1351 = vsel %vm1020, %v1134, %v1208
        %v1352 = vsel %vm1020, %v1135, %v1210
        %v1353 = vsel %vm1020, %v1136, %v1212
        %v1354 = vsel %vm1020, %v1137, %v1214
        %v1355 = vsel %vm1020, %v1138, %v1216
        %v1356 = vsel %vm1020, %v1139, %v1218
        %v1357 = vsel %vm1020, %v1140, %v1220
        %v1358 = vsel %vm1020, %v1141, %v1222
        %v1359 = vsel %vm1020, %v1142, %v1224
        %v1360 = vsel %vm1020, %v1143, %v1226
        %v1361 = vsel %vm1020, %v1144, %v1228
        %v1362 = vsel %vm1020, %v1145, %v1230
        %v1363 = vsel %vm1020, %v1146, %v1232
        %v1364 = vsel %vm1020, %v1147, %v1234
        %v1365 = vsel %vm1020, %v1148, %v1236
        %v1366 = vsel %vm1020, %v1149, %v1238
        %vm1367 = vcmask 523264
        %v1368 = vsel %vm1367, %v1351, %v1256
        %v1369 = vsel %vm1367, %v1352, %v1258
        %v1370 = vsel %vm1367, %v1353, %v1260
        %v1371 = vsel %vm1367, %v1354, %v1262
        %v1372 = vsel %vm1367, %v1355, %v1264
        %v1373 = vsel %vm1367, %v1356, %v1266
        %v1374 = vsel %vm1367, %v1357, %v1268
        %v1375 = vsel %vm1367, %v1358, %v1270
        %v1376 = vsel %vm1367, %v1359, %v1272
        %v1377 = vsel %vm1367, %v1360, %v1274
        %v1378 = vsel %vm1367, %v1361, %v1276
        %v1379 = vsel %vm1367, %v1362, %v1278
        %v1380 = vsel %vm1367, %v1363, %v1280
        %v1381 = vsel %vm1367, %v1364, %v1282
        %v1382 = vsel %vm1367, %v1365, %v1284
        %v1383 = vsel %vm1367, %v1366, %v1286
        %vm1384 = vcmask 785408
        %v1385 = vsel %vm1384, %v1368, %v1304
        %v1386 = vsel %vm1384, %v1369, %v1306
        %v1387 = vsel %vm1384, %v1370, %v1308
        %v1388 = vsel %vm1384, %v1371, %v1310
        %v1389 = vsel %vm1384, %v1372, %v1312
        %v1390 = vsel %vm1384, %v1373, %v1314
        %v1391 = vsel %vm1384, %v1374, %v1316
        %v1392 = vsel %vm1384, %v1375, %v1318
        %v1393 = vsel %vm1384, %v1376, %v1320
        %v1394 = vsel %vm1384, %v1377, %v1322
        %v1395 = vsel %vm1384, %v1378, %v1324
        %v1396 = vsel %vm1384, %v1379, %v1326
        %v1397 = vsel %vm1384, %v1380, %v1328
        %v1398 = vsel %vm1384, %v1381, %v1330
        %v1399 = vsel %vm1384, %v1382, %v1332
        %v1400 = vsel %vm1384, %v1383, %v1334
        %v1401 = vld [vmem:[%s515] sm:$0xff]
        %v1402 = vld [vmem:[%s515 + $0x8] sm:$0xff]
        %v1403 = vld [vmem:[%s515 + $0x10] sm:$0xff]
        %v1404 = vld [vmem:[%s515 + $0x18] sm:$0xff]
        %v1405 = vld [vmem:[%s515 + $0x20] sm:$0xff]
        %v1406 = vld [vmem:[%s515 + $0x28] sm:$0xff]
        %v1407 = vld [vmem:[%s515 + $0x30] sm:$0xff]
        %v1408 = vld [vmem:[%s515 + $0x38] sm:$0xff]
        %v1409 = vld [vmem:[%s515 + $0x40] sm:$0xff]
        %v1410 = vld [vmem:[%s515 + $0x48] sm:$0xff]
        %v1411 = vld [vmem:[%s515 + $0x50] sm:$0xff]
        %v1412 = vld [vmem:[%s515 + $0x58] sm:$0xff]
        %v1413 = vld [vmem:[%s515 + $0x60] sm:$0xff]
        %v1414 = vld [vmem:[%s515 + $0x68] sm:$0xff]
        %v1415 = vld [vmem:[%s515 + $0x70] sm:$0xff]
        %v1416 = vld [vmem:[%s515 + $0x78] sm:$0xff]
        %v1417 = vld [vmem:[%s515 + $0x80] sm:$0xff]
        %v1418 = vld [vmem:[%s515 + $0x88] sm:$0xff]
        %v1419 = vld [vmem:[%s515 + $0x90] sm:$0xff]
        %v1420 = vld [vmem:[%s515 + $0x98] sm:$0xff]
        %v1421 = vld [vmem:[%s515 + $0xa0] sm:$0xff]
        %v1422 = vld [vmem:[%s515 + $0xa8] sm:$0xff]
        %v1423 = vld [vmem:[%s515 + $0xb0] sm:$0xff]
        %v1424 = vld [vmem:[%s515 + $0xb8] sm:$0xff]
        %v1425 = vld [vmem:[%s515 + $0xc0] sm:$0xff]
        %v1426 = vld [vmem:[%s515 + $0xc8] sm:$0xff]
        %v1427 = vld [vmem:[%s515 + $0xd0] sm:$0xff]
        %v1428 = vld [vmem:[%s515 + $0xd8] sm:$0xff]
        %v1429 = vld [vmem:[%s515 + $0xe0] sm:$0xff]
        %v1430 = vld [vmem:[%s515 + $0xe8] sm:$0xff]
        %v1431 = vld [vmem:[%s515 + $0xf0] sm:$0xff]
        %v1432 = vld [vmem:[%s515 + $0xf8] sm:$0xff]
        %v1433 = vld [vmem:[%s515 + $0x100] sm:$0xff]
        %v1434 = vld [vmem:[%s515 + $0x108] sm:$0xff]
        %v1435 = vld [vmem:[%s515 + $0x110] sm:$0xff]
        %v1436 = vld [vmem:[%s515 + $0x118] sm:$0xff]
        %v1437 = vld [vmem:[%s515 + $0x120] sm:$0xff]
        %v1438 = vld [vmem:[%s515 + $0x128] sm:$0xff]
        %v1439 = vld [vmem:[%s515 + $0x130] sm:$0xff]
        %v1440 = vld [vmem:[%s515 + $0x138] sm:$0xff]
        %v1441 = vld [vmem:[%s515 + $0x140] sm:$0xff]
        %v1442 = vld [vmem:[%s515 + $0x148] sm:$0xff]
        %v1443 = vld [vmem:[%s515 + $0x150] sm:$0xff]
        %v1444 = vld [vmem:[%s515 + $0x158] sm:$0xff]
        %v1445 = vld [vmem:[%s515 + $0x160] sm:$0xff]
        %v1446 = vld [vmem:[%s515 + $0x168] sm:$0xff]
        %v1447 = vld [vmem:[%s515 + $0x170] sm:$0xff]
        %v1448 = vld [vmem:[%s515 + $0x178] sm:$0xff]
        %v1449 = vld [vmem:[%s515 + $0x180] sm:$0xff]
        %v1450 = vld [vmem:[%s515 + $0x188] sm:$0xff]
        %v1451 = vld [vmem:[%s515 + $0x190] sm:$0xff]
        %v1452 = vld [vmem:[%s515 + $0x198] sm:$0xff]
        %v1453 = vld [vmem:[%s515 + $0x1a0] sm:$0xff]
        %v1454 = vld [vmem:[%s515 + $0x1a8] sm:$0xff]
        %v1455 = vld [vmem:[%s515 + $0x1b0] sm:$0xff]
        %v1456 = vld [vmem:[%s515 + $0x1b8] sm:$0xff]
        %v1457 = vld [vmem:[%s515 + $0x1c0] sm:$0xff]
        %v1458 = vld [vmem:[%s515 + $0x1c8] sm:$0xff]
        %v1459 = vld [vmem:[%s515 + $0x1d0] sm:$0xff]
        %v1460 = vld [vmem:[%s515 + $0x1d8] sm:$0xff]
        %v1461 = vld [vmem:[%s515 + $0x1e0] sm:$0xff]
        %v1462 = vld [vmem:[%s515 + $0x1e8] sm:$0xff]
        %v1463 = vld [vmem:[%s515 + $0x1f0] sm:$0xff]
        %v1464 = vld [vmem:[%s515 + $0x1f8] sm:$0xff]
        %v1465 = vld [vmem:[%s515 + $0x200] sm:$0xff]
        %v1466 = vld [vmem:[%s515 + $0x208] sm:$0xff]
        %v1467 = vld [vmem:[%s515 + $0x210] sm:$0xff]
        %v1468 = vld [vmem:[%s515 + $0x218] sm:$0xff]
        %v1469 = vld [vmem:[%s515 + $0x220] sm:$0xff]
        %v1470 = vld [vmem:[%s515 + $0x228] sm:$0xff]
        %v1471 = vld [vmem:[%s515 + $0x230] sm:$0xff]
        %v1472 = vld [vmem:[%s515 + $0x238] sm:$0xff]
        %v1473 = vld [vmem:[%s515 + $0x240] sm:$0xff]
        %v1474 = vld [vmem:[%s515 + $0x248] sm:$0xff]
        %v1475 = vld [vmem:[%s515 + $0x250] sm:$0xff]
        %v1476 = vld [vmem:[%s515 + $0x258] sm:$0xff]
        %v1477 = vld [vmem:[%s515 + $0x260] sm:$0xff]
        %v1478 = vld [vmem:[%s515 + $0x268] sm:$0xff]
        %v1479 = vld [vmem:[%s515 + $0x270] sm:$0xff]
        %v1480 = vld [vmem:[%s515 + $0x278] sm:$0xff]
        %v1481 = vld [vmem:[%s515 + $0x280] sm:$0xff]
        %v1482 = vld [vmem:[%s515 + $0x288] sm:$0xff]
        %v1483 = vld [vmem:[%s515 + $0x290] sm:$0xff]
        %v1484 = vld [vmem:[%s515 + $0x298] sm:$0xff]
        %v1485 = vld [vmem:[%s515 + $0x2a0] sm:$0xff]
        %v1486 = vld [vmem:[%s515 + $0x2a8] sm:$0xff]
        %v1487 = vld [vmem:[%s515 + $0x2b0] sm:$0xff]
        %v1488 = vld [vmem:[%s515 + $0x2b8] sm:$0xff]
        %v1489 = vld [vmem:[%s515 + $0x2c0] sm:$0xff]
        %v1490 = vld [vmem:[%s515 + $0x2c8] sm:$0xff]
        %v1491 = vld [vmem:[%s515 + $0x2d0] sm:$0xff]
        %v1492 = vld [vmem:[%s515 + $0x2d8] sm:$0xff]
        %v1493 = vld [vmem:[%s515 + $0x2e0] sm:$0xff]
        %v1494 = vld [vmem:[%s515 + $0x2e8] sm:$0xff]
        %v1495 = vld [vmem:[%s515 + $0x2f0] sm:$0xff]
        %v1496 = vld [vmem:[%s515 + $0x2f8] sm:$0xff]
        %v1497 = vld [vmem:[%s515 + $0x300] sm:$0xff]
        %v1498 = vld [vmem:[%s515 + $0x308] sm:$0xff]
        %v1499 = vld [vmem:[%s515 + $0x310] sm:$0xff]
        %v1500 = vld [vmem:[%s515 + $0x318] sm:$0xff]
        %v1501 = vld [vmem:[%s515 + $0x320] sm:$0xff]
        %v1502 = vld [vmem:[%s515 + $0x328] sm:$0xff]
        %v1503 = vld [vmem:[%s515 + $0x330] sm:$0xff]
        %v1504 = vld [vmem:[%s515 + $0x338] sm:$0xff]
        %v1505 = vld [vmem:[%s515 + $0x340] sm:$0xff]
        %v1506 = vld [vmem:[%s515 + $0x348] sm:$0xff]
        %v1507 = vld [vmem:[%s515 + $0x350] sm:$0xff]
        %v1508 = vld [vmem:[%s515 + $0x358] sm:$0xff]
        %v1509 = vld [vmem:[%s515 + $0x360] sm:$0xff]
        %v1510 = vld [vmem:[%s515 + $0x368] sm:$0xff]
        %v1511 = vld [vmem:[%s515 + $0x370] sm:$0xff]
        %v1512 = vld [vmem:[%s515 + $0x378] sm:$0xff]
        %v1513 = vld [vmem:[%s515 + $0x380] sm:$0xff]
        %v1514 = vld [vmem:[%s515 + $0x388] sm:$0xff]
        %v1515 = vld [vmem:[%s515 + $0x390] sm:$0xff]
        %v1516 = vld [vmem:[%s515 + $0x398] sm:$0xff]
        %v1517 = vld [vmem:[%s515 + $0x3a0] sm:$0xff]
        %v1518 = vld [vmem:[%s515 + $0x3a8] sm:$0xff]
        %v1519 = vld [vmem:[%s515 + $0x3b0] sm:$0xff]
        %v1520 = vld [vmem:[%s515 + $0x3b8] sm:$0xff]
        %v1521 = vld [vmem:[%s515 + $0x3c0] sm:$0xff]
        %v1522 = vld [vmem:[%s515 + $0x3c8] sm:$0xff]
        %v1523 = vld [vmem:[%s515 + $0x3d0] sm:$0xff]
        %v1524 = vld [vmem:[%s515 + $0x3d8] sm:$0xff]
        %v1525 = vld [vmem:[%s515 + $0x3e0] sm:$0xff]
        %v1526 = vld [vmem:[%s515 + $0x3e8] sm:$0xff]
        %v1527 = vld [vmem:[%s515 + $0x3f0] sm:$0xff]
        %v1528 = vld [vmem:[%s515 + $0x3f8] sm:$0xff]
        %v1529 = vld [vmem:[%s515 + $0x400] sm:$0xff]
        %v1530 = vld [vmem:[%s515 + $0x408] sm:$0xff]
        %v1531 = vld [vmem:[%s515 + $0x410] sm:$0xff]
        %v1532 = vld [vmem:[%s515 + $0x418] sm:$0xff]
        %v1533 = vld [vmem:[%s515 + $0x420] sm:$0xff]
        %v1534 = vld [vmem:[%s515 + $0x428] sm:$0xff]
        %v1535 = vld [vmem:[%s515 + $0x430] sm:$0xff]
        %v1536 = vld [vmem:[%s515 + $0x438] sm:$0xff]
        %v1537 = vld [vmem:[%s515 + $0x440] sm:$0xff]
        %v1538 = vld [vmem:[%s515 + $0x448] sm:$0xff]
        %v1539 = vld [vmem:[%s515 + $0x450] sm:$0xff]
        %v1540 = vld [vmem:[%s515 + $0x458] sm:$0xff]
        %v1541 = vld [vmem:[%s515 + $0x460] sm:$0xff]
        %v1542 = vld [vmem:[%s515 + $0x468] sm:$0xff]
        %v1543 = vld [vmem:[%s515 + $0x470] sm:$0xff]
        %v1544 = vld [vmem:[%s515 + $0x478] sm:$0xff]
        %v1545 = vld [vmem:[%s515 + $0x480] sm:$0xff]
        %v1546 = vld [vmem:[%s515 + $0x488] sm:$0xff]
        %v1547 = vld [vmem:[%s515 + $0x490] sm:$0xff]
        %v1548 = vld [vmem:[%s515 + $0x498] sm:$0xff]
        %v1549 = vld [vmem:[%s515 + $0x4a0] sm:$0xff]
        %v1550 = vld [vmem:[%s515 + $0x4a8] sm:$0xff]
        %v1551 = vld [vmem:[%s515 + $0x4b0] sm:$0xff]
        %v1552 = vld [vmem:[%s515 + $0x4b8] sm:$0xff]
        %v1553 = vld [vmem:[%s515 + $0x4c0] sm:$0xff]
        %v1554 = vld [vmem:[%s515 + $0x4c8] sm:$0xff]
        %v1555 = vld [vmem:[%s515 + $0x4d0] sm:$0xff]
        %v1556 = vld [vmem:[%s515 + $0x4d8] sm:$0xff]
        %v1557 = vld [vmem:[%s515 + $0x4e0] sm:$0xff]
        %v1558 = vld [vmem:[%s515 + $0x4e8] sm:$0xff]
        %v1559 = vld [vmem:[%s515 + $0x4f0] sm:$0xff]
        %v1560 = vld [vmem:[%s515 + $0x4f8] sm:$0xff]
        %v1561 = vld [vmem:[%s515 + $0x500] sm:$0xff]
        %v1562 = vld [vmem:[%s515 + $0x508] sm:$0xff]
        %v1563 = vld [vmem:[%s515 + $0x510] sm:$0xff]
        %v1564 = vld [vmem:[%s515 + $0x518] sm:$0xff]
        %v1565 = vld [vmem:[%s515 + $0x520] sm:$0xff]
        %v1566 = vld [vmem:[%s515 + $0x528] sm:$0xff]
        %v1567 = vld [vmem:[%s515 + $0x530] sm:$0xff]
        %v1568 = vld [vmem:[%s515 + $0x538] sm:$0xff]
        %v1569 = vld [vmem:[%s515 + $0x540] sm:$0xff]
        %v1570 = vld [vmem:[%s515 + $0x548] sm:$0xff]
        %v1571 = vld [vmem:[%s515 + $0x550] sm:$0xff]
        %v1572 = vld [vmem:[%s515 + $0x558] sm:$0xff]
        %v1573 = vld [vmem:[%s515 + $0x560] sm:$0xff]
        %v1574 = vld [vmem:[%s515 + $0x568] sm:$0xff]
        %v1575 = vld [vmem:[%s515 + $0x570] sm:$0xff]
        %v1576 = vld [vmem:[%s515 + $0x578] sm:$0xff]
        %v1577 = vld [vmem:[%s515 + $0x580] sm:$0xff]
        %v1578 = vld [vmem:[%s515 + $0x588] sm:$0xff]
        %v1579 = vld [vmem:[%s515 + $0x590] sm:$0xff]
        %v1580 = vld [vmem:[%s515 + $0x598] sm:$0xff]
        %v1581 = vld [vmem:[%s515 + $0x5a0] sm:$0xff]
        %v1582 = vld [vmem:[%s515 + $0x5a8] sm:$0xff]
        %v1583 = vld [vmem:[%s515 + $0x5b0] sm:$0xff]
        %v1584 = vld [vmem:[%s515 + $0x5b8] sm:$0xff]
        %v1585 = vld [vmem:[%s515 + $0x5c0] sm:$0xff]
        %v1586 = vld [vmem:[%s515 + $0x5c8] sm:$0xff]
        %v1587 = vld [vmem:[%s515 + $0x5d0] sm:$0xff]
        %v1588 = vld [vmem:[%s515 + $0x5d8] sm:$0xff]
        %v1589 = vld [vmem:[%s515 + $0x5e0] sm:$0xff]
        %v1590 = vld [vmem:[%s515 + $0x5e8] sm:$0xff]
        %v1591 = vld [vmem:[%s515 + $0x5f0] sm:$0xff]
        %v1592 = vld [vmem:[%s515 + $0x5f8] sm:$0xff]
        %v1593 = vld [vmem:[%s515 + $0x600] sm:$0xff]
        %v1594 = vld [vmem:[%s515 + $0x608] sm:$0xff]
        %v1595 = vld [vmem:[%s515 + $0x610] sm:$0xff]
        %v1596 = vld [vmem:[%s515 + $0x618] sm:$0xff]
        %v1597 = vld [vmem:[%s515 + $0x620] sm:$0xff]
        %v1598 = vld [vmem:[%s515 + $0x628] sm:$0xff]
        %v1599 = vld [vmem:[%s515 + $0x630] sm:$0xff]
        %v1600 = vld [vmem:[%s515 + $0x638] sm:$0xff]
        %v1601 = vld [vmem:[%s515 + $0x640] sm:$0xff]
        %v1602 = vld [vmem:[%s515 + $0x648] sm:$0xff]
        %v1603 = vld [vmem:[%s515 + $0x650] sm:$0xff]
        %v1604 = vld [vmem:[%s515 + $0x658] sm:$0xff]
        %v1605 = vld [vmem:[%s515 + $0x660] sm:$0xff]
        %v1606 = vld [vmem:[%s515 + $0x668] sm:$0xff]
        %v1607 = vld [vmem:[%s515 + $0x670] sm:$0xff]
        %v1608 = vld [vmem:[%s515 + $0x678] sm:$0xff]
        %v1609 = vld [vmem:[%s515 + $0x680] sm:$0xff]
        %v1610 = vld [vmem:[%s515 + $0x688] sm:$0xff]
        %v1611 = vld [vmem:[%s515 + $0x690] sm:$0xff]
        %v1612 = vld [vmem:[%s515 + $0x698] sm:$0xff]
        %v1613 = vld [vmem:[%s515 + $0x6a0] sm:$0xff]
        %v1614 = vld [vmem:[%s515 + $0x6a8] sm:$0xff]
        %v1615 = vld [vmem:[%s515 + $0x6b0] sm:$0xff]
        %v1616 = vld [vmem:[%s515 + $0x6b8] sm:$0xff]
        %v1617 = vld [vmem:[%s515 + $0x6c0] sm:$0xff]
        %v1618 = vld [vmem:[%s515 + $0x6c8] sm:$0xff]
        %v1619 = vld [vmem:[%s515 + $0x6d0] sm:$0xff]
        %v1620 = vld [vmem:[%s515 + $0x6d8] sm:$0xff]
        %v1621 = vld [vmem:[%s515 + $0x6e0] sm:$0xff]
        %v1622 = vld [vmem:[%s515 + $0x6e8] sm:$0xff]
        %v1623 = vld [vmem:[%s515 + $0x6f0] sm:$0xff]
        %v1624 = vld [vmem:[%s515 + $0x6f8] sm:$0xff]
        %v1625 = vld [vmem:[%s515 + $0x700] sm:$0xff]
        %v1626 = vld [vmem:[%s515 + $0x708] sm:$0xff]
        %v1627 = vld [vmem:[%s515 + $0x710] sm:$0xff]
        %v1628 = vld [vmem:[%s515 + $0x718] sm:$0xff]
        %v1629 = vld [vmem:[%s515 + $0x720] sm:$0xff]
        %v1630 = vld [vmem:[%s515 + $0x728] sm:$0xff]
        %v1631 = vld [vmem:[%s515 + $0x730] sm:$0xff]
        %v1632 = vld [vmem:[%s515 + $0x738] sm:$0xff]
        %v1633 = vld [vmem:[%s515 + $0x740] sm:$0xff]
        %v1634 = vld [vmem:[%s515 + $0x748] sm:$0xff]
        %v1635 = vld [vmem:[%s515 + $0x750] sm:$0xff]
        %v1636 = vld [vmem:[%s515 + $0x758] sm:$0xff]
        %v1637 = vld [vmem:[%s515 + $0x760] sm:$0xff]
        %v1638 = vld [vmem:[%s515 + $0x768] sm:$0xff]
        %v1639 = vld [vmem:[%s515 + $0x770] sm:$0xff]
        %v1640 = vld [vmem:[%s515 + $0x778] sm:$0xff]
        %v1641 = vld [vmem:[%s515 + $0x780] sm:$0xff]
        %v1642 = vld [vmem:[%s515 + $0x788] sm:$0xff]
        %v1643 = vld [vmem:[%s515 + $0x790] sm:$0xff]
        %v1644 = vld [vmem:[%s515 + $0x798] sm:$0xff]
        %v1645 = vld [vmem:[%s515 + $0x7a0] sm:$0xff]
        %v1646 = vld [vmem:[%s515 + $0x7a8] sm:$0xff]
        %v1647 = vld [vmem:[%s515 + $0x7b0] sm:$0xff]
        %v1648 = vld [vmem:[%s515 + $0x7b8] sm:$0xff]
        %v1649 = vld [vmem:[%s515 + $0x7c0] sm:$0xff]
        %v1650 = vld [vmem:[%s515 + $0x7c8] sm:$0xff]
        %v1651 = vld [vmem:[%s515 + $0x7d0] sm:$0xff]
        %v1652 = vld [vmem:[%s515 + $0x7d8] sm:$0xff]
        %v1653 = vld [vmem:[%s515 + $0x7e0] sm:$0xff]
        %v1654 = vld [vmem:[%s515 + $0x7e8] sm:$0xff]
        %v1655 = vld [vmem:[%s515 + $0x7f0] sm:$0xff]
        %v1656 = vld [vmem:[%s515 + $0x7f8] sm:$0xff]
        %vm1657 = vcmp.gt.f32.partialorder %v1401, 0.5
        %vm1658 = vcmp.gt.f32.partialorder %v1402, 0.5
        %vm1659 = vcmp.gt.f32.partialorder %v1403, 0.5
        %vm1660 = vcmp.gt.f32.partialorder %v1404, 0.5
        %vm1661 = vcmp.gt.f32.partialorder %v1405, 0.5
        %vm1662 = vcmp.gt.f32.partialorder %v1406, 0.5
        %vm1663 = vcmp.gt.f32.partialorder %v1407, 0.5
        %vm1664 = vcmp.gt.f32.partialorder %v1408, 0.5
        %vm1665 = vcmp.gt.f32.partialorder %v1409, 0.5
        %vm1666 = vcmp.gt.f32.partialorder %v1410, 0.5
        %vm1667 = vcmp.gt.f32.partialorder %v1411, 0.5
        %vm1668 = vcmp.gt.f32.partialorder %v1412, 0.5
        %vm1669 = vcmp.gt.f32.partialorder %v1413, 0.5
        %vm1670 = vcmp.gt.f32.partialorder %v1414, 0.5
        %vm1671 = vcmp.gt.f32.partialorder %v1415, 0.5
        %vm1672 = vcmp.gt.f32.partialorder %v1416, 0.5
        %vm1673 = vcmp.gt.f32.partialorder %v1417, 0.5
        %vm1674 = vcmp.gt.f32.partialorder %v1418, 0.5
        %vm1675 = vcmp.gt.f32.partialorder %v1419, 0.5
        %vm1676 = vcmp.gt.f32.partialorder %v1420, 0.5
        %vm1677 = vcmp.gt.f32.partialorder %v1421, 0.5
        %vm1678 = vcmp.gt.f32.partialorder %v1422, 0.5
        %vm1679 = vcmp.gt.f32.partialorder %v1423, 0.5
        %vm1680 = vcmp.gt.f32.partialorder %v1424, 0.5
        %vm1681 = vcmp.gt.f32.partialorder %v1425, 0.5
        %vm1682 = vcmp.gt.f32.partialorder %v1426, 0.5
        %vm1683 = vcmp.gt.f32.partialorder %v1427, 0.5
        %vm1684 = vcmp.gt.f32.partialorder %v1428, 0.5
        %vm1685 = vcmp.gt.f32.partialorder %v1429, 0.5
        %vm1686 = vcmp.gt.f32.partialorder %v1430, 0.5
        %vm1687 = vcmp.gt.f32.partialorder %v1431, 0.5
        %vm1688 = vcmp.gt.f32.partialorder %v1432, 0.5
        %vm1689 = vcmp.gt.f32.partialorder %v1433, 0.5
        %vm1690 = vcmp.gt.f32.partialorder %v1434, 0.5
        %vm1691 = vcmp.gt.f32.partialorder %v1435, 0.5
        %vm1692 = vcmp.gt.f32.partialorder %v1436, 0.5
        %vm1693 = vcmp.gt.f32.partialorder %v1437, 0.5
        %vm1694 = vcmp.gt.f32.partialorder %v1438, 0.5
        %vm1695 = vcmp.gt.f32.partialorder %v1439, 0.5
        %vm1696 = vcmp.gt.f32.partialorder %v1440, 0.5
        %vm1697 = vcmp.gt.f32.partialorder %v1441, 0.5
        %vm1698 = vcmp.gt.f32.partialorder %v1442, 0.5
        %vm1699 = vcmp.gt.f32.partialorder %v1443, 0.5
        %vm1700 = vcmp.gt.f32.partialorder %v1444, 0.5
        %vm1701 = vcmp.gt.f32.partialorder %v1445, 0.5
        %vm1702 = vcmp.gt.f32.partialorder %v1446, 0.5
        %vm1703 = vcmp.gt.f32.partialorder %v1447, 0.5
        %vm1704 = vcmp.gt.f32.partialorder %v1448, 0.5
        %vm1705 = vcmp.gt.f32.partialorder %v1449, 0.5
        %vm1706 = vcmp.gt.f32.partialorder %v1450, 0.5
        %vm1707 = vcmp.gt.f32.partialorder %v1451, 0.5
        %vm1708 = vcmp.gt.f32.partialorder %v1452, 0.5
        %vm1709 = vcmp.gt.f32.partialorder %v1453, 0.5
        %vm1710 = vcmp.gt.f32.partialorder %v1454, 0.5
        %vm1711 = vcmp.gt.f32.partialorder %v1455, 0.5
        %vm1712 = vcmp.gt.f32.partialorder %v1456, 0.5
        %vm1713 = vcmp.gt.f32.partialorder %v1457, 0.5
        %vm1714 = vcmp.gt.f32.partialorder %v1458, 0.5
        %vm1715 = vcmp.gt.f32.partialorder %v1459, 0.5
        %vm1716 = vcmp.gt.f32.partialorder %v1460, 0.5
        %vm1717 = vcmp.gt.f32.partialorder %v1461, 0.5
        %vm1718 = vcmp.gt.f32.partialorder %v1462, 0.5
        %vm1719 = vcmp.gt.f32.partialorder %v1463, 0.5
        %vm1720 = vcmp.gt.f32.partialorder %v1464, 0.5
        %vm1721 = vcmp.gt.f32.partialorder %v1465, 0.5
        %vm1722 = vcmp.gt.f32.partialorder %v1466, 0.5
        %vm1723 = vcmp.gt.f32.partialorder %v1467, 0.5
        %vm1724 = vcmp.gt.f32.partialorder %v1468, 0.5
        %vm1725 = vcmp.gt.f32.partialorder %v1469, 0.5
        %vm1726 = vcmp.gt.f32.partialorder %v1470, 0.5
        %vm1727 = vcmp.gt.f32.partialorder %v1471, 0.5
        %vm1728 = vcmp.gt.f32.partialorder %v1472, 0.5
        %vm1729 = vcmp.gt.f32.partialorder %v1473, 0.5
        %vm1730 = vcmp.gt.f32.partialorder %v1474, 0.5
        %vm1731 = vcmp.gt.f32.partialorder %v1475, 0.5
        %vm1732 = vcmp.gt.f32.partialorder %v1476, 0.5
        %vm1733 = vcmp.gt.f32.partialorder %v1477, 0.5
        %vm1734 = vcmp.gt.f32.partialorder %v1478, 0.5
        %vm1735 = vcmp.gt.f32.partialorder %v1479, 0.5
        %vm1736 = vcmp.gt.f32.partialorder %v1480, 0.5
        %vm1737 = vcmp.gt.f32.partialorder %v1481, 0.5
        %vm1738 = vcmp.gt.f32.partialorder %v1482, 0.5
        %vm1739 = vcmp.gt.f32.partialorder %v1483, 0.5
        %vm1740 = vcmp.gt.f32.partialorder %v1484, 0.5
        %vm1741 = vcmp.gt.f32.partialorder %v1485, 0.5
        %vm1742 = vcmp.gt.f32.partialorder %v1486, 0.5
        %vm1743 = vcmp.gt.f32.partialorder %v1487, 0.5
        %vm1744 = vcmp.gt.f32.partialorder %v1488, 0.5
        %vm1745 = vcmp.gt.f32.partialorder %v1489, 0.5
        %vm1746 = vcmp.gt.f32.partialorder %v1490, 0.5
        %vm1747 = vcmp.gt.f32.partialorder %v1491, 0.5
        %vm1748 = vcmp.gt.f32.partialorder %v1492, 0.5
        %vm1749 = vcmp.gt.f32.partialorder %v1493, 0.5
        %vm1750 = vcmp.gt.f32.partialorder %v1494, 0.5
        %vm1751 = vcmp.gt.f32.partialorder %v1495, 0.5
        %vm1752 = vcmp.gt.f32.partialorder %v1496, 0.5
        %vm1753 = vcmp.gt.f32.partialorder %v1497, 0.5
        %vm1754 = vcmp.gt.f32.partialorder %v1498, 0.5
        %vm1755 = vcmp.gt.f32.partialorder %v1499, 0.5
        %vm1756 = vcmp.gt.f32.partialorder %v1500, 0.5
        %vm1757 = vcmp.gt.f32.partialorder %v1501, 0.5
        %vm1758 = vcmp.gt.f32.partialorder %v1502, 0.5
        %vm1759 = vcmp.gt.f32.partialorder %v1503, 0.5
        %vm1760 = vcmp.gt.f32.partialorder %v1504, 0.5
        %vm1761 = vcmp.gt.f32.partialorder %v1505, 0.5
        %vm1762 = vcmp.gt.f32.partialorder %v1506, 0.5
        %vm1763 = vcmp.gt.f32.partialorder %v1507, 0.5
        %vm1764 = vcmp.gt.f32.partialorder %v1508, 0.5
        %vm1765 = vcmp.gt.f32.partialorder %v1509, 0.5
        %vm1766 = vcmp.gt.f32.partialorder %v1510, 0.5
        %vm1767 = vcmp.gt.f32.partialorder %v1511, 0.5
        %vm1768 = vcmp.gt.f32.partialorder %v1512, 0.5
        %vm1769 = vcmp.gt.f32.partialorder %v1513, 0.5
        %vm1770 = vcmp.gt.f32.partialorder %v1514, 0.5
        %vm1771 = vcmp.gt.f32.partialorder %v1515, 0.5
        %vm1772 = vcmp.gt.f32.partialorder %v1516, 0.5
        %vm1773 = vcmp.gt.f32.partialorder %v1517, 0.5
        %vm1774 = vcmp.gt.f32.partialorder %v1518, 0.5
        %vm1775 = vcmp.gt.f32.partialorder %v1519, 0.5
        %vm1776 = vcmp.gt.f32.partialorder %v1520, 0.5
        %vm1777 = vcmp.gt.f32.partialorder %v1521, 0.5
        %vm1778 = vcmp.gt.f32.partialorder %v1522, 0.5
        %vm1779 = vcmp.gt.f32.partialorder %v1523, 0.5
        %vm1780 = vcmp.gt.f32.partialorder %v1524, 0.5
        %vm1781 = vcmp.gt.f32.partialorder %v1525, 0.5
        %vm1782 = vcmp.gt.f32.partialorder %v1526, 0.5
        %vm1783 = vcmp.gt.f32.partialorder %v1527, 0.5
        %vm1784 = vcmp.gt.f32.partialorder %v1528, 0.5
        %vm1785 = vcmp.gt.f32.partialorder %v1529, 0.5
        %vm1786 = vcmp.gt.f32.partialorder %v1530, 0.5
        %vm1787 = vcmp.gt.f32.partialorder %v1531, 0.5
        %vm1788 = vcmp.gt.f32.partialorder %v1532, 0.5
        %vm1789 = vcmp.gt.f32.partialorder %v1533, 0.5
        %vm1790 = vcmp.gt.f32.partialorder %v1534, 0.5
        %vm1791 = vcmp.gt.f32.partialorder %v1535, 0.5
        %vm1792 = vcmp.gt.f32.partialorder %v1536, 0.5
        %vm1793 = vcmp.gt.f32.partialorder %v1537, 0.5
        %vm1794 = vcmp.gt.f32.partialorder %v1538, 0.5
        %vm1795 = vcmp.gt.f32.partialorder %v1539, 0.5
        %vm1796 = vcmp.gt.f32.partialorder %v1540, 0.5
        %vm1797 = vcmp.gt.f32.partialorder %v1541, 0.5
        %vm1798 = vcmp.gt.f32.partialorder %v1542, 0.5
        %vm1799 = vcmp.gt.f32.partialorder %v1543, 0.5
        %vm1800 = vcmp.gt.f32.partialorder %v1544, 0.5
        %vm1801 = vcmp.gt.f32.partialorder %v1545, 0.5
        %vm1802 = vcmp.gt.f32.partialorder %v1546, 0.5
        %vm1803 = vcmp.gt.f32.partialorder %v1547, 0.5
        %vm1804 = vcmp.gt.f32.partialorder %v1548, 0.5
        %vm1805 = vcmp.gt.f32.partialorder %v1549, 0.5
        %vm1806 = vcmp.gt.f32.partialorder %v1550, 0.5
        %vm1807 = vcmp.gt.f32.partialorder %v1551, 0.5
        %vm1808 = vcmp.gt.f32.partialorder %v1552, 0.5
        %vm1809 = vcmp.gt.f32.partialorder %v1553, 0.5
        %vm1810 = vcmp.gt.f32.partialorder %v1554, 0.5
        %vm1811 = vcmp.gt.f32.partialorder %v1555, 0.5
        %vm1812 = vcmp.gt.f32.partialorder %v1556, 0.5
        %vm1813 = vcmp.gt.f32.partialorder %v1557, 0.5
        %vm1814 = vcmp.gt.f32.partialorder %v1558, 0.5
        %vm1815 = vcmp.gt.f32.partialorder %v1559, 0.5
        %vm1816 = vcmp.gt.f32.partialorder %v1560, 0.5
        %vm1817 = vcmp.gt.f32.partialorder %v1561, 0.5
        %vm1818 = vcmp.gt.f32.partialorder %v1562, 0.5
        %vm1819 = vcmp.gt.f32.partialorder %v1563, 0.5
        %vm1820 = vcmp.gt.f32.partialorder %v1564, 0.5
        %vm1821 = vcmp.gt.f32.partialorder %v1565, 0.5
        %vm1822 = vcmp.gt.f32.partialorder %v1566, 0.5
        %vm1823 = vcmp.gt.f32.partialorder %v1567, 0.5
        %vm1824 = vcmp.gt.f32.partialorder %v1568, 0.5
        %vm1825 = vcmp.gt.f32.partialorder %v1569, 0.5
        %vm1826 = vcmp.gt.f32.partialorder %v1570, 0.5
        %vm1827 = vcmp.gt.f32.partialorder %v1571, 0.5
        %vm1828 = vcmp.gt.f32.partialorder %v1572, 0.5
        %vm1829 = vcmp.gt.f32.partialorder %v1573, 0.5
        %vm1830 = vcmp.gt.f32.partialorder %v1574, 0.5
        %vm1831 = vcmp.gt.f32.partialorder %v1575, 0.5
        %vm1832 = vcmp.gt.f32.partialorder %v1576, 0.5
        %vm1833 = vcmp.gt.f32.partialorder %v1577, 0.5
        %vm1834 = vcmp.gt.f32.partialorder %v1578, 0.5
        %vm1835 = vcmp.gt.f32.partialorder %v1579, 0.5
        %vm1836 = vcmp.gt.f32.partialorder %v1580, 0.5
        %vm1837 = vcmp.gt.f32.partialorder %v1581, 0.5
        %vm1838 = vcmp.gt.f32.partialorder %v1582, 0.5
        %vm1839 = vcmp.gt.f32.partialorder %v1583, 0.5
        %vm1840 = vcmp.gt.f32.partialorder %v1584, 0.5
        %vm1841 = vcmp.gt.f32.partialorder %v1585, 0.5
        %vm1842 = vcmp.gt.f32.partialorder %v1586, 0.5
        %vm1843 = vcmp.gt.f32.partialorder %v1587, 0.5
        %vm1844 = vcmp.gt.f32.partialorder %v1588, 0.5
        %vm1845 = vcmp.gt.f32.partialorder %v1589, 0.5
        %vm1846 = vcmp.gt.f32.partialorder %v1590, 0.5
        %vm1847 = vcmp.gt.f32.partialorder %v1591, 0.5
        %vm1848 = vcmp.gt.f32.partialorder %v1592, 0.5
        %vm1849 = vcmp.gt.f32.partialorder %v1593, 0.5
        %vm1850 = vcmp.gt.f32.partialorder %v1594, 0.5
        %vm1851 = vcmp.gt.f32.partialorder %v1595, 0.5
        %vm1852 = vcmp.gt.f32.partialorder %v1596, 0.5
        %vm1853 = vcmp.gt.f32.partialorder %v1597, 0.5
        %vm1854 = vcmp.gt.f32.partialorder %v1598, 0.5
        %vm1855 = vcmp.gt.f32.partialorder %v1599, 0.5
        %vm1856 = vcmp.gt.f32.partialorder %v1600, 0.5
        %vm1857 = vcmp.gt.f32.partialorder %v1601, 0.5
        %vm1858 = vcmp.gt.f32.partialorder %v1602, 0.5
        %vm1859 = vcmp.gt.f32.partialorder %v1603, 0.5
        %vm1860 = vcmp.gt.f32.partialorder %v1604, 0.5
        %vm1861 = vcmp.gt.f32.partialorder %v1605, 0.5
        %vm1862 = vcmp.gt.f32.partialorder %v1606, 0.5
        %vm1863 = vcmp.gt.f32.partialorder %v1607, 0.5
        %vm1864 = vcmp.gt.f32.partialorder %v1608, 0.5
        %vm1865 = vcmp.gt.f32.partialorder %v1609, 0.5
        %vm1866 = vcmp.gt.f32.partialorder %v1610, 0.5
        %vm1867 = vcmp.gt.f32.partialorder %v1611, 0.5
        %vm1868 = vcmp.gt.f32.partialorder %v1612, 0.5
        %vm1869 = vcmp.gt.f32.partialorder %v1613, 0.5
        %vm1870 = vcmp.gt.f32.partialorder %v1614, 0.5
        %vm1871 = vcmp.gt.f32.partialorder %v1615, 0.5
        %vm1872 = vcmp.gt.f32.partialorder %v1616, 0.5
        %vm1873 = vcmp.gt.f32.partialorder %v1617, 0.5
        %vm1874 = vcmp.gt.f32.partialorder %v1618, 0.5
        %vm1875 = vcmp.gt.f32.partialorder %v1619, 0.5
        %vm1876 = vcmp.gt.f32.partialorder %v1620, 0.5
        %vm1877 = vcmp.gt.f32.partialorder %v1621, 0.5
        %vm1878 = vcmp.gt.f32.partialorder %v1622, 0.5
        %vm1879 = vcmp.gt.f32.partialorder %v1623, 0.5
        %vm1880 = vcmp.gt.f32.partialorder %v1624, 0.5
        %vm1881 = vcmp.gt.f32.partialorder %v1625, 0.5
        %vm1882 = vcmp.gt.f32.partialorder %v1626, 0.5
        %vm1883 = vcmp.gt.f32.partialorder %v1627, 0.5
        %vm1884 = vcmp.gt.f32.partialorder %v1628, 0.5
        %vm1885 = vcmp.gt.f32.partialorder %v1629, 0.5
        %vm1886 = vcmp.gt.f32.partialorder %v1630, 0.5
        %vm1887 = vcmp.gt.f32.partialorder %v1631, 0.5
        %vm1888 = vcmp.gt.f32.partialorder %v1632, 0.5
        %vm1889 = vcmp.gt.f32.partialorder %v1633, 0.5
        %vm1890 = vcmp.gt.f32.partialorder %v1634, 0.5
        %vm1891 = vcmp.gt.f32.partialorder %v1635, 0.5
        %vm1892 = vcmp.gt.f32.partialorder %v1636, 0.5
        %vm1893 = vcmp.gt.f32.partialorder %v1637, 0.5
        %vm1894 = vcmp.gt.f32.partialorder %v1638, 0.5
        %vm1895 = vcmp.gt.f32.partialorder %v1639, 0.5
        %vm1896 = vcmp.gt.f32.partialorder %v1640, 0.5
        %vm1897 = vcmp.gt.f32.partialorder %v1641, 0.5
        %vm1898 = vcmp.gt.f32.partialorder %v1642, 0.5
        %vm1899 = vcmp.gt.f32.partialorder %v1643, 0.5
        %vm1900 = vcmp.gt.f32.partialorder %v1644, 0.5
        %vm1901 = vcmp.gt.f32.partialorder %v1645, 0.5
        %vm1902 = vcmp.gt.f32.partialorder %v1646, 0.5
        %vm1903 = vcmp.gt.f32.partialorder %v1647, 0.5
        %vm1904 = vcmp.gt.f32.partialorder %v1648, 0.5
        %vm1905 = vcmp.gt.f32.partialorder %v1649, 0.5
        %vm1906 = vcmp.gt.f32.partialorder %v1650, 0.5
        %vm1907 = vcmp.gt.f32.partialorder %v1651, 0.5
        %vm1908 = vcmp.gt.f32.partialorder %v1652, 0.5
        %vm1909 = vcmp.gt.f32.partialorder %v1653, 0.5
        %vm1910 = vcmp.gt.f32.partialorder %v1654, 0.5
        %vm1911 = vcmp.gt.f32.partialorder %v1655, 0.5
        %vm1912 = vcmp.gt.f32.partialorder %v1656, 0.5
        %v1913 = vsel %vm1657, %v1385, -3e+38
        %v1914 = vsel %vm1658, %v1386, -3e+38
        %v1915 = vsel %vm1659, %v1387, -3e+38
        %v1916 = vsel %vm1660, %v1388, -3e+38
        %v1917 = vsel %vm1661, %v1389, -3e+38
        %v1918 = vsel %vm1662, %v1390, -3e+38
        %v1919 = vsel %vm1663, %v1391, -3e+38
        %v1920 = vsel %vm1664, %v1392, -3e+38
        %v1921 = vsel %vm1665, %v1393, -3e+38
        %v1922 = vsel %vm1666, %v1394, -3e+38
        %v1923 = vsel %vm1667, %v1395, -3e+38
        %v1924 = vsel %vm1668, %v1396, -3e+38
        %v1925 = vsel %vm1669, %v1397, -3e+38
        %v1926 = vsel %vm1670, %v1398, -3e+38
        %v1927 = vsel %vm1671, %v1399, -3e+38
        %v1928 = vsel %vm1672, %v1400, -3e+38
        %v1929 = vsel %vm1673, %v1385, -3e+38
        %v1930 = vsel %vm1674, %v1386, -3e+38
        %v1931 = vsel %vm1675, %v1387, -3e+38
        %v1932 = vsel %vm1676, %v1388, -3e+38
        %v1933 = vsel %vm1677, %v1389, -3e+38
        %v1934 = vsel %vm1678, %v1390, -3e+38
        %v1935 = vsel %vm1679, %v1391, -3e+38
        %v1936 = vsel %vm1680, %v1392, -3e+38
        %v1937 = vsel %vm1681, %v1393, -3e+38
        %v1938 = vsel %vm1682, %v1394, -3e+38
        %v1939 = vsel %vm1683, %v1395, -3e+38
        %v1940 = vsel %vm1684, %v1396, -3e+38
        %v1941 = vsel %vm1685, %v1397, -3e+38
        %v1942 = vsel %vm1686, %v1398, -3e+38
        %v1943 = vsel %vm1687, %v1399, -3e+38
        %v1944 = vsel %vm1688, %v1400, -3e+38
        %v1945 = vsel %vm1689, %v1385, -3e+38
        %v1946 = vsel %vm1690, %v1386, -3e+38
        %v1947 = vsel %vm1691, %v1387, -3e+38
        %v1948 = vsel %vm1692, %v1388, -3e+38
        %v1949 = vsel %vm1693, %v1389, -3e+38
        %v1950 = vsel %vm1694, %v1390, -3e+38
        %v1951 = vsel %vm1695, %v1391, -3e+38
        %v1952 = vsel %vm1696, %v1392, -3e+38
        %v1953 = vsel %vm1697, %v1393, -3e+38
        %v1954 = vsel %vm1698, %v1394, -3e+38
        %v1955 = vsel %vm1699, %v1395, -3e+38
        %v1956 = vsel %vm1700, %v1396, -3e+38
        %v1957 = vsel %vm1701, %v1397, -3e+38
        %v1958 = vsel %vm1702, %v1398, -3e+38
        %v1959 = vsel %vm1703, %v1399, -3e+38
        %v1960 = vsel %vm1704, %v1400, -3e+38
        %v1961 = vsel %vm1705, %v1385, -3e+38
        %v1962 = vsel %vm1706, %v1386, -3e+38
        %v1963 = vsel %vm1707, %v1387, -3e+38
        %v1964 = vsel %vm1708, %v1388, -3e+38
        %v1965 = vsel %vm1709, %v1389, -3e+38
        %v1966 = vsel %vm1710, %v1390, -3e+38
        %v1967 = vsel %vm1711, %v1391, -3e+38
        %v1968 = vsel %vm1712, %v1392, -3e+38
        %v1969 = vsel %vm1713, %v1393, -3e+38
        %v1970 = vsel %vm1714, %v1394, -3e+38
        %v1971 = vsel %vm1715, %v1395, -3e+38
        %v1972 = vsel %vm1716, %v1396, -3e+38
        %v1973 = vsel %vm1717, %v1397, -3e+38
        %v1974 = vsel %vm1718, %v1398, -3e+38
        %v1975 = vsel %vm1719, %v1399, -3e+38
        %v1976 = vsel %vm1720, %v1400, -3e+38
        %v1977 = vsel %vm1721, %v1385, -3e+38
        %v1978 = vsel %vm1722, %v1386, -3e+38
        %v1979 = vsel %vm1723, %v1387, -3e+38
        %v1980 = vsel %vm1724, %v1388, -3e+38
        %v1981 = vsel %vm1725, %v1389, -3e+38
        %v1982 = vsel %vm1726, %v1390, -3e+38
        %v1983 = vsel %vm1727, %v1391, -3e+38
        %v1984 = vsel %vm1728, %v1392, -3e+38
        %v1985 = vsel %vm1729, %v1393, -3e+38
        %v1986 = vsel %vm1730, %v1394, -3e+38
        %v1987 = vsel %vm1731, %v1395, -3e+38
        %v1988 = vsel %vm1732, %v1396, -3e+38
        %v1989 = vsel %vm1733, %v1397, -3e+38
        %v1990 = vsel %vm1734, %v1398, -3e+38
        %v1991 = vsel %vm1735, %v1399, -3e+38
        %v1992 = vsel %vm1736, %v1400, -3e+38
        %v1993 = vsel %vm1737, %v1385, -3e+38
        %v1994 = vsel %vm1738, %v1386, -3e+38
        %v1995 = vsel %vm1739, %v1387, -3e+38
        %v1996 = vsel %vm1740, %v1388, -3e+38
        %v1997 = vsel %vm1741, %v1389, -3e+38
        %v1998 = vsel %vm1742, %v1390, -3e+38
        %v1999 = vsel %vm1743, %v1391, -3e+38
        %v2000 = vsel %vm1744, %v1392, -3e+38
        %v2001 = vsel %vm1745, %v1393, -3e+38
        %v2002 = vsel %vm1746, %v1394, -3e+38
        %v2003 = vsel %vm1747, %v1395, -3e+38
        %v2004 = vsel %vm1748, %v1396, -3e+38
        %v2005 = vsel %vm1749, %v1397, -3e+38
        %v2006 = vsel %vm1750, %v1398, -3e+38
        %v2007 = vsel %vm1751, %v1399, -3e+38
        %v2008 = vsel %vm1752, %v1400, -3e+38
        %v2009 = vsel %vm1753, %v1385, -3e+38
        %v2010 = vsel %vm1754, %v1386, -3e+38
        %v2011 = vsel %vm1755, %v1387, -3e+38
        %v2012 = vsel %vm1756, %v1388, -3e+38
        %v2013 = vsel %vm1757, %v1389, -3e+38
        %v2014 = vsel %vm1758, %v1390, -3e+38
        %v2015 = vsel %vm1759, %v1391, -3e+38
        %v2016 = vsel %vm1760, %v1392, -3e+38
        %v2017 = vsel %vm1761, %v1393, -3e+38
        %v2018 = vsel %vm1762, %v1394, -3e+38
        %v2019 = vsel %vm1763, %v1395, -3e+38
        %v2020 = vsel %vm1764, %v1396, -3e+38
        %v2021 = vsel %vm1765, %v1397, -3e+38
        %v2022 = vsel %vm1766, %v1398, -3e+38
        %v2023 = vsel %vm1767, %v1399, -3e+38
        %v2024 = vsel %vm1768, %v1400, -3e+38
        %v2025 = vsel %vm1769, %v1385, -3e+38
        %v2026 = vsel %vm1770, %v1386, -3e+38
        %v2027 = vsel %vm1771, %v1387, -3e+38
        %v2028 = vsel %vm1772, %v1388, -3e+38
        %v2029 = vsel %vm1773, %v1389, -3e+38
        %v2030 = vsel %vm1774, %v1390, -3e+38
        %v2031 = vsel %vm1775, %v1391, -3e+38
        %v2032 = vsel %vm1776, %v1392, -3e+38
        %v2033 = vsel %vm1777, %v1393, -3e+38
        %v2034 = vsel %vm1778, %v1394, -3e+38
        %v2035 = vsel %vm1779, %v1395, -3e+38
        %v2036 = vsel %vm1780, %v1396, -3e+38
        %v2037 = vsel %vm1781, %v1397, -3e+38
        %v2038 = vsel %vm1782, %v1398, -3e+38
        %v2039 = vsel %vm1783, %v1399, -3e+38
        %v2040 = vsel %vm1784, %v1400, -3e+38
        %v2041 = vsel %vm1785, %v1385, -3e+38
        %v2042 = vsel %vm1786, %v1386, -3e+38
        %v2043 = vsel %vm1787, %v1387, -3e+38
        %v2044 = vsel %vm1788, %v1388, -3e+38
        %v2045 = vsel %vm1789, %v1389, -3e+38
        %v2046 = vsel %vm1790, %v1390, -3e+38
        %v2047 = vsel %vm1791, %v1391, -3e+38
        %v2048 = vsel %vm1792, %v1392, -3e+38
        %v2049 = vsel %vm1793, %v1393, -3e+38
        %v2050 = vsel %vm1794, %v1394, -3e+38
        %v2051 = vsel %vm1795, %v1395, -3e+38
        %v2052 = vsel %vm1796, %v1396, -3e+38
        %v2053 = vsel %vm1797, %v1397, -3e+38
        %v2054 = vsel %vm1798, %v1398, -3e+38
        %v2055 = vsel %vm1799, %v1399, -3e+38
        %v2056 = vsel %vm1800, %v1400, -3e+38
        %v2057 = vsel %vm1801, %v1385, -3e+38
        %v2058 = vsel %vm1802, %v1386, -3e+38
        %v2059 = vsel %vm1803, %v1387, -3e+38
        %v2060 = vsel %vm1804, %v1388, -3e+38
        %v2061 = vsel %vm1805, %v1389, -3e+38
        %v2062 = vsel %vm1806, %v1390, -3e+38
        %v2063 = vsel %vm1807, %v1391, -3e+38
        %v2064 = vsel %vm1808, %v1392, -3e+38
        %v2065 = vsel %vm1809, %v1393, -3e+38
        %v2066 = vsel %vm1810, %v1394, -3e+38
        %v2067 = vsel %vm1811, %v1395, -3e+38
        %v2068 = vsel %vm1812, %v1396, -3e+38
        %v2069 = vsel %vm1813, %v1397, -3e+38
        %v2070 = vsel %vm1814, %v1398, -3e+38
        %v2071 = vsel %vm1815, %v1399, -3e+38
        %v2072 = vsel %vm1816, %v1400, -3e+38
        %v2073 = vsel %vm1817, %v1385, -3e+38
        %v2074 = vsel %vm1818, %v1386, -3e+38
        %v2075 = vsel %vm1819, %v1387, -3e+38
        %v2076 = vsel %vm1820, %v1388, -3e+38
        %v2077 = vsel %vm1821, %v1389, -3e+38
        %v2078 = vsel %vm1822, %v1390, -3e+38
        %v2079 = vsel %vm1823, %v1391, -3e+38
        %v2080 = vsel %vm1824, %v1392, -3e+38
        %v2081 = vsel %vm1825, %v1393, -3e+38
        %v2082 = vsel %vm1826, %v1394, -3e+38
        %v2083 = vsel %vm1827, %v1395, -3e+38
        %v2084 = vsel %vm1828, %v1396, -3e+38
        %v2085 = vsel %vm1829, %v1397, -3e+38
        %v2086 = vsel %vm1830, %v1398, -3e+38
        %v2087 = vsel %vm1831, %v1399, -3e+38
        %v2088 = vsel %vm1832, %v1400, -3e+38
        %v2089 = vsel %vm1833, %v1385, -3e+38
        %v2090 = vsel %vm1834, %v1386, -3e+38
        %v2091 = vsel %vm1835, %v1387, -3e+38
        %v2092 = vsel %vm1836, %v1388, -3e+38
        %v2093 = vsel %vm1837, %v1389, -3e+38
        %v2094 = vsel %vm1838, %v1390, -3e+38
        %v2095 = vsel %vm1839, %v1391, -3e+38
        %v2096 = vsel %vm1840, %v1392, -3e+38
        %v2097 = vsel %vm1841, %v1393, -3e+38
        %v2098 = vsel %vm1842, %v1394, -3e+38
        %v2099 = vsel %vm1843, %v1395, -3e+38
        %v2100 = vsel %vm1844, %v1396, -3e+38
        %v2101 = vsel %vm1845, %v1397, -3e+38
        %v2102 = vsel %vm1846, %v1398, -3e+38
        %v2103 = vsel %vm1847, %v1399, -3e+38
        %v2104 = vsel %vm1848, %v1400, -3e+38
        %v2105 = vsel %vm1849, %v1385, -3e+38
        %v2106 = vsel %vm1850, %v1386, -3e+38
        %v2107 = vsel %vm1851, %v1387, -3e+38
        %v2108 = vsel %vm1852, %v1388, -3e+38
        %v2109 = vsel %vm1853, %v1389, -3e+38
        %v2110 = vsel %vm1854, %v1390, -3e+38
        %v2111 = vsel %vm1855, %v1391, -3e+38
        %v2112 = vsel %vm1856, %v1392, -3e+38
        %v2113 = vsel %vm1857, %v1393, -3e+38
        %v2114 = vsel %vm1858, %v1394, -3e+38
        %v2115 = vsel %vm1859, %v1395, -3e+38
        %v2116 = vsel %vm1860, %v1396, -3e+38
        %v2117 = vsel %vm1861, %v1397, -3e+38
        %v2118 = vsel %vm1862, %v1398, -3e+38
        %v2119 = vsel %vm1863, %v1399, -3e+38
        %v2120 = vsel %vm1864, %v1400, -3e+38
        %v2121 = vsel %vm1865, %v1385, -3e+38
        %v2122 = vsel %vm1866, %v1386, -3e+38
        %v2123 = vsel %vm1867, %v1387, -3e+38
        %v2124 = vsel %vm1868, %v1388, -3e+38
        %v2125 = vsel %vm1869, %v1389, -3e+38
        %v2126 = vsel %vm1870, %v1390, -3e+38
        %v2127 = vsel %vm1871, %v1391, -3e+38
        %v2128 = vsel %vm1872, %v1392, -3e+38
        %v2129 = vsel %vm1873, %v1393, -3e+38
        %v2130 = vsel %vm1874, %v1394, -3e+38
        %v2131 = vsel %vm1875, %v1395, -3e+38
        %v2132 = vsel %vm1876, %v1396, -3e+38
        %v2133 = vsel %vm1877, %v1397, -3e+38
        %v2134 = vsel %vm1878, %v1398, -3e+38
        %v2135 = vsel %vm1879, %v1399, -3e+38
        %v2136 = vsel %vm1880, %v1400, -3e+38
        %v2137 = vsel %vm1881, %v1385, -3e+38
        %v2138 = vsel %vm1882, %v1386, -3e+38
        %v2139 = vsel %vm1883, %v1387, -3e+38
        %v2140 = vsel %vm1884, %v1388, -3e+38
        %v2141 = vsel %vm1885, %v1389, -3e+38
        %v2142 = vsel %vm1886, %v1390, -3e+38
        %v2143 = vsel %vm1887, %v1391, -3e+38
        %v2144 = vsel %vm1888, %v1392, -3e+38
        %v2145 = vsel %vm1889, %v1393, -3e+38
        %v2146 = vsel %vm1890, %v1394, -3e+38
        %v2147 = vsel %vm1891, %v1395, -3e+38
        %v2148 = vsel %vm1892, %v1396, -3e+38
        %v2149 = vsel %vm1893, %v1397, -3e+38
        %v2150 = vsel %vm1894, %v1398, -3e+38
        %v2151 = vsel %vm1895, %v1399, -3e+38
        %v2152 = vsel %vm1896, %v1400, -3e+38
        %v2153 = vsel %vm1897, %v1385, -3e+38
        %v2154 = vsel %vm1898, %v1386, -3e+38
        %v2155 = vsel %vm1899, %v1387, -3e+38
        %v2156 = vsel %vm1900, %v1388, -3e+38
        %v2157 = vsel %vm1901, %v1389, -3e+38
        %v2158 = vsel %vm1902, %v1390, -3e+38
        %v2159 = vsel %vm1903, %v1391, -3e+38
        %v2160 = vsel %vm1904, %v1392, -3e+38
        %v2161 = vsel %vm1905, %v1393, -3e+38
        %v2162 = vsel %vm1906, %v1394, -3e+38
        %v2163 = vsel %vm1907, %v1395, -3e+38
        %v2164 = vsel %vm1908, %v1396, -3e+38
        %v2165 = vsel %vm1909, %v1397, -3e+38
        %v2166 = vsel %vm1910, %v1398, -3e+38
        %v2167 = vsel %vm1911, %v1399, -3e+38
        %v2168 = vsel %vm1912, %v1400, -3e+38
        %v2169 = vmax.f32 %v1913, %v1914
        %v2170 = vmax.f32 %v2169, %v1915
        %v2171 = vmax.f32 %v2170, %v1916
        %v2172 = vmax.f32 %v2171, %v1917
        %v2173 = vmax.f32 %v2172, %v1918
        %v2174 = vmax.f32 %v2173, %v1919
        %v2175 = vmax.f32 %v2174, %v1920
        %v2176 = vmax.f32 %v2175, %v1921
        %v2177 = vmax.f32 %v2176, %v1922
        %v2178 = vmax.f32 %v2177, %v1923
        %v2179 = vmax.f32 %v2178, %v1924
        %v2180 = vmax.f32 %v2179, %v1925
        %v2181 = vmax.f32 %v2180, %v1926
        %v2182 = vmax.f32 %v2181, %v1927
        %v2183 = vmax.f32 %v2182, %v1928
        %v2184 = vrot.slane %v2183, 4
        %v2185 = vmax.f32 %v2183, %v2184
        %v2186 = vrot.slane %v2185, 2
        %v2187 = vmax.f32 %v2185, %v2186
        %v2188 = vrot.slane %v2187, 1
        %v2189 = vmax.f32 %v2187, %v2188
        %v2190 = vmax.f32 %v1929, %v1930
        %v2191 = vmax.f32 %v2190, %v1931
        %v2192 = vmax.f32 %v2191, %v1932
        %v2193 = vmax.f32 %v2192, %v1933
        %v2194 = vmax.f32 %v2193, %v1934
        %v2195 = vmax.f32 %v2194, %v1935
        %v2196 = vmax.f32 %v2195, %v1936
        %v2197 = vmax.f32 %v2196, %v1937
        %v2198 = vmax.f32 %v2197, %v1938
        %v2199 = vmax.f32 %v2198, %v1939
        %v2200 = vmax.f32 %v2199, %v1940
        %v2201 = vmax.f32 %v2200, %v1941
        %v2202 = vmax.f32 %v2201, %v1942
        %v2203 = vmax.f32 %v2202, %v1943
        %v2204 = vmax.f32 %v2203, %v1944
        %v2205 = vrot.slane %v2204, 4
        %v2206 = vmax.f32 %v2204, %v2205
        %v2207 = vrot.slane %v2206, 2
        %v2208 = vmax.f32 %v2206, %v2207
        %v2209 = vrot.slane %v2208, 1
        %v2210 = vmax.f32 %v2208, %v2209
        %v2211 = vmax.f32 %v1945, %v1946
        %v2212 = vmax.f32 %v2211, %v1947
        %v2213 = vmax.f32 %v2212, %v1948
        %v2214 = vmax.f32 %v2213, %v1949
        %v2215 = vmax.f32 %v2214, %v1950
        %v2216 = vmax.f32 %v2215, %v1951
        %v2217 = vmax.f32 %v2216, %v1952
        %v2218 = vmax.f32 %v2217, %v1953
        %v2219 = vmax.f32 %v2218, %v1954
        %v2220 = vmax.f32 %v2219, %v1955
        %v2221 = vmax.f32 %v2220, %v1956
        %v2222 = vmax.f32 %v2221, %v1957
        %v2223 = vmax.f32 %v2222, %v1958
        %v2224 = vmax.f32 %v2223, %v1959
        %v2225 = vmax.f32 %v2224, %v1960
        %v2226 = vrot.slane %v2225, 4
        %v2227 = vmax.f32 %v2225, %v2226
        %v2228 = vrot.slane %v2227, 2
        %v2229 = vmax.f32 %v2227, %v2228
        %v2230 = vrot.slane %v2229, 1
        %v2231 = vmax.f32 %v2229, %v2230
        %v2232 = vmax.f32 %v1961, %v1962
        %v2233 = vmax.f32 %v2232, %v1963
        %v2234 = vmax.f32 %v2233, %v1964
        %v2235 = vmax.f32 %v2234, %v1965
        %v2236 = vmax.f32 %v2235, %v1966
        %v2237 = vmax.f32 %v2236, %v1967
        %v2238 = vmax.f32 %v2237, %v1968
        %v2239 = vmax.f32 %v2238, %v1969
        %v2240 = vmax.f32 %v2239, %v1970
        %v2241 = vmax.f32 %v2240, %v1971
        %v2242 = vmax.f32 %v2241, %v1972
        %v2243 = vmax.f32 %v2242, %v1973
        %v2244 = vmax.f32 %v2243, %v1974
        %v2245 = vmax.f32 %v2244, %v1975
        %v2246 = vmax.f32 %v2245, %v1976
        %v2247 = vrot.slane %v2246, 4
        %v2248 = vmax.f32 %v2246, %v2247
        %v2249 = vrot.slane %v2248, 2
        %v2250 = vmax.f32 %v2248, %v2249
        %v2251 = vrot.slane %v2250, 1
        %v2252 = vmax.f32 %v2250, %v2251
        %v2253 = vmax.f32 %v1977, %v1978
        %v2254 = vmax.f32 %v2253, %v1979
        %v2255 = vmax.f32 %v2254, %v1980
        %v2256 = vmax.f32 %v2255, %v1981
        %v2257 = vmax.f32 %v2256, %v1982
        %v2258 = vmax.f32 %v2257, %v1983
        %v2259 = vmax.f32 %v2258, %v1984
        %v2260 = vmax.f32 %v2259, %v1985
        %v2261 = vmax.f32 %v2260, %v1986
        %v2262 = vmax.f32 %v2261, %v1987
        %v2263 = vmax.f32 %v2262, %v1988
        %v2264 = vmax.f32 %v2263, %v1989
        %v2265 = vmax.f32 %v2264, %v1990
        %v2266 = vmax.f32 %v2265, %v1991
        %v2267 = vmax.f32 %v2266, %v1992
        %v2268 = vrot.slane %v2267, 4
        %v2269 = vmax.f32 %v2267, %v2268
        %v2270 = vrot.slane %v2269, 2
        %v2271 = vmax.f32 %v2269, %v2270
        %v2272 = vrot.slane %v2271, 1
        %v2273 = vmax.f32 %v2271, %v2272
        %v2274 = vmax.f32 %v1993, %v1994
        %v2275 = vmax.f32 %v2274, %v1995
        %v2276 = vmax.f32 %v2275, %v1996
        %v2277 = vmax.f32 %v2276, %v1997
        %v2278 = vmax.f32 %v2277, %v1998
        %v2279 = vmax.f32 %v2278, %v1999
        %v2280 = vmax.f32 %v2279, %v2000
        %v2281 = vmax.f32 %v2280, %v2001
        %v2282 = vmax.f32 %v2281, %v2002
        %v2283 = vmax.f32 %v2282, %v2003
        %v2284 = vmax.f32 %v2283, %v2004
        %v2285 = vmax.f32 %v2284, %v2005
        %v2286 = vmax.f32 %v2285, %v2006
        %v2287 = vmax.f32 %v2286, %v2007
        %v2288 = vmax.f32 %v2287, %v2008
        %v2289 = vrot.slane %v2288, 4
        %v2290 = vmax.f32 %v2288, %v2289
        %v2291 = vrot.slane %v2290, 2
        %v2292 = vmax.f32 %v2290, %v2291
        %v2293 = vrot.slane %v2292, 1
        %v2294 = vmax.f32 %v2292, %v2293
        %v2295 = vmax.f32 %v2009, %v2010
        %v2296 = vmax.f32 %v2295, %v2011
        %v2297 = vmax.f32 %v2296, %v2012
        %v2298 = vmax.f32 %v2297, %v2013
        %v2299 = vmax.f32 %v2298, %v2014
        %v2300 = vmax.f32 %v2299, %v2015
        %v2301 = vmax.f32 %v2300, %v2016
        %v2302 = vmax.f32 %v2301, %v2017
        %v2303 = vmax.f32 %v2302, %v2018
        %v2304 = vmax.f32 %v2303, %v2019
        %v2305 = vmax.f32 %v2304, %v2020
        %v2306 = vmax.f32 %v2305, %v2021
        %v2307 = vmax.f32 %v2306, %v2022
        %v2308 = vmax.f32 %v2307, %v2023
        %v2309 = vmax.f32 %v2308, %v2024
        %v2310 = vrot.slane %v2309, 4
        %v2311 = vmax.f32 %v2309, %v2310
        %v2312 = vrot.slane %v2311, 2
        %v2313 = vmax.f32 %v2311, %v2312
        %v2314 = vrot.slane %v2313, 1
        %v2315 = vmax.f32 %v2313, %v2314
        %v2316 = vmax.f32 %v2025, %v2026
        %v2317 = vmax.f32 %v2316, %v2027
        %v2318 = vmax.f32 %v2317, %v2028
        %v2319 = vmax.f32 %v2318, %v2029
        %v2320 = vmax.f32 %v2319, %v2030
        %v2321 = vmax.f32 %v2320, %v2031
        %v2322 = vmax.f32 %v2321, %v2032
        %v2323 = vmax.f32 %v2322, %v2033
        %v2324 = vmax.f32 %v2323, %v2034
        %v2325 = vmax.f32 %v2324, %v2035
        %v2326 = vmax.f32 %v2325, %v2036
        %v2327 = vmax.f32 %v2326, %v2037
        %v2328 = vmax.f32 %v2327, %v2038
        %v2329 = vmax.f32 %v2328, %v2039
        %v2330 = vmax.f32 %v2329, %v2040
        %v2331 = vrot.slane %v2330, 4
        %v2332 = vmax.f32 %v2330, %v2331
        %v2333 = vrot.slane %v2332, 2
        %v2334 = vmax.f32 %v2332, %v2333
        %v2335 = vrot.slane %v2334, 1
        %v2336 = vmax.f32 %v2334, %v2335
        %v2337 = vmax.f32 %v2041, %v2042
        %v2338 = vmax.f32 %v2337, %v2043
        %v2339 = vmax.f32 %v2338, %v2044
        %v2340 = vmax.f32 %v2339, %v2045
        %v2341 = vmax.f32 %v2340, %v2046
        %v2342 = vmax.f32 %v2341, %v2047
        %v2343 = vmax.f32 %v2342, %v2048
        %v2344 = vmax.f32 %v2343, %v2049
        %v2345 = vmax.f32 %v2344, %v2050
        %v2346 = vmax.f32 %v2345, %v2051
        %v2347 = vmax.f32 %v2346, %v2052
        %v2348 = vmax.f32 %v2347, %v2053
        %v2349 = vmax.f32 %v2348, %v2054
        %v2350 = vmax.f32 %v2349, %v2055
        %v2351 = vmax.f32 %v2350, %v2056
        %v2352 = vrot.slane %v2351, 4
        %v2353 = vmax.f32 %v2351, %v2352
        %v2354 = vrot.slane %v2353, 2
        %v2355 = vmax.f32 %v2353, %v2354
        %v2356 = vrot.slane %v2355, 1
        %v2357 = vmax.f32 %v2355, %v2356
        %v2358 = vmax.f32 %v2057, %v2058
        %v2359 = vmax.f32 %v2358, %v2059
        %v2360 = vmax.f32 %v2359, %v2060
        %v2361 = vmax.f32 %v2360, %v2061
        %v2362 = vmax.f32 %v2361, %v2062
        %v2363 = vmax.f32 %v2362, %v2063
        %v2364 = vmax.f32 %v2363, %v2064
        %v2365 = vmax.f32 %v2364, %v2065
        %v2366 = vmax.f32 %v2365, %v2066
        %v2367 = vmax.f32 %v2366, %v2067
        %v2368 = vmax.f32 %v2367, %v2068
        %v2369 = vmax.f32 %v2368, %v2069
        %v2370 = vmax.f32 %v2369, %v2070
        %v2371 = vmax.f32 %v2370, %v2071
        %v2372 = vmax.f32 %v2371, %v2072
        %v2373 = vrot.slane %v2372, 4
        %v2374 = vmax.f32 %v2372, %v2373
        %v2375 = vrot.slane %v2374, 2
        %v2376 = vmax.f32 %v2374, %v2375
        %v2377 = vrot.slane %v2376, 1
        %v2378 = vmax.f32 %v2376, %v2377
        %v2379 = vmax.f32 %v2073, %v2074
        %v2380 = vmax.f32 %v2379, %v2075
        %v2381 = vmax.f32 %v2380, %v2076
        %v2382 = vmax.f32 %v2381, %v2077
        %v2383 = vmax.f32 %v2382, %v2078
        %v2384 = vmax.f32 %v2383, %v2079
        %v2385 = vmax.f32 %v2384, %v2080
        %v2386 = vmax.f32 %v2385, %v2081
        %v2387 = vmax.f32 %v2386, %v2082
        %v2388 = vmax.f32 %v2387, %v2083
        %v2389 = vmax.f32 %v2388, %v2084
        %v2390 = vmax.f32 %v2389, %v2085
        %v2391 = vmax.f32 %v2390, %v2086
        %v2392 = vmax.f32 %v2391, %v2087
        %v2393 = vmax.f32 %v2392, %v2088
        %v2394 = vrot.slane %v2393, 4
        %v2395 = vmax.f32 %v2393, %v2394
        %v2396 = vrot.slane %v2395, 2
        %v2397 = vmax.f32 %v2395, %v2396
        %v2398 = vrot.slane %v2397, 1
        %v2399 = vmax.f32 %v2397, %v2398
        %v2400 = vmax.f32 %v2089, %v2090
        %v2401 = vmax.f32 %v2400, %v2091
        %v2402 = vmax.f32 %v2401, %v2092
        %v2403 = vmax.f32 %v2402, %v2093
        %v2404 = vmax.f32 %v2403, %v2094
        %v2405 = vmax.f32 %v2404, %v2095
        %v2406 = vmax.f32 %v2405, %v2096
        %v2407 = vmax.f32 %v2406, %v2097
        %v2408 = vmax.f32 %v2407, %v2098
        %v2409 = vmax.f32 %v2408, %v2099
        %v2410 = vmax.f32 %v2409, %v2100
        %v2411 = vmax.f32 %v2410, %v2101
        %v2412 = vmax.f32 %v2411, %v2102
        %v2413 = vmax.f32 %v2412, %v2103
        %v2414 = vmax.f32 %v2413, %v2104
        %v2415 = vrot.slane %v2414, 4
        %v2416 = vmax.f32 %v2414, %v2415
        %v2417 = vrot.slane %v2416, 2
        %v2418 = vmax.f32 %v2416, %v2417
        %v2419 = vrot.slane %v2418, 1
        %v2420 = vmax.f32 %v2418, %v2419
        %v2421 = vmax.f32 %v2105, %v2106
        %v2422 = vmax.f32 %v2421, %v2107
        %v2423 = vmax.f32 %v2422, %v2108
        %v2424 = vmax.f32 %v2423, %v2109
        %v2425 = vmax.f32 %v2424, %v2110
        %v2426 = vmax.f32 %v2425, %v2111
        %v2427 = vmax.f32 %v2426, %v2112
        %v2428 = vmax.f32 %v2427, %v2113
        %v2429 = vmax.f32 %v2428, %v2114
        %v2430 = vmax.f32 %v2429, %v2115
        %v2431 = vmax.f32 %v2430, %v2116
        %v2432 = vmax.f32 %v2431, %v2117
        %v2433 = vmax.f32 %v2432, %v2118
        %v2434 = vmax.f32 %v2433, %v2119
        %v2435 = vmax.f32 %v2434, %v2120
        %v2436 = vrot.slane %v2435, 4
        %v2437 = vmax.f32 %v2435, %v2436
        %v2438 = vrot.slane %v2437, 2
        %v2439 = vmax.f32 %v2437, %v2438
        %v2440 = vrot.slane %v2439, 1
        %v2441 = vmax.f32 %v2439, %v2440
        %v2442 = vmax.f32 %v2121, %v2122
        %v2443 = vmax.f32 %v2442, %v2123
        %v2444 = vmax.f32 %v2443, %v2124
        %v2445 = vmax.f32 %v2444, %v2125
        %v2446 = vmax.f32 %v2445, %v2126
        %v2447 = vmax.f32 %v2446, %v2127
        %v2448 = vmax.f32 %v2447, %v2128
        %v2449 = vmax.f32 %v2448, %v2129
        %v2450 = vmax.f32 %v2449, %v2130
        %v2451 = vmax.f32 %v2450, %v2131
        %v2452 = vmax.f32 %v2451, %v2132
        %v2453 = vmax.f32 %v2452, %v2133
        %v2454 = vmax.f32 %v2453, %v2134
        %v2455 = vmax.f32 %v2454, %v2135
        %v2456 = vmax.f32 %v2455, %v2136
        %v2457 = vrot.slane %v2456, 4
        %v2458 = vmax.f32 %v2456, %v2457
        %v2459 = vrot.slane %v2458, 2
        %v2460 = vmax.f32 %v2458, %v2459
        %v2461 = vrot.slane %v2460, 1
        %v2462 = vmax.f32 %v2460, %v2461
        %v2463 = vmax.f32 %v2137, %v2138
        %v2464 = vmax.f32 %v2463, %v2139
        %v2465 = vmax.f32 %v2464, %v2140
        %v2466 = vmax.f32 %v2465, %v2141
        %v2467 = vmax.f32 %v2466, %v2142
        %v2468 = vmax.f32 %v2467, %v2143
        %v2469 = vmax.f32 %v2468, %v2144
        %v2470 = vmax.f32 %v2469, %v2145
        %v2471 = vmax.f32 %v2470, %v2146
        %v2472 = vmax.f32 %v2471, %v2147
        %v2473 = vmax.f32 %v2472, %v2148
        %v2474 = vmax.f32 %v2473, %v2149
        %v2475 = vmax.f32 %v2474, %v2150
        %v2476 = vmax.f32 %v2475, %v2151
        %v2477 = vmax.f32 %v2476, %v2152
        %v2478 = vrot.slane %v2477, 4
        %v2479 = vmax.f32 %v2477, %v2478
        %v2480 = vrot.slane %v2479, 2
        %v2481 = vmax.f32 %v2479, %v2480
        %v2482 = vrot.slane %v2481, 1
        %v2483 = vmax.f32 %v2481, %v2482
        %v2484 = vmax.f32 %v2153, %v2154
        %v2485 = vmax.f32 %v2484, %v2155
        %v2486 = vmax.f32 %v2485, %v2156
        %v2487 = vmax.f32 %v2486, %v2157
        %v2488 = vmax.f32 %v2487, %v2158
        %v2489 = vmax.f32 %v2488, %v2159
        %v2490 = vmax.f32 %v2489, %v2160
        %v2491 = vmax.f32 %v2490, %v2161
        %v2492 = vmax.f32 %v2491, %v2162
        %v2493 = vmax.f32 %v2492, %v2163
        %v2494 = vmax.f32 %v2493, %v2164
        %v2495 = vmax.f32 %v2494, %v2165
        %v2496 = vmax.f32 %v2495, %v2166
        %v2497 = vmax.f32 %v2496, %v2167
        %v2498 = vmax.f32 %v2497, %v2168
        %v2499 = vrot.slane %v2498, 4
        %v2500 = vmax.f32 %v2498, %v2499
        %v2501 = vrot.slane %v2500, 2
        %v2502 = vmax.f32 %v2500, %v2501
        %v2503 = vrot.slane %v2502, 1
        %v2504 = vmax.f32 %v2502, %v2503
        %v2505 = vmax.f32 %v2189, -3e+38
        %v2506 = vmax.f32 %v2210, -3e+38
        %v2507 = vmax.f32 %v2231, -3e+38
        %v2508 = vmax.f32 %v2252, -3e+38
        %v2509 = vmax.f32 %v2273, -3e+38
        %v2510 = vmax.f32 %v2294, -3e+38
        %v2511 = vmax.f32 %v2315, -3e+38
        %v2512 = vmax.f32 %v2336, -3e+38
        %v2513 = vmax.f32 %v2357, -3e+38
        %v2514 = vmax.f32 %v2378, -3e+38
        %v2515 = vmax.f32 %v2399, -3e+38
        %v2516 = vmax.f32 %v2420, -3e+38
        %v2517 = vmax.f32 %v2441, -3e+38
        %v2518 = vmax.f32 %v2462, -3e+38
        %v2519 = vmax.f32 %v2483, -3e+38
        %v2520 = vmax.f32 %v2504, -3e+38
        %vm2537 = vcmask 1041409
        %v2538 = vsel %vm2537, %v2506, %v2505
        %vm2539 = vcmask 1042434
        %v2540 = vsel %vm2539, %v2507, %v2538
        %vm2541 = vcmask 1043459
        %v2542 = vsel %vm2541, %v2508, %v2540
        %vm2543 = vcmask 1044484
        %v2544 = vsel %vm2543, %v2509, %v2542
        %vm2545 = vcmask 1045509
        %v2546 = vsel %vm2545, %v2510, %v2544
        %vm2547 = vcmask 1046534
        %v2548 = vsel %vm2547, %v2511, %v2546
        %vm2549 = vcmask 1047559
        %v2550 = vsel %vm2549, %v2512, %v2548
        %v2551 = vsel %vm2537, %v2514, %v2513
        %v2552 = vsel %vm2539, %v2515, %v2551
        %v2553 = vsel %vm2541, %v2516, %v2552
        %v2554 = vsel %vm2543, %v2517, %v2553
        %v2555 = vsel %vm2545, %v2518, %v2554
        %v2556 = vsel %vm2547, %v2519, %v2555
        %v2557 = vsel %vm2549, %v2520, %v2556
        %2560 = vrot.lane.b32.xlu0 %v2550, 96
        %v2561 = vpop.permute.xlu0 %2560
        %2562 = vrot.lane.b32.xlu0 %v2557, 96
        %v2563 = vpop.permute.xlu0 %2562
        %2566 = vrot.lane.b32.xlu0 %v2550, 64
        %v2567 = vpop.permute.xlu0 %2566
        %2568 = vrot.lane.b32.xlu0 %v2557, 64
        %v2569 = vpop.permute.xlu0 %2568
        %2572 = vrot.lane.b32.xlu0 %v2550, 32
        %v2573 = vpop.permute.xlu0 %2572
        %2574 = vrot.lane.b32.xlu0 %v2557, 32
        %v2575 = vpop.permute.xlu0 %2574
        %v2578 = vsel %vm662, 1, 0
        %v2579 = vsel %vm663, 1, 0
        %v2580 = vsel %vm664, 1, 0
        %v2581 = vsel %vm665, 1, 0
        %v2582 = vsel %vm666, 1, 0
        %v2583 = vsel %vm667, 1, 0
        %v2584 = vsel %vm668, 1, 0
        %v2585 = vsel %vm669, 1, 0
        %vm2586 = vcmp.eq.s32.totalorder %v2578, 1
        %vm2587 = vcmp.eq.s32.totalorder %v2579, 1
        %vm2588 = vcmp.eq.s32.totalorder %v2580, 1
        %vm2589 = vcmp.eq.s32.totalorder %v2581, 1
        %vm2590 = vcmp.eq.s32.totalorder %v2582, 1
        %vm2591 = vcmp.eq.s32.totalorder %v2583, 1
        %vm2592 = vcmp.eq.s32.totalorder %v2584, 1
        %vm2593 = vcmp.eq.s32.totalorder %v2585, 1
        %v2594 = vsel %vm2586, %v2550, 0.0
        %v2595 = vsel %vm2587, %v2557, 0.0
        %v2596 = vsel %vm2588, %v2561, 0.0
        %v2597 = vsel %vm2589, %v2563, 0.0
        %v2598 = vsel %vm2590, %v2567, 0.0
        %v2599 = vsel %vm2591, %v2569, 0.0
        %v2600 = vsel %vm2592, %v2573, 0.0
        %v2601 = vsel %vm2593, %v2575, 0.0
        %v2602 = vmul.f32 %v1168, %v2594
        %v2603 = vmul.f32 %v1171, %v2595
        %v2604 = vmul.f32 %v1174, %v2596
        %v2605 = vmul.f32 %v1177, %v2597
        %v2606 = vmul.f32 %v1180, %v2598
        %v2607 = vmul.f32 %v1183, %v2599
        %v2608 = vmul.f32 %v1186, %v2600
        %v2609 = vmul.f32 %v1189, %v2601
        %v2610 = vadd.f32 %v992, %v2602
        %v2611 = vadd.f32 %v993, %v2603
        %v2612 = vadd.f32 %v994, %v2604
        %v2613 = vadd.f32 %v995, %v2605
        %v2614 = vadd.f32 %v996, %v2606
        %v2615 = vadd.f32 %v997, %v2607
        %v2616 = vadd.f32 %v998, %v2608
        %v2617 = vadd.f32 %v999, %v2609
        %v2619 = vsel %vm1367, %v630, 0
        %v2622 = vsel %vm1367, %v631, 0
        %v2625 = vsel %vm1367, %v632, 0
        %v2628 = vsel %vm1367, %v633, 0
        %v2631 = vsel %vm1367, %v634, 0
        %v2634 = vsel %vm1367, %v635, 0
        %v2637 = vsel %vm1367, %v636, 0
        %v2640 = vsel %vm1367, %v637, 0
        %v2643 = vsel %vm1367, %v638, 0
        %v2646 = vsel %vm1367, %v639, 0
        %v2649 = vsel %vm1367, %v640, 0
        %v2652 = vsel %vm1367, %v641, 0
        %v2655 = vsel %vm1367, %v642, 0
        %v2658 = vsel %vm1367, %v643, 0
        %v2661 = vsel %vm1367, %v644, 0
        %v2664 = vsel %vm1367, %v645, 0
        %2666 = vmatpush.msra.mxu0 0.0
        %2667 = vmatpush.msra.mxu0 0.0
        %2668 = vmatpush.msra.mxu0 0.0
        %2669 = vmatpush.msra.mxu0 0.0
        %2670 = vmatpush.msra.mxu0 0.0
        %2671 = vmatpush.msra.mxu0 0.0
        %2672 = vmatpush.msra.mxu0 0.0
        %2673 = vmatpush.msra.mxu0 0.0
        %2674 = vmatpush.msra.mxu0 %v2617
        %2675 = vmatpush.msra.mxu0 %v2616
        %2676 = vmatpush.msra.mxu0 %v2615
        %2677 = vmatpush.msra.mxu0 %v2614
        %2678 = vmatpush.msra.mxu0 %v2613
        %2679 = vmatpush.msra.mxu0 %v2612
        %2680 = vmatpush.msra.mxu0 %v2611
        %2681 = vmatpush.msra.mxu0 %v2610
        %2682 = vmatmul.f32.gmra.mxu0 %v2619
        %v2683 = vpop.f32.mrf.mxu0
        %v2684 = vadd.f32 0.0, %v2683
        %2685 = vmatmul.f32.gmra.mxu0 %v2622
        %v2686 = vpop.f32.mrf.mxu0
        %v2687 = vadd.f32 0.0, %v2686
        %2688 = vmatmul.f32.gmra.mxu0 %v2625
        %v2689 = vpop.f32.mrf.mxu0
        %v2690 = vadd.f32 0.0, %v2689
        %2691 = vmatmul.f32.gmra.mxu0 %v2628
        %v2692 = vpop.f32.mrf.mxu0
        %v2693 = vadd.f32 0.0, %v2692
        %2694 = vmatmul.f32.gmra.mxu0 %v2631
        %v2695 = vpop.f32.mrf.mxu0
        %v2696 = vadd.f32 0.0, %v2695
        %2697 = vmatmul.f32.gmra.mxu0 %v2634
        %v2698 = vpop.f32.mrf.mxu0
        %v2699 = vadd.f32 0.0, %v2698
        %2700 = vmatmul.f32.gmra.mxu0 %v2637
        %v2701 = vpop.f32.mrf.mxu0
        %v2702 = vadd.f32 0.0, %v2701
        %2703 = vmatmul.f32.gmra.mxu0 %v2640
        %v2704 = vpop.f32.mrf.mxu0
        %v2705 = vadd.f32 0.0, %v2704
        %2706 = vmatmul.f32.gmra.mxu0 %v2643
        %v2707 = vpop.f32.mrf.mxu0
        %v2708 = vadd.f32 0.0, %v2707
        %2709 = vmatmul.f32.gmra.mxu0 %v2646
        %v2710 = vpop.f32.mrf.mxu0
        %v2711 = vadd.f32 0.0, %v2710
        %2712 = vmatmul.f32.gmra.mxu0 %v2649
        %v2713 = vpop.f32.mrf.mxu0
        %v2714 = vadd.f32 0.0, %v2713
        %2715 = vmatmul.f32.gmra.mxu0 %v2652
        %v2716 = vpop.f32.mrf.mxu0
        %v2717 = vadd.f32 0.0, %v2716
        %2718 = vmatmul.f32.gmra.mxu0 %v2655
        %v2719 = vpop.f32.mrf.mxu0
        %v2720 = vadd.f32 0.0, %v2719
        %2721 = vmatmul.f32.gmra.mxu0 %v2658
        %v2722 = vpop.f32.mrf.mxu0
        %v2723 = vadd.f32 0.0, %v2722
        %2724 = vmatmul.f32.gmra.mxu0 %v2661
        %v2725 = vpop.f32.mrf.mxu0
        %v2726 = vadd.f32 0.0, %v2725
        %2727 = vmatmul.f32.gmra.mxu0 %v2664
        %v2728 = vpop.f32.mrf.mxu0
        %v2729 = vadd.f32 0.0, %v2728
        %2730 = vdwg.mxu0
        %v2731 = vrot.slane %v1134, 1
        %v2732 = vrot.slane %v1135, 1
        %v2733 = vrot.slane %v1136, 1
        %v2734 = vrot.slane %v1137, 1
        %v2735 = vrot.slane %v1138, 1
        %v2736 = vrot.slane %v1139, 1
        %v2737 = vrot.slane %v1140, 1
        %v2738 = vrot.slane %v1141, 1
        %v2739 = vrot.slane %v1142, 1
        %v2740 = vrot.slane %v1143, 1
        %v2741 = vrot.slane %v1144, 1
        %v2742 = vrot.slane %v1145, 1
        %v2743 = vrot.slane %v1146, 1
        %v2744 = vrot.slane %v1147, 1
        %v2745 = vrot.slane %v1148, 1
        %v2746 = vrot.slane %v1149, 1
        %vm2747 = vcmp.lt.s32.totalorder %v692, 7
        %v2748 = vsel %vm2747, %v2745, %v2746
        %v2749 = vsel %vm2747, %v2744, %v2745
        %v2750 = vsel %vm2747, %v2743, %v2744
        %v2751 = vsel %vm2747, %v2742, %v2743
        %v2752 = vsel %vm2747, %v2741, %v2742
        %v2753 = vsel %vm2747, %v2740, %v2741
        %v2754 = vsel %vm2747, %v2739, %v2740
        %v2755 = vsel %vm2747, %v2738, %v2739
        %v2756 = vsel %vm2747, %v2737, %v2738
        %v2757 = vsel %vm2747, %v2736, %v2737
        %v2758 = vsel %vm2747, %v2735, %v2736
        %v2759 = vsel %vm2747, %v2734, %v2735
        %v2760 = vsel %vm2747, %v2733, %v2734
        %v2761 = vsel %vm2747, %v2732, %v2733
        %v2762 = vsel %vm2747, %v2731, %v2732
        %v2763 = vsel %vm2747, %v2746, %v2731
        %v2764 = vrot.slane %v1134, 7
        %v2765 = vrot.slane %v1135, 7
        %v2766 = vrot.slane %v1136, 7
        %v2767 = vrot.slane %v1137, 7
        %v2768 = vrot.slane %v1138, 7
        %v2769 = vrot.slane %v1139, 7
        %v2770 = vrot.slane %v1140, 7
        %v2771 = vrot.slane %v1141, 7
        %v2772 = vrot.slane %v1142, 7
        %v2773 = vrot.slane %v1143, 7
        %v2774 = vrot.slane %v1144, 7
        %v2775 = vrot.slane %v1145, 7
        %v2776 = vrot.slane %v1146, 7
        %v2777 = vrot.slane %v1147, 7
        %v2778 = vrot.slane %v1148, 7
        %v2779 = vrot.slane %v1149, 7
        %vm2780 = vcmp.lt.s32.totalorder %v692, 1
        %v2781 = vsel %vm2780, %v2778, %v2779
        %v2782 = vsel %vm2780, %v2777, %v2778
        %v2783 = vsel %vm2780, %v2776, %v2777
        %v2784 = vsel %vm2780, %v2775, %v2776
        %v2785 = vsel %vm2780, %v2774, %v2775
        %v2786 = vsel %vm2780, %v2773, %v2774
        %v2787 = vsel %vm2780, %v2772, %v2773
        %v2788 = vsel %vm2780, %v2771, %v2772
        %v2789 = vsel %vm2780, %v2770, %v2771
        %v2790 = vsel %vm2780, %v2769, %v2770
        %v2791 = vsel %vm2780, %v2768, %v2769
        %v2792 = vsel %vm2780, %v2767, %v2768
        %v2793 = vsel %vm2780, %v2766, %v2767
        %v2794 = vsel %vm2780, %v2765, %v2766
        %v2795 = vsel %vm2780, %v2764, %v2765
        %v2796 = vsel %vm2780, %v2779, %v2764
        %v2797 = vsel %vm900, %v2762, %v2796
        %v2798 = vsel %vm901, %v2761, %v2795
        %v2799 = vsel %vm902, %v2760, %v2794
        %v2800 = vsel %vm903, %v2759, %v2793
        %v2801 = vsel %vm904, %v2758, %v2792
        %v2802 = vsel %vm905, %v2757, %v2791
        %v2803 = vsel %vm906, %v2756, %v2790
        %v2804 = vsel %vm907, %v2755, %v2789
        %v2805 = vsel %vm908, %v2754, %v2788
        %v2806 = vsel %vm909, %v2753, %v2787
        %v2807 = vsel %vm910, %v2752, %v2786
        %v2808 = vsel %vm911, %v2751, %v2785
        %v2809 = vsel %vm912, %v2750, %v2784
        %v2810 = vsel %vm913, %v2749, %v2783
        %v2811 = vsel %vm914, %v2748, %v2782
        %v2812 = vsel %vm915, %v2763, %v2781
        %v2813 = vsub.f32 %v2684, %v2797
        %v2814 = vsub.f32 %v2687, %v2798
        %v2815 = vsub.f32 %v2690, %v2799
        %v2816 = vsub.f32 %v2693, %v2800
        %v2817 = vsub.f32 %v2696, %v2801
        %v2818 = vsub.f32 %v2699, %v2802
        %v2819 = vsub.f32 %v2702, %v2803
        %v2820 = vsub.f32 %v2705, %v2804
        %v2821 = vsub.f32 %v2708, %v2805
        %v2822 = vsub.f32 %v2711, %v2806
        %v2823 = vsub.f32 %v2714, %v2807
        %v2824 = vsub.f32 %v2717, %v2808
        %v2825 = vsub.f32 %v2720, %v2809
        %v2826 = vsub.f32 %v2723, %v2810
        %v2827 = vsub.f32 %v2726, %v2811
        %v2828 = vsub.f32 %v2729, %v2812
        %v2830 = vsel %vm1020, %v2813, 0
        %v2833 = vsel %vm1020, %v2814, 0
        %v2836 = vsel %vm1020, %v2815, 0
        %v2839 = vsel %vm1020, %v2816, 0
        %v2842 = vsel %vm1020, %v2817, 0
        %v2845 = vsel %vm1020, %v2818, 0
        %v2848 = vsel %vm1020, %v2819, 0
        %v2851 = vsel %vm1020, %v2820, 0
        %v2854 = vsel %vm1020, %v2821, 0
        %v2857 = vsel %vm1020, %v2822, 0
        %v2860 = vsel %vm1020, %v2823, 0
        %v2863 = vsel %vm1020, %v2824, 0
        %v2866 = vsel %vm1020, %v2825, 0
        %v2869 = vsel %vm1020, %v2826, 0
        %v2872 = vsel %vm1020, %v2827, 0
        %v2875 = vsel %vm1020, %v2828, 0
        %2877 = vmatpush.msra.mxu0 0.0
        %2878 = vmatpush.msra.mxu0 0.0
        %2879 = vmatpush.msra.mxu0 0.0
        %2880 = vmatpush.msra.mxu0 0.0
        %2881 = vmatpush.msra.mxu0 0.0
        %2882 = vmatpush.msra.mxu0 0.0
        %2883 = vmatpush.msra.mxu0 0.0
        %2884 = vmatpush.msra.mxu0 0.0
        %2885 = vmatpush.msra.mxu0 0.0
        %2886 = vmatpush.msra.mxu0 0.0
        %2887 = vmatpush.msra.mxu0 0.0
        %2888 = vmatpush.msra.mxu0 0.0
        %2889 = vmatpush.msra.mxu0 %v674
        %2890 = vmatpush.msra.mxu0 %v673
        %2891 = vmatpush.msra.mxu0 %v672
        %2892 = vmatpush.msra.mxu0 %v671
        %2893 = vmatmul.f32.gmra.mxu0 %v2830
        %v2894 = vpop.f32.mrf.mxu0
        %v2895 = vadd.f32 0.0, %v2894
        %2896 = vmatmul.f32.gmra.mxu0 %v2833
        %v2897 = vpop.f32.mrf.mxu0
        %v2898 = vadd.f32 0.0, %v2897
        %2899 = vmatmul.f32.gmra.mxu0 %v2836
        %v2900 = vpop.f32.mrf.mxu0
        %v2901 = vadd.f32 0.0, %v2900
        %2902 = vmatmul.f32.gmra.mxu0 %v2839
        %v2903 = vpop.f32.mrf.mxu0
        %v2904 = vadd.f32 0.0, %v2903
        %2905 = vmatmul.f32.gmra.mxu0 %v2842
        %v2906 = vpop.f32.mrf.mxu0
        %v2907 = vadd.f32 0.0, %v2906
        %2908 = vmatmul.f32.gmra.mxu0 %v2845
        %v2909 = vpop.f32.mrf.mxu0
        %v2910 = vadd.f32 0.0, %v2909
        %2911 = vmatmul.f32.gmra.mxu0 %v2848
        %v2912 = vpop.f32.mrf.mxu0
        %v2913 = vadd.f32 0.0, %v2912
        %2914 = vmatmul.f32.gmra.mxu0 %v2851
        %v2915 = vpop.f32.mrf.mxu0
        %v2916 = vadd.f32 0.0, %v2915
        %2917 = vmatmul.f32.gmra.mxu0 %v2854
        %v2918 = vpop.f32.mrf.mxu0
        %v2919 = vadd.f32 0.0, %v2918
        %2920 = vmatmul.f32.gmra.mxu0 %v2857
        %v2921 = vpop.f32.mrf.mxu0
        %v2922 = vadd.f32 0.0, %v2921
        %2923 = vmatmul.f32.gmra.mxu0 %v2860
        %v2924 = vpop.f32.mrf.mxu0
        %v2925 = vadd.f32 0.0, %v2924
        %2926 = vmatmul.f32.gmra.mxu0 %v2863
        %v2927 = vpop.f32.mrf.mxu0
        %v2928 = vadd.f32 0.0, %v2927
        %2929 = vmatmul.f32.gmra.mxu0 %v2866
        %v2930 = vpop.f32.mrf.mxu0
        %v2931 = vadd.f32 0.0, %v2930
        %2932 = vmatmul.f32.gmra.mxu0 %v2869
        %v2933 = vpop.f32.mrf.mxu0
        %v2934 = vadd.f32 0.0, %v2933
        %2935 = vmatmul.f32.gmra.mxu0 %v2872
        %v2936 = vpop.f32.mrf.mxu0
        %v2937 = vadd.f32 0.0, %v2936
        %2938 = vmatmul.f32.gmra.mxu0 %v2875
        %v2939 = vpop.f32.mrf.mxu0
        %v2940 = vadd.f32 0.0, %v2939
        %2941 = vdwg.mxu0
        %v2942 = vadd.f32 %v1134, %v2895
        %v2943 = vadd.f32 %v1135, %v2898
        %v2944 = vadd.f32 %v1136, %v2901
        %v2945 = vadd.f32 %v1137, %v2904
        %v2946 = vadd.f32 %v1138, %v2907
        %v2947 = vadd.f32 %v1139, %v2910
        %v2948 = vadd.f32 %v1140, %v2913
        %v2949 = vadd.f32 %v1141, %v2916
        %v2950 = vadd.f32 %v1142, %v2919
        %v2951 = vadd.f32 %v1143, %v2922
        %v2952 = vadd.f32 %v1144, %v2925
        %v2953 = vadd.f32 %v1145, %v2928
        %v2954 = vadd.f32 %v1146, %v2931
        %v2955 = vadd.f32 %v1147, %v2934
        %v2956 = vadd.f32 %v1148, %v2937
        %v2957 = vadd.f32 %v1149, %v2940
        %v2958 = vmax.f32 %v2942, 0.0
        %v2959 = vmax.f32 %v2943, 0.0
        %v2960 = vmax.f32 %v2944, 0.0
        %v2961 = vmax.f32 %v2945, 0.0
        %v2962 = vmax.f32 %v2946, 0.0
        %v2963 = vmax.f32 %v2947, 0.0
        %v2964 = vmax.f32 %v2948, 0.0
        %v2965 = vmax.f32 %v2949, 0.0
        %v2966 = vmax.f32 %v2950, 0.0
        %v2967 = vmax.f32 %v2951, 0.0
        %v2968 = vmax.f32 %v2952, 0.0
        %v2969 = vmax.f32 %v2953, 0.0
        %v2970 = vmax.f32 %v2954, 0.0
        %v2971 = vmax.f32 %v2955, 0.0
        %v2972 = vmax.f32 %v2956, 0.0
        %v2973 = vmax.f32 %v2957, 0.0
        %2974 = vmatpush.msra.mxu0 %v2973
        %2975 = vmatpush.msra.mxu0 %v2972
        %2976 = vmatpush.msra.mxu0 %v2971
        %2977 = vmatpush.msra.mxu0 %v2970
        %2978 = vmatpush.msra.mxu0 %v2969
        %2979 = vmatpush.msra.mxu0 %v2968
        %2980 = vmatpush.msra.mxu0 %v2967
        %2981 = vmatpush.msra.mxu0 %v2966
        %2982 = vmatpush.msra.mxu0 %v2965
        %2983 = vmatpush.msra.mxu0 %v2964
        %2984 = vmatpush.msra.mxu0 %v2963
        %2985 = vmatpush.msra.mxu0 %v2962
        %2986 = vmatpush.msra.mxu0 %v2961
        %2987 = vmatpush.msra.mxu0 %v2960
        %2988 = vmatpush.msra.mxu0 %v2959
        %2989 = vmatpush.msra.mxu0 %v2958
        %2990 = vmatmul.f32.gmra.mxu0 %v622
        %v2991 = vpop.f32.mrf.mxu0
        %v2992 = vadd.f32 0.0, %v2991
        %2993 = vmatmul.f32.gmra.mxu0 %v623
        %v2994 = vpop.f32.mrf.mxu0
        %v2995 = vadd.f32 0.0, %v2994
        %2996 = vmatmul.f32.gmra.mxu0 %v624
        %v2997 = vpop.f32.mrf.mxu0
        %v2998 = vadd.f32 0.0, %v2997
        %2999 = vmatmul.f32.gmra.mxu0 %v625
        %v3000 = vpop.f32.mrf.mxu0
        %v3001 = vadd.f32 0.0, %v3000
        %3002 = vmatmul.f32.gmra.mxu0 %v626
        %v3003 = vpop.f32.mrf.mxu0
        %v3004 = vadd.f32 0.0, %v3003
        %3005 = vmatmul.f32.gmra.mxu0 %v627
        %v3006 = vpop.f32.mrf.mxu0
        %v3007 = vadd.f32 0.0, %v3006
        %3008 = vmatmul.f32.gmra.mxu0 %v628
        %v3009 = vpop.f32.mrf.mxu0
        %v3010 = vadd.f32 0.0, %v3009
        %3011 = vmatmul.f32.gmra.mxu0 %v629
        %v3012 = vpop.f32.mrf.mxu0
        %v3013 = vadd.f32 0.0, %v3012
        %3014 = vdwg.mxu0
        %3031 = vrot.lane.b32.xlu0 %v2958, 32
        %v3032 = vpop.permute.xlu0 %3031
        %3033 = vrot.lane.b32.xlu0 %v2959, 32
        %v3034 = vpop.permute.xlu0 %3033
        %3035 = vrot.lane.b32.xlu0 %v2960, 32
        %v3036 = vpop.permute.xlu0 %3035
        %3037 = vrot.lane.b32.xlu0 %v2961, 32
        %v3038 = vpop.permute.xlu0 %3037
        %3039 = vrot.lane.b32.xlu0 %v2962, 32
        %v3040 = vpop.permute.xlu0 %3039
        %3041 = vrot.lane.b32.xlu0 %v2963, 32
        %v3042 = vpop.permute.xlu0 %3041
        %3043 = vrot.lane.b32.xlu0 %v2964, 32
        %v3044 = vpop.permute.xlu0 %3043
        %3045 = vrot.lane.b32.xlu0 %v2965, 32
        %v3046 = vpop.permute.xlu0 %3045
        %3047 = vrot.lane.b32.xlu0 %v2966, 32
        %v3048 = vpop.permute.xlu0 %3047
        %3049 = vrot.lane.b32.xlu0 %v2967, 32
        %v3050 = vpop.permute.xlu0 %3049
        %3051 = vrot.lane.b32.xlu0 %v2968, 32
        %v3052 = vpop.permute.xlu0 %3051
        %3053 = vrot.lane.b32.xlu0 %v2969, 32
        %v3054 = vpop.permute.xlu0 %3053
        %3055 = vrot.lane.b32.xlu0 %v2970, 32
        %v3056 = vpop.permute.xlu0 %3055
        %3057 = vrot.lane.b32.xlu0 %v2971, 32
        %v3058 = vpop.permute.xlu0 %3057
        %3059 = vrot.lane.b32.xlu0 %v2972, 32
        %v3060 = vpop.permute.xlu0 %3059
        %3061 = vrot.lane.b32.xlu0 %v2973, 32
        %v3062 = vpop.permute.xlu0 %3061
        %3079 = vrot.lane.b32.xlu0 %v2958, 64
        %v3080 = vpop.permute.xlu0 %3079
        %3081 = vrot.lane.b32.xlu0 %v2959, 64
        %v3082 = vpop.permute.xlu0 %3081
        %3083 = vrot.lane.b32.xlu0 %v2960, 64
        %v3084 = vpop.permute.xlu0 %3083
        %3085 = vrot.lane.b32.xlu0 %v2961, 64
        %v3086 = vpop.permute.xlu0 %3085
        %3087 = vrot.lane.b32.xlu0 %v2962, 64
        %v3088 = vpop.permute.xlu0 %3087
        %3089 = vrot.lane.b32.xlu0 %v2963, 64
        %v3090 = vpop.permute.xlu0 %3089
        %3091 = vrot.lane.b32.xlu0 %v2964, 64
        %v3092 = vpop.permute.xlu0 %3091
        %3093 = vrot.lane.b32.xlu0 %v2965, 64
        %v3094 = vpop.permute.xlu0 %3093
        %3095 = vrot.lane.b32.xlu0 %v2966, 64
        %v3096 = vpop.permute.xlu0 %3095
        %3097 = vrot.lane.b32.xlu0 %v2967, 64
        %v3098 = vpop.permute.xlu0 %3097
        %3099 = vrot.lane.b32.xlu0 %v2968, 64
        %v3100 = vpop.permute.xlu0 %3099
        %3101 = vrot.lane.b32.xlu0 %v2969, 64
        %v3102 = vpop.permute.xlu0 %3101
        %3103 = vrot.lane.b32.xlu0 %v2970, 64
        %v3104 = vpop.permute.xlu0 %3103
        %3105 = vrot.lane.b32.xlu0 %v2971, 64
        %v3106 = vpop.permute.xlu0 %3105
        %3107 = vrot.lane.b32.xlu0 %v2972, 64
        %v3108 = vpop.permute.xlu0 %3107
        %3109 = vrot.lane.b32.xlu0 %v2973, 64
        %v3110 = vpop.permute.xlu0 %3109
        %3127 = vrot.lane.b32.xlu0 %v2958, 96
        %v3128 = vpop.permute.xlu0 %3127
        %3129 = vrot.lane.b32.xlu0 %v2959, 96
        %v3130 = vpop.permute.xlu0 %3129
        %3131 = vrot.lane.b32.xlu0 %v2960, 96
        %v3132 = vpop.permute.xlu0 %3131
        %3133 = vrot.lane.b32.xlu0 %v2961, 96
        %v3134 = vpop.permute.xlu0 %3133
        %3135 = vrot.lane.b32.xlu0 %v2962, 96
        %v3136 = vpop.permute.xlu0 %3135
        %3137 = vrot.lane.b32.xlu0 %v2963, 96
        %v3138 = vpop.permute.xlu0 %3137
        %3139 = vrot.lane.b32.xlu0 %v2964, 96
        %v3140 = vpop.permute.xlu0 %3139
        %3141 = vrot.lane.b32.xlu0 %v2965, 96
        %v3142 = vpop.permute.xlu0 %3141
        %3143 = vrot.lane.b32.xlu0 %v2966, 96
        %v3144 = vpop.permute.xlu0 %3143
        %3145 = vrot.lane.b32.xlu0 %v2967, 96
        %v3146 = vpop.permute.xlu0 %3145
        %3147 = vrot.lane.b32.xlu0 %v2968, 96
        %v3148 = vpop.permute.xlu0 %3147
        %3149 = vrot.lane.b32.xlu0 %v2969, 96
        %v3150 = vpop.permute.xlu0 %3149
        %3151 = vrot.lane.b32.xlu0 %v2970, 96
        %v3152 = vpop.permute.xlu0 %3151
        %3153 = vrot.lane.b32.xlu0 %v2971, 96
        %v3154 = vpop.permute.xlu0 %3153
        %3155 = vrot.lane.b32.xlu0 %v2972, 96
        %v3156 = vpop.permute.xlu0 %3155
        %3157 = vrot.lane.b32.xlu0 %v2973, 96
        %v3158 = vpop.permute.xlu0 %3157
        %v3175 = vsel %vm1020, %v2958, %v3032
        %v3176 = vsel %vm1020, %v2959, %v3034
        %v3177 = vsel %vm1020, %v2960, %v3036
        %v3178 = vsel %vm1020, %v2961, %v3038
        %v3179 = vsel %vm1020, %v2962, %v3040
        %v3180 = vsel %vm1020, %v2963, %v3042
        %v3181 = vsel %vm1020, %v2964, %v3044
        %v3182 = vsel %vm1020, %v2965, %v3046
        %v3183 = vsel %vm1020, %v2966, %v3048
        %v3184 = vsel %vm1020, %v2967, %v3050
        %v3185 = vsel %vm1020, %v2968, %v3052
        %v3186 = vsel %vm1020, %v2969, %v3054
        %v3187 = vsel %vm1020, %v2970, %v3056
        %v3188 = vsel %vm1020, %v2971, %v3058
        %v3189 = vsel %vm1020, %v2972, %v3060
        %v3190 = vsel %vm1020, %v2973, %v3062
        %v3191 = vsel %vm1367, %v3175, %v3080
        %v3192 = vsel %vm1367, %v3176, %v3082
        %v3193 = vsel %vm1367, %v3177, %v3084
        %v3194 = vsel %vm1367, %v3178, %v3086
        %v3195 = vsel %vm1367, %v3179, %v3088
        %v3196 = vsel %vm1367, %v3180, %v3090
        %v3197 = vsel %vm1367, %v3181, %v3092
        %v3198 = vsel %vm1367, %v3182, %v3094
        %v3199 = vsel %vm1367, %v3183, %v3096
        %v3200 = vsel %vm1367, %v3184, %v3098
        %v3201 = vsel %vm1367, %v3185, %v3100
        %v3202 = vsel %vm1367, %v3186, %v3102
        %v3203 = vsel %vm1367, %v3187, %v3104
        %v3204 = vsel %vm1367, %v3188, %v3106
        %v3205 = vsel %vm1367, %v3189, %v3108
        %v3206 = vsel %vm1367, %v3190, %v3110
        %v3207 = vsel %vm1384, %v3191, %v3128
        %v3208 = vsel %vm1384, %v3192, %v3130
        %v3209 = vsel %vm1384, %v3193, %v3132
        %v3210 = vsel %vm1384, %v3194, %v3134
        %v3211 = vsel %vm1384, %v3195, %v3136
        %v3212 = vsel %vm1384, %v3196, %v3138
        %v3213 = vsel %vm1384, %v3197, %v3140
        %v3214 = vsel %vm1384, %v3198, %v3142
        %v3215 = vsel %vm1384, %v3199, %v3144
        %v3216 = vsel %vm1384, %v3200, %v3146
        %v3217 = vsel %vm1384, %v3201, %v3148
        %v3218 = vsel %vm1384, %v3202, %v3150
        %v3219 = vsel %vm1384, %v3203, %v3152
        %v3220 = vsel %vm1384, %v3204, %v3154
        %v3221 = vsel %vm1384, %v3205, %v3156
        %v3222 = vsel %vm1384, %v3206, %v3158
        %v3223 = vsel %vm1657, %v3207, -3e+38
        %v3224 = vsel %vm1658, %v3208, -3e+38
        %v3225 = vsel %vm1659, %v3209, -3e+38
        %v3226 = vsel %vm1660, %v3210, -3e+38
        %v3227 = vsel %vm1661, %v3211, -3e+38
        %v3228 = vsel %vm1662, %v3212, -3e+38
        %v3229 = vsel %vm1663, %v3213, -3e+38
        %v3230 = vsel %vm1664, %v3214, -3e+38
        %v3231 = vsel %vm1665, %v3215, -3e+38
        %v3232 = vsel %vm1666, %v3216, -3e+38
        %v3233 = vsel %vm1667, %v3217, -3e+38
        %v3234 = vsel %vm1668, %v3218, -3e+38
        %v3235 = vsel %vm1669, %v3219, -3e+38
        %v3236 = vsel %vm1670, %v3220, -3e+38
        %v3237 = vsel %vm1671, %v3221, -3e+38
        %v3238 = vsel %vm1672, %v3222, -3e+38
        %v3239 = vsel %vm1673, %v3207, -3e+38
        %v3240 = vsel %vm1674, %v3208, -3e+38
        %v3241 = vsel %vm1675, %v3209, -3e+38
        %v3242 = vsel %vm1676, %v3210, -3e+38
        %v3243 = vsel %vm1677, %v3211, -3e+38
        %v3244 = vsel %vm1678, %v3212, -3e+38
        %v3245 = vsel %vm1679, %v3213, -3e+38
        %v3246 = vsel %vm1680, %v3214, -3e+38
        %v3247 = vsel %vm1681, %v3215, -3e+38
        %v3248 = vsel %vm1682, %v3216, -3e+38
        %v3249 = vsel %vm1683, %v3217, -3e+38
        %v3250 = vsel %vm1684, %v3218, -3e+38
        %v3251 = vsel %vm1685, %v3219, -3e+38
        %v3252 = vsel %vm1686, %v3220, -3e+38
        %v3253 = vsel %vm1687, %v3221, -3e+38
        %v3254 = vsel %vm1688, %v3222, -3e+38
        %v3255 = vsel %vm1689, %v3207, -3e+38
        %v3256 = vsel %vm1690, %v3208, -3e+38
        %v3257 = vsel %vm1691, %v3209, -3e+38
        %v3258 = vsel %vm1692, %v3210, -3e+38
        %v3259 = vsel %vm1693, %v3211, -3e+38
        %v3260 = vsel %vm1694, %v3212, -3e+38
        %v3261 = vsel %vm1695, %v3213, -3e+38
        %v3262 = vsel %vm1696, %v3214, -3e+38
        %v3263 = vsel %vm1697, %v3215, -3e+38
        %v3264 = vsel %vm1698, %v3216, -3e+38
        %v3265 = vsel %vm1699, %v3217, -3e+38
        %v3266 = vsel %vm1700, %v3218, -3e+38
        %v3267 = vsel %vm1701, %v3219, -3e+38
        %v3268 = vsel %vm1702, %v3220, -3e+38
        %v3269 = vsel %vm1703, %v3221, -3e+38
        %v3270 = vsel %vm1704, %v3222, -3e+38
        %v3271 = vsel %vm1705, %v3207, -3e+38
        %v3272 = vsel %vm1706, %v3208, -3e+38
        %v3273 = vsel %vm1707, %v3209, -3e+38
        %v3274 = vsel %vm1708, %v3210, -3e+38
        %v3275 = vsel %vm1709, %v3211, -3e+38
        %v3276 = vsel %vm1710, %v3212, -3e+38
        %v3277 = vsel %vm1711, %v3213, -3e+38
        %v3278 = vsel %vm1712, %v3214, -3e+38
        %v3279 = vsel %vm1713, %v3215, -3e+38
        %v3280 = vsel %vm1714, %v3216, -3e+38
        %v3281 = vsel %vm1715, %v3217, -3e+38
        %v3282 = vsel %vm1716, %v3218, -3e+38
        %v3283 = vsel %vm1717, %v3219, -3e+38
        %v3284 = vsel %vm1718, %v3220, -3e+38
        %v3285 = vsel %vm1719, %v3221, -3e+38
        %v3286 = vsel %vm1720, %v3222, -3e+38
        %v3287 = vsel %vm1721, %v3207, -3e+38
        %v3288 = vsel %vm1722, %v3208, -3e+38
        %v3289 = vsel %vm1723, %v3209, -3e+38
        %v3290 = vsel %vm1724, %v3210, -3e+38
        %v3291 = vsel %vm1725, %v3211, -3e+38
        %v3292 = vsel %vm1726, %v3212, -3e+38
        %v3293 = vsel %vm1727, %v3213, -3e+38
        %v3294 = vsel %vm1728, %v3214, -3e+38
        %v3295 = vsel %vm1729, %v3215, -3e+38
        %v3296 = vsel %vm1730, %v3216, -3e+38
        %v3297 = vsel %vm1731, %v3217, -3e+38
        %v3298 = vsel %vm1732, %v3218, -3e+38
        %v3299 = vsel %vm1733, %v3219, -3e+38
        %v3300 = vsel %vm1734, %v3220, -3e+38
        %v3301 = vsel %vm1735, %v3221, -3e+38
        %v3302 = vsel %vm1736, %v3222, -3e+38
        %v3303 = vsel %vm1737, %v3207, -3e+38
        %v3304 = vsel %vm1738, %v3208, -3e+38
        %v3305 = vsel %vm1739, %v3209, -3e+38
        %v3306 = vsel %vm1740, %v3210, -3e+38
        %v3307 = vsel %vm1741, %v3211, -3e+38
        %v3308 = vsel %vm1742, %v3212, -3e+38
        %v3309 = vsel %vm1743, %v3213, -3e+38
        %v3310 = vsel %vm1744, %v3214, -3e+38
        %v3311 = vsel %vm1745, %v3215, -3e+38
        %v3312 = vsel %vm1746, %v3216, -3e+38
        %v3313 = vsel %vm1747, %v3217, -3e+38
        %v3314 = vsel %vm1748, %v3218, -3e+38
        %v3315 = vsel %vm1749, %v3219, -3e+38
        %v3316 = vsel %vm1750, %v3220, -3e+38
        %v3317 = vsel %vm1751, %v3221, -3e+38
        %v3318 = vsel %vm1752, %v3222, -3e+38
        %v3319 = vsel %vm1753, %v3207, -3e+38
        %v3320 = vsel %vm1754, %v3208, -3e+38
        %v3321 = vsel %vm1755, %v3209, -3e+38
        %v3322 = vsel %vm1756, %v3210, -3e+38
        %v3323 = vsel %vm1757, %v3211, -3e+38
        %v3324 = vsel %vm1758, %v3212, -3e+38
        %v3325 = vsel %vm1759, %v3213, -3e+38
        %v3326 = vsel %vm1760, %v3214, -3e+38
        %v3327 = vsel %vm1761, %v3215, -3e+38
        %v3328 = vsel %vm1762, %v3216, -3e+38
        %v3329 = vsel %vm1763, %v3217, -3e+38
        %v3330 = vsel %vm1764, %v3218, -3e+38
        %v3331 = vsel %vm1765, %v3219, -3e+38
        %v3332 = vsel %vm1766, %v3220, -3e+38
        %v3333 = vsel %vm1767, %v3221, -3e+38
        %v3334 = vsel %vm1768, %v3222, -3e+38
        %v3335 = vsel %vm1769, %v3207, -3e+38
        %v3336 = vsel %vm1770, %v3208, -3e+38
        %v3337 = vsel %vm1771, %v3209, -3e+38
        %v3338 = vsel %vm1772, %v3210, -3e+38
        %v3339 = vsel %vm1773, %v3211, -3e+38
        %v3340 = vsel %vm1774, %v3212, -3e+38
        %v3341 = vsel %vm1775, %v3213, -3e+38
        %v3342 = vsel %vm1776, %v3214, -3e+38
        %v3343 = vsel %vm1777, %v3215, -3e+38
        %v3344 = vsel %vm1778, %v3216, -3e+38
        %v3345 = vsel %vm1779, %v3217, -3e+38
        %v3346 = vsel %vm1780, %v3218, -3e+38
        %v3347 = vsel %vm1781, %v3219, -3e+38
        %v3348 = vsel %vm1782, %v3220, -3e+38
        %v3349 = vsel %vm1783, %v3221, -3e+38
        %v3350 = vsel %vm1784, %v3222, -3e+38
        %v3351 = vsel %vm1785, %v3207, -3e+38
        %v3352 = vsel %vm1786, %v3208, -3e+38
        %v3353 = vsel %vm1787, %v3209, -3e+38
        %v3354 = vsel %vm1788, %v3210, -3e+38
        %v3355 = vsel %vm1789, %v3211, -3e+38
        %v3356 = vsel %vm1790, %v3212, -3e+38
        %v3357 = vsel %vm1791, %v3213, -3e+38
        %v3358 = vsel %vm1792, %v3214, -3e+38
        %v3359 = vsel %vm1793, %v3215, -3e+38
        %v3360 = vsel %vm1794, %v3216, -3e+38
        %v3361 = vsel %vm1795, %v3217, -3e+38
        %v3362 = vsel %vm1796, %v3218, -3e+38
        %v3363 = vsel %vm1797, %v3219, -3e+38
        %v3364 = vsel %vm1798, %v3220, -3e+38
        %v3365 = vsel %vm1799, %v3221, -3e+38
        %v3366 = vsel %vm1800, %v3222, -3e+38
        %v3367 = vsel %vm1801, %v3207, -3e+38
        %v3368 = vsel %vm1802, %v3208, -3e+38
        %v3369 = vsel %vm1803, %v3209, -3e+38
        %v3370 = vsel %vm1804, %v3210, -3e+38
        %v3371 = vsel %vm1805, %v3211, -3e+38
        %v3372 = vsel %vm1806, %v3212, -3e+38
        %v3373 = vsel %vm1807, %v3213, -3e+38
        %v3374 = vsel %vm1808, %v3214, -3e+38
        %v3375 = vsel %vm1809, %v3215, -3e+38
        %v3376 = vsel %vm1810, %v3216, -3e+38
        %v3377 = vsel %vm1811, %v3217, -3e+38
        %v3378 = vsel %vm1812, %v3218, -3e+38
        %v3379 = vsel %vm1813, %v3219, -3e+38
        %v3380 = vsel %vm1814, %v3220, -3e+38
        %v3381 = vsel %vm1815, %v3221, -3e+38
        %v3382 = vsel %vm1816, %v3222, -3e+38
        %v3383 = vsel %vm1817, %v3207, -3e+38
        %v3384 = vsel %vm1818, %v3208, -3e+38
        %v3385 = vsel %vm1819, %v3209, -3e+38
        %v3386 = vsel %vm1820, %v3210, -3e+38
        %v3387 = vsel %vm1821, %v3211, -3e+38
        %v3388 = vsel %vm1822, %v3212, -3e+38
        %v3389 = vsel %vm1823, %v3213, -3e+38
        %v3390 = vsel %vm1824, %v3214, -3e+38
        %v3391 = vsel %vm1825, %v3215, -3e+38
        %v3392 = vsel %vm1826, %v3216, -3e+38
        %v3393 = vsel %vm1827, %v3217, -3e+38
        %v3394 = vsel %vm1828, %v3218, -3e+38
        %v3395 = vsel %vm1829, %v3219, -3e+38
        %v3396 = vsel %vm1830, %v3220, -3e+38
        %v3397 = vsel %vm1831, %v3221, -3e+38
        %v3398 = vsel %vm1832, %v3222, -3e+38
        %v3399 = vsel %vm1833, %v3207, -3e+38
        %v3400 = vsel %vm1834, %v3208, -3e+38
        %v3401 = vsel %vm1835, %v3209, -3e+38
        %v3402 = vsel %vm1836, %v3210, -3e+38
        %v3403 = vsel %vm1837, %v3211, -3e+38
        %v3404 = vsel %vm1838, %v3212, -3e+38
        %v3405 = vsel %vm1839, %v3213, -3e+38
        %v3406 = vsel %vm1840, %v3214, -3e+38
        %v3407 = vsel %vm1841, %v3215, -3e+38
        %v3408 = vsel %vm1842, %v3216, -3e+38
        %v3409 = vsel %vm1843, %v3217, -3e+38
        %v3410 = vsel %vm1844, %v3218, -3e+38
        %v3411 = vsel %vm1845, %v3219, -3e+38
        %v3412 = vsel %vm1846, %v3220, -3e+38
        %v3413 = vsel %vm1847, %v3221, -3e+38
        %v3414 = vsel %vm1848, %v3222, -3e+38
        %v3415 = vsel %vm1849, %v3207, -3e+38
        %v3416 = vsel %vm1850, %v3208, -3e+38
        %v3417 = vsel %vm1851, %v3209, -3e+38
        %v3418 = vsel %vm1852, %v3210, -3e+38
        %v3419 = vsel %vm1853, %v3211, -3e+38
        %v3420 = vsel %vm1854, %v3212, -3e+38
        %v3421 = vsel %vm1855, %v3213, -3e+38
        %v3422 = vsel %vm1856, %v3214, -3e+38
        %v3423 = vsel %vm1857, %v3215, -3e+38
        %v3424 = vsel %vm1858, %v3216, -3e+38
        %v3425 = vsel %vm1859, %v3217, -3e+38
        %v3426 = vsel %vm1860, %v3218, -3e+38
        %v3427 = vsel %vm1861, %v3219, -3e+38
        %v3428 = vsel %vm1862, %v3220, -3e+38
        %v3429 = vsel %vm1863, %v3221, -3e+38
        %v3430 = vsel %vm1864, %v3222, -3e+38
        %v3431 = vsel %vm1865, %v3207, -3e+38
        %v3432 = vsel %vm1866, %v3208, -3e+38
        %v3433 = vsel %vm1867, %v3209, -3e+38
        %v3434 = vsel %vm1868, %v3210, -3e+38
        %v3435 = vsel %vm1869, %v3211, -3e+38
        %v3436 = vsel %vm1870, %v3212, -3e+38
        %v3437 = vsel %vm1871, %v3213, -3e+38
        %v3438 = vsel %vm1872, %v3214, -3e+38
        %v3439 = vsel %vm1873, %v3215, -3e+38
        %v3440 = vsel %vm1874, %v3216, -3e+38
        %v3441 = vsel %vm1875, %v3217, -3e+38
        %v3442 = vsel %vm1876, %v3218, -3e+38
        %v3443 = vsel %vm1877, %v3219, -3e+38
        %v3444 = vsel %vm1878, %v3220, -3e+38
        %v3445 = vsel %vm1879, %v3221, -3e+38
        %v3446 = vsel %vm1880, %v3222, -3e+38
        %v3447 = vsel %vm1881, %v3207, -3e+38
        %v3448 = vsel %vm1882, %v3208, -3e+38
        %v3449 = vsel %vm1883, %v3209, -3e+38
        %v3450 = vsel %vm1884, %v3210, -3e+38
        %v3451 = vsel %vm1885, %v3211, -3e+38
        %v3452 = vsel %vm1886, %v3212, -3e+38
        %v3453 = vsel %vm1887, %v3213, -3e+38
        %v3454 = vsel %vm1888, %v3214, -3e+38
        %v3455 = vsel %vm1889, %v3215, -3e+38
        %v3456 = vsel %vm1890, %v3216, -3e+38
        %v3457 = vsel %vm1891, %v3217, -3e+38
        %v3458 = vsel %vm1892, %v3218, -3e+38
        %v3459 = vsel %vm1893, %v3219, -3e+38
        %v3460 = vsel %vm1894, %v3220, -3e+38
        %v3461 = vsel %vm1895, %v3221, -3e+38
        %v3462 = vsel %vm1896, %v3222, -3e+38
        %v3463 = vsel %vm1897, %v3207, -3e+38
        %v3464 = vsel %vm1898, %v3208, -3e+38
        %v3465 = vsel %vm1899, %v3209, -3e+38
        %v3466 = vsel %vm1900, %v3210, -3e+38
        %v3467 = vsel %vm1901, %v3211, -3e+38
        %v3468 = vsel %vm1902, %v3212, -3e+38
        %v3469 = vsel %vm1903, %v3213, -3e+38
        %v3470 = vsel %vm1904, %v3214, -3e+38
        %v3471 = vsel %vm1905, %v3215, -3e+38
        %v3472 = vsel %vm1906, %v3216, -3e+38
        %v3473 = vsel %vm1907, %v3217, -3e+38
        %v3474 = vsel %vm1908, %v3218, -3e+38
        %v3475 = vsel %vm1909, %v3219, -3e+38
        %v3476 = vsel %vm1910, %v3220, -3e+38
        %v3477 = vsel %vm1911, %v3221, -3e+38
        %v3478 = vsel %vm1912, %v3222, -3e+38
        %v3479 = vmax.f32 %v3223, %v3224
        %v3480 = vmax.f32 %v3479, %v3225
        %v3481 = vmax.f32 %v3480, %v3226
        %v3482 = vmax.f32 %v3481, %v3227
        %v3483 = vmax.f32 %v3482, %v3228
        %v3484 = vmax.f32 %v3483, %v3229
        %v3485 = vmax.f32 %v3484, %v3230
        %v3486 = vmax.f32 %v3485, %v3231
        %v3487 = vmax.f32 %v3486, %v3232
        %v3488 = vmax.f32 %v3487, %v3233
        %v3489 = vmax.f32 %v3488, %v3234
        %v3490 = vmax.f32 %v3489, %v3235
        %v3491 = vmax.f32 %v3490, %v3236
        %v3492 = vmax.f32 %v3491, %v3237
        %v3493 = vmax.f32 %v3492, %v3238
        %v3494 = vrot.slane %v3493, 4
        %v3495 = vmax.f32 %v3493, %v3494
        %v3496 = vrot.slane %v3495, 2
        %v3497 = vmax.f32 %v3495, %v3496
        %v3498 = vrot.slane %v3497, 1
        %v3499 = vmax.f32 %v3497, %v3498
        %v3500 = vmax.f32 %v3239, %v3240
        %v3501 = vmax.f32 %v3500, %v3241
        %v3502 = vmax.f32 %v3501, %v3242
        %v3503 = vmax.f32 %v3502, %v3243
        %v3504 = vmax.f32 %v3503, %v3244
        %v3505 = vmax.f32 %v3504, %v3245
        %v3506 = vmax.f32 %v3505, %v3246
        %v3507 = vmax.f32 %v3506, %v3247
        %v3508 = vmax.f32 %v3507, %v3248
        %v3509 = vmax.f32 %v3508, %v3249
        %v3510 = vmax.f32 %v3509, %v3250
        %v3511 = vmax.f32 %v3510, %v3251
        %v3512 = vmax.f32 %v3511, %v3252
        %v3513 = vmax.f32 %v3512, %v3253
        %v3514 = vmax.f32 %v3513, %v3254
        %v3515 = vrot.slane %v3514, 4
        %v3516 = vmax.f32 %v3514, %v3515
        %v3517 = vrot.slane %v3516, 2
        %v3518 = vmax.f32 %v3516, %v3517
        %v3519 = vrot.slane %v3518, 1
        %v3520 = vmax.f32 %v3518, %v3519
        %v3521 = vmax.f32 %v3255, %v3256
        %v3522 = vmax.f32 %v3521, %v3257
        %v3523 = vmax.f32 %v3522, %v3258
        %v3524 = vmax.f32 %v3523, %v3259
        %v3525 = vmax.f32 %v3524, %v3260
        %v3526 = vmax.f32 %v3525, %v3261
        %v3527 = vmax.f32 %v3526, %v3262
        %v3528 = vmax.f32 %v3527, %v3263
        %v3529 = vmax.f32 %v3528, %v3264
        %v3530 = vmax.f32 %v3529, %v3265
        %v3531 = vmax.f32 %v3530, %v3266
        %v3532 = vmax.f32 %v3531, %v3267
        %v3533 = vmax.f32 %v3532, %v3268
        %v3534 = vmax.f32 %v3533, %v3269
        %v3535 = vmax.f32 %v3534, %v3270
        %v3536 = vrot.slane %v3535, 4
        %v3537 = vmax.f32 %v3535, %v3536
        %v3538 = vrot.slane %v3537, 2
        %v3539 = vmax.f32 %v3537, %v3538
        %v3540 = vrot.slane %v3539, 1
        %v3541 = vmax.f32 %v3539, %v3540
        %v3542 = vmax.f32 %v3271, %v3272
        %v3543 = vmax.f32 %v3542, %v3273
        %v3544 = vmax.f32 %v3543, %v3274
        %v3545 = vmax.f32 %v3544, %v3275
        %v3546 = vmax.f32 %v3545, %v3276
        %v3547 = vmax.f32 %v3546, %v3277
        %v3548 = vmax.f32 %v3547, %v3278
        %v3549 = vmax.f32 %v3548, %v3279
        %v3550 = vmax.f32 %v3549, %v3280
        %v3551 = vmax.f32 %v3550, %v3281
        %v3552 = vmax.f32 %v3551, %v3282
        %v3553 = vmax.f32 %v3552, %v3283
        %v3554 = vmax.f32 %v3553, %v3284
        %v3555 = vmax.f32 %v3554, %v3285
        %v3556 = vmax.f32 %v3555, %v3286
        %v3557 = vrot.slane %v3556, 4
        %v3558 = vmax.f32 %v3556, %v3557
        %v3559 = vrot.slane %v3558, 2
        %v3560 = vmax.f32 %v3558, %v3559
        %v3561 = vrot.slane %v3560, 1
        %v3562 = vmax.f32 %v3560, %v3561
        %v3563 = vmax.f32 %v3287, %v3288
        %v3564 = vmax.f32 %v3563, %v3289
        %v3565 = vmax.f32 %v3564, %v3290
        %v3566 = vmax.f32 %v3565, %v3291
        %v3567 = vmax.f32 %v3566, %v3292
        %v3568 = vmax.f32 %v3567, %v3293
        %v3569 = vmax.f32 %v3568, %v3294
        %v3570 = vmax.f32 %v3569, %v3295
        %v3571 = vmax.f32 %v3570, %v3296
        %v3572 = vmax.f32 %v3571, %v3297
        %v3573 = vmax.f32 %v3572, %v3298
        %v3574 = vmax.f32 %v3573, %v3299
        %v3575 = vmax.f32 %v3574, %v3300
        %v3576 = vmax.f32 %v3575, %v3301
        %v3577 = vmax.f32 %v3576, %v3302
        %v3578 = vrot.slane %v3577, 4
        %v3579 = vmax.f32 %v3577, %v3578
        %v3580 = vrot.slane %v3579, 2
        %v3581 = vmax.f32 %v3579, %v3580
        %v3582 = vrot.slane %v3581, 1
        %v3583 = vmax.f32 %v3581, %v3582
        %v3584 = vmax.f32 %v3303, %v3304
        %v3585 = vmax.f32 %v3584, %v3305
        %v3586 = vmax.f32 %v3585, %v3306
        %v3587 = vmax.f32 %v3586, %v3307
        %v3588 = vmax.f32 %v3587, %v3308
        %v3589 = vmax.f32 %v3588, %v3309
        %v3590 = vmax.f32 %v3589, %v3310
        %v3591 = vmax.f32 %v3590, %v3311
        %v3592 = vmax.f32 %v3591, %v3312
        %v3593 = vmax.f32 %v3592, %v3313
        %v3594 = vmax.f32 %v3593, %v3314
        %v3595 = vmax.f32 %v3594, %v3315
        %v3596 = vmax.f32 %v3595, %v3316
        %v3597 = vmax.f32 %v3596, %v3317
        %v3598 = vmax.f32 %v3597, %v3318
        %v3599 = vrot.slane %v3598, 4
        %v3600 = vmax.f32 %v3598, %v3599
        %v3601 = vrot.slane %v3600, 2
        %v3602 = vmax.f32 %v3600, %v3601
        %v3603 = vrot.slane %v3602, 1
        %v3604 = vmax.f32 %v3602, %v3603
        %v3605 = vmax.f32 %v3319, %v3320
        %v3606 = vmax.f32 %v3605, %v3321
        %v3607 = vmax.f32 %v3606, %v3322
        %v3608 = vmax.f32 %v3607, %v3323
        %v3609 = vmax.f32 %v3608, %v3324
        %v3610 = vmax.f32 %v3609, %v3325
        %v3611 = vmax.f32 %v3610, %v3326
        %v3612 = vmax.f32 %v3611, %v3327
        %v3613 = vmax.f32 %v3612, %v3328
        %v3614 = vmax.f32 %v3613, %v3329
        %v3615 = vmax.f32 %v3614, %v3330
        %v3616 = vmax.f32 %v3615, %v3331
        %v3617 = vmax.f32 %v3616, %v3332
        %v3618 = vmax.f32 %v3617, %v3333
        %v3619 = vmax.f32 %v3618, %v3334
        %v3620 = vrot.slane %v3619, 4
        %v3621 = vmax.f32 %v3619, %v3620
        %v3622 = vrot.slane %v3621, 2
        %v3623 = vmax.f32 %v3621, %v3622
        %v3624 = vrot.slane %v3623, 1
        %v3625 = vmax.f32 %v3623, %v3624
        %v3626 = vmax.f32 %v3335, %v3336
        %v3627 = vmax.f32 %v3626, %v3337
        %v3628 = vmax.f32 %v3627, %v3338
        %v3629 = vmax.f32 %v3628, %v3339
        %v3630 = vmax.f32 %v3629, %v3340
        %v3631 = vmax.f32 %v3630, %v3341
        %v3632 = vmax.f32 %v3631, %v3342
        %v3633 = vmax.f32 %v3632, %v3343
        %v3634 = vmax.f32 %v3633, %v3344
        %v3635 = vmax.f32 %v3634, %v3345
        %v3636 = vmax.f32 %v3635, %v3346
        %v3637 = vmax.f32 %v3636, %v3347
        %v3638 = vmax.f32 %v3637, %v3348
        %v3639 = vmax.f32 %v3638, %v3349
        %v3640 = vmax.f32 %v3639, %v3350
        %v3641 = vrot.slane %v3640, 4
        %v3642 = vmax.f32 %v3640, %v3641
        %v3643 = vrot.slane %v3642, 2
        %v3644 = vmax.f32 %v3642, %v3643
        %v3645 = vrot.slane %v3644, 1
        %v3646 = vmax.f32 %v3644, %v3645
        %v3647 = vmax.f32 %v3351, %v3352
        %v3648 = vmax.f32 %v3647, %v3353
        %v3649 = vmax.f32 %v3648, %v3354
        %v3650 = vmax.f32 %v3649, %v3355
        %v3651 = vmax.f32 %v3650, %v3356
        %v3652 = vmax.f32 %v3651, %v3357
        %v3653 = vmax.f32 %v3652, %v3358
        %v3654 = vmax.f32 %v3653, %v3359
        %v3655 = vmax.f32 %v3654, %v3360
        %v3656 = vmax.f32 %v3655, %v3361
        %v3657 = vmax.f32 %v3656, %v3362
        %v3658 = vmax.f32 %v3657, %v3363
        %v3659 = vmax.f32 %v3658, %v3364
        %v3660 = vmax.f32 %v3659, %v3365
        %v3661 = vmax.f32 %v3660, %v3366
        %v3662 = vrot.slane %v3661, 4
        %v3663 = vmax.f32 %v3661, %v3662
        %v3664 = vrot.slane %v3663, 2
        %v3665 = vmax.f32 %v3663, %v3664
        %v3666 = vrot.slane %v3665, 1
        %v3667 = vmax.f32 %v3665, %v3666
        %v3668 = vmax.f32 %v3367, %v3368
        %v3669 = vmax.f32 %v3668, %v3369
        %v3670 = vmax.f32 %v3669, %v3370
        %v3671 = vmax.f32 %v3670, %v3371
        %v3672 = vmax.f32 %v3671, %v3372
        %v3673 = vmax.f32 %v3672, %v3373
        %v3674 = vmax.f32 %v3673, %v3374
        %v3675 = vmax.f32 %v3674, %v3375
        %v3676 = vmax.f32 %v3675, %v3376
        %v3677 = vmax.f32 %v3676, %v3377
        %v3678 = vmax.f32 %v3677, %v3378
        %v3679 = vmax.f32 %v3678, %v3379
        %v3680 = vmax.f32 %v3679, %v3380
        %v3681 = vmax.f32 %v3680, %v3381
        %v3682 = vmax.f32 %v3681, %v3382
        %v3683 = vrot.slane %v3682, 4
        %v3684 = vmax.f32 %v3682, %v3683
        %v3685 = vrot.slane %v3684, 2
        %v3686 = vmax.f32 %v3684, %v3685
        %v3687 = vrot.slane %v3686, 1
        %v3688 = vmax.f32 %v3686, %v3687
        %v3689 = vmax.f32 %v3383, %v3384
        %v3690 = vmax.f32 %v3689, %v3385
        %v3691 = vmax.f32 %v3690, %v3386
        %v3692 = vmax.f32 %v3691, %v3387
        %v3693 = vmax.f32 %v3692, %v3388
        %v3694 = vmax.f32 %v3693, %v3389
        %v3695 = vmax.f32 %v3694, %v3390
        %v3696 = vmax.f32 %v3695, %v3391
        %v3697 = vmax.f32 %v3696, %v3392
        %v3698 = vmax.f32 %v3697, %v3393
        %v3699 = vmax.f32 %v3698, %v3394
        %v3700 = vmax.f32 %v3699, %v3395
        %v3701 = vmax.f32 %v3700, %v3396
        %v3702 = vmax.f32 %v3701, %v3397
        %v3703 = vmax.f32 %v3702, %v3398
        %v3704 = vrot.slane %v3703, 4
        %v3705 = vmax.f32 %v3703, %v3704
        %v3706 = vrot.slane %v3705, 2
        %v3707 = vmax.f32 %v3705, %v3706
        %v3708 = vrot.slane %v3707, 1
        %v3709 = vmax.f32 %v3707, %v3708
        %v3710 = vmax.f32 %v3399, %v3400
        %v3711 = vmax.f32 %v3710, %v3401
        %v3712 = vmax.f32 %v3711, %v3402
        %v3713 = vmax.f32 %v3712, %v3403
        %v3714 = vmax.f32 %v3713, %v3404
        %v3715 = vmax.f32 %v3714, %v3405
        %v3716 = vmax.f32 %v3715, %v3406
        %v3717 = vmax.f32 %v3716, %v3407
        %v3718 = vmax.f32 %v3717, %v3408
        %v3719 = vmax.f32 %v3718, %v3409
        %v3720 = vmax.f32 %v3719, %v3410
        %v3721 = vmax.f32 %v3720, %v3411
        %v3722 = vmax.f32 %v3721, %v3412
        %v3723 = vmax.f32 %v3722, %v3413
        %v3724 = vmax.f32 %v3723, %v3414
        %v3725 = vrot.slane %v3724, 4
        %v3726 = vmax.f32 %v3724, %v3725
        %v3727 = vrot.slane %v3726, 2
        %v3728 = vmax.f32 %v3726, %v3727
        %v3729 = vrot.slane %v3728, 1
        %v3730 = vmax.f32 %v3728, %v3729
        %v3731 = vmax.f32 %v3415, %v3416
        %v3732 = vmax.f32 %v3731, %v3417
        %v3733 = vmax.f32 %v3732, %v3418
        %v3734 = vmax.f32 %v3733, %v3419
        %v3735 = vmax.f32 %v3734, %v3420
        %v3736 = vmax.f32 %v3735, %v3421
        %v3737 = vmax.f32 %v3736, %v3422
        %v3738 = vmax.f32 %v3737, %v3423
        %v3739 = vmax.f32 %v3738, %v3424
        %v3740 = vmax.f32 %v3739, %v3425
        %v3741 = vmax.f32 %v3740, %v3426
        %v3742 = vmax.f32 %v3741, %v3427
        %v3743 = vmax.f32 %v3742, %v3428
        %v3744 = vmax.f32 %v3743, %v3429
        %v3745 = vmax.f32 %v3744, %v3430
        %v3746 = vrot.slane %v3745, 4
        %v3747 = vmax.f32 %v3745, %v3746
        %v3748 = vrot.slane %v3747, 2
        %v3749 = vmax.f32 %v3747, %v3748
        %v3750 = vrot.slane %v3749, 1
        %v3751 = vmax.f32 %v3749, %v3750
        %v3752 = vmax.f32 %v3431, %v3432
        %v3753 = vmax.f32 %v3752, %v3433
        %v3754 = vmax.f32 %v3753, %v3434
        %v3755 = vmax.f32 %v3754, %v3435
        %v3756 = vmax.f32 %v3755, %v3436
        %v3757 = vmax.f32 %v3756, %v3437
        %v3758 = vmax.f32 %v3757, %v3438
        %v3759 = vmax.f32 %v3758, %v3439
        %v3760 = vmax.f32 %v3759, %v3440
        %v3761 = vmax.f32 %v3760, %v3441
        %v3762 = vmax.f32 %v3761, %v3442
        %v3763 = vmax.f32 %v3762, %v3443
        %v3764 = vmax.f32 %v3763, %v3444
        %v3765 = vmax.f32 %v3764, %v3445
        %v3766 = vmax.f32 %v3765, %v3446
        %v3767 = vrot.slane %v3766, 4
        %v3768 = vmax.f32 %v3766, %v3767
        %v3769 = vrot.slane %v3768, 2
        %v3770 = vmax.f32 %v3768, %v3769
        %v3771 = vrot.slane %v3770, 1
        %v3772 = vmax.f32 %v3770, %v3771
        %v3773 = vmax.f32 %v3447, %v3448
        %v3774 = vmax.f32 %v3773, %v3449
        %v3775 = vmax.f32 %v3774, %v3450
        %v3776 = vmax.f32 %v3775, %v3451
        %v3777 = vmax.f32 %v3776, %v3452
        %v3778 = vmax.f32 %v3777, %v3453
        %v3779 = vmax.f32 %v3778, %v3454
        %v3780 = vmax.f32 %v3779, %v3455
        %v3781 = vmax.f32 %v3780, %v3456
        %v3782 = vmax.f32 %v3781, %v3457
        %v3783 = vmax.f32 %v3782, %v3458
        %v3784 = vmax.f32 %v3783, %v3459
        %v3785 = vmax.f32 %v3784, %v3460
        %v3786 = vmax.f32 %v3785, %v3461
        %v3787 = vmax.f32 %v3786, %v3462
        %v3788 = vrot.slane %v3787, 4
        %v3789 = vmax.f32 %v3787, %v3788
        %v3790 = vrot.slane %v3789, 2
        %v3791 = vmax.f32 %v3789, %v3790
        %v3792 = vrot.slane %v3791, 1
        %v3793 = vmax.f32 %v3791, %v3792
        %v3794 = vmax.f32 %v3463, %v3464
        %v3795 = vmax.f32 %v3794, %v3465
        %v3796 = vmax.f32 %v3795, %v3466
        %v3797 = vmax.f32 %v3796, %v3467
        %v3798 = vmax.f32 %v3797, %v3468
        %v3799 = vmax.f32 %v3798, %v3469
        %v3800 = vmax.f32 %v3799, %v3470
        %v3801 = vmax.f32 %v3800, %v3471
        %v3802 = vmax.f32 %v3801, %v3472
        %v3803 = vmax.f32 %v3802, %v3473
        %v3804 = vmax.f32 %v3803, %v3474
        %v3805 = vmax.f32 %v3804, %v3475
        %v3806 = vmax.f32 %v3805, %v3476
        %v3807 = vmax.f32 %v3806, %v3477
        %v3808 = vmax.f32 %v3807, %v3478
        %v3809 = vrot.slane %v3808, 4
        %v3810 = vmax.f32 %v3808, %v3809
        %v3811 = vrot.slane %v3810, 2
        %v3812 = vmax.f32 %v3810, %v3811
        %v3813 = vrot.slane %v3812, 1
        %v3814 = vmax.f32 %v3812, %v3813
        %v3815 = vmax.f32 %v3499, -3e+38
        %v3816 = vmax.f32 %v3520, -3e+38
        %v3817 = vmax.f32 %v3541, -3e+38
        %v3818 = vmax.f32 %v3562, -3e+38
        %v3819 = vmax.f32 %v3583, -3e+38
        %v3820 = vmax.f32 %v3604, -3e+38
        %v3821 = vmax.f32 %v3625, -3e+38
        %v3822 = vmax.f32 %v3646, -3e+38
        %v3823 = vmax.f32 %v3667, -3e+38
        %v3824 = vmax.f32 %v3688, -3e+38
        %v3825 = vmax.f32 %v3709, -3e+38
        %v3826 = vmax.f32 %v3730, -3e+38
        %v3827 = vmax.f32 %v3751, -3e+38
        %v3828 = vmax.f32 %v3772, -3e+38
        %v3829 = vmax.f32 %v3793, -3e+38
        %v3830 = vmax.f32 %v3814, -3e+38
        %v3847 = vsel %vm2537, %v3816, %v3815
        %v3848 = vsel %vm2539, %v3817, %v3847
        %v3849 = vsel %vm2541, %v3818, %v3848
        %v3850 = vsel %vm2543, %v3819, %v3849
        %v3851 = vsel %vm2545, %v3820, %v3850
        %v3852 = vsel %vm2547, %v3821, %v3851
        %v3853 = vsel %vm2549, %v3822, %v3852
        %v3854 = vsel %vm2537, %v3824, %v3823
        %v3855 = vsel %vm2539, %v3825, %v3854
        %v3856 = vsel %vm2541, %v3826, %v3855
        %v3857 = vsel %vm2543, %v3827, %v3856
        %v3858 = vsel %vm2545, %v3828, %v3857
        %v3859 = vsel %vm2547, %v3829, %v3858
        %v3860 = vsel %vm2549, %v3830, %v3859
        %3863 = vrot.lane.b32.xlu0 %v3853, 96
        %v3864 = vpop.permute.xlu0 %3863
        %3865 = vrot.lane.b32.xlu0 %v3860, 96
        %v3866 = vpop.permute.xlu0 %3865
        %3869 = vrot.lane.b32.xlu0 %v3853, 64
        %v3870 = vpop.permute.xlu0 %3869
        %3871 = vrot.lane.b32.xlu0 %v3860, 64
        %v3872 = vpop.permute.xlu0 %3871
        %3875 = vrot.lane.b32.xlu0 %v3853, 32
        %v3876 = vpop.permute.xlu0 %3875
        %3877 = vrot.lane.b32.xlu0 %v3860, 32
        %v3878 = vpop.permute.xlu0 %3877
        %v3881 = vsel %vm2586, %v3853, 0.0
        %v3882 = vsel %vm2587, %v3860, 0.0
        %v3883 = vsel %vm2588, %v3864, 0.0
        %v3884 = vsel %vm2589, %v3866, 0.0
        %v3885 = vsel %vm2590, %v3870, 0.0
        %v3886 = vsel %vm2591, %v3872, 0.0
        %v3887 = vsel %vm2592, %v3876, 0.0
        %v3888 = vsel %vm2593, %v3878, 0.0
        %v3889 = vmul.f32 %v2992, %v3881
        %v3890 = vmul.f32 %v2995, %v3882
        %v3891 = vmul.f32 %v2998, %v3883
        %v3892 = vmul.f32 %v3001, %v3884
        %v3893 = vmul.f32 %v3004, %v3885
        %v3894 = vmul.f32 %v3007, %v3886
        %v3895 = vmul.f32 %v3010, %v3887
        %v3896 = vmul.f32 %v3013, %v3888
        %v3897 = vadd.f32 %v2610, %v3889
        %v3898 = vadd.f32 %v2611, %v3890
        %v3899 = vadd.f32 %v2612, %v3891
        %v3900 = vadd.f32 %v2613, %v3892
        %v3901 = vadd.f32 %v2614, %v3893
        %v3902 = vadd.f32 %v2615, %v3894
        %v3903 = vadd.f32 %v2616, %v3895
        %v3904 = vadd.f32 %v2617, %v3896
        %3905 = vmatpush.msra.mxu0 0.0
        %3906 = vmatpush.msra.mxu0 0.0
        %3907 = vmatpush.msra.mxu0 0.0
        %3908 = vmatpush.msra.mxu0 0.0
        %3909 = vmatpush.msra.mxu0 0.0
        %3910 = vmatpush.msra.mxu0 0.0
        %3911 = vmatpush.msra.mxu0 0.0
        %3912 = vmatpush.msra.mxu0 0.0
        %3913 = vmatpush.msra.mxu0 %v3904
        %3914 = vmatpush.msra.mxu0 %v3903
        %3915 = vmatpush.msra.mxu0 %v3902
        %3916 = vmatpush.msra.mxu0 %v3901
        %3917 = vmatpush.msra.mxu0 %v3900
        %3918 = vmatpush.msra.mxu0 %v3899
        %3919 = vmatpush.msra.mxu0 %v3898
        %3920 = vmatpush.msra.mxu0 %v3897
        %3921 = vmatmul.f32.gmra.mxu0 %v2619
        %v3922 = vpop.f32.mrf.mxu0
        %v3923 = vadd.f32 0.0, %v3922
        %3924 = vmatmul.f32.gmra.mxu0 %v2622
        %v3925 = vpop.f32.mrf.mxu0
        %v3926 = vadd.f32 0.0, %v3925
        %3927 = vmatmul.f32.gmra.mxu0 %v2625
        %v3928 = vpop.f32.mrf.mxu0
        %v3929 = vadd.f32 0.0, %v3928
        %3930 = vmatmul.f32.gmra.mxu0 %v2628
        %v3931 = vpop.f32.mrf.mxu0
        %v3932 = vadd.f32 0.0, %v3931
        %3933 = vmatmul.f32.gmra.mxu0 %v2631
        %v3934 = vpop.f32.mrf.mxu0
        %v3935 = vadd.f32 0.0, %v3934
        %3936 = vmatmul.f32.gmra.mxu0 %v2634
        %v3937 = vpop.f32.mrf.mxu0
        %v3938 = vadd.f32 0.0, %v3937
        %3939 = vmatmul.f32.gmra.mxu0 %v2637
        %v3940 = vpop.f32.mrf.mxu0
        %v3941 = vadd.f32 0.0, %v3940
        %3942 = vmatmul.f32.gmra.mxu0 %v2640
        %v3943 = vpop.f32.mrf.mxu0
        %v3944 = vadd.f32 0.0, %v3943
        %3945 = vmatmul.f32.gmra.mxu0 %v2643
        %v3946 = vpop.f32.mrf.mxu0
        %v3947 = vadd.f32 0.0, %v3946
        %3948 = vmatmul.f32.gmra.mxu0 %v2646
        %v3949 = vpop.f32.mrf.mxu0
        %v3950 = vadd.f32 0.0, %v3949
        %3951 = vmatmul.f32.gmra.mxu0 %v2649
        %v3952 = vpop.f32.mrf.mxu0
        %v3953 = vadd.f32 0.0, %v3952
        %3954 = vmatmul.f32.gmra.mxu0 %v2652
        %v3955 = vpop.f32.mrf.mxu0
        %v3956 = vadd.f32 0.0, %v3955
        %3957 = vmatmul.f32.gmra.mxu0 %v2655
        %v3958 = vpop.f32.mrf.mxu0
        %v3959 = vadd.f32 0.0, %v3958
        %3960 = vmatmul.f32.gmra.mxu0 %v2658
        %v3961 = vpop.f32.mrf.mxu0
        %v3962 = vadd.f32 0.0, %v3961
        %3963 = vmatmul.f32.gmra.mxu0 %v2661
        %v3964 = vpop.f32.mrf.mxu0
        %v3965 = vadd.f32 0.0, %v3964
        %3966 = vmatmul.f32.gmra.mxu0 %v2664
        %v3967 = vpop.f32.mrf.mxu0
        %v3968 = vadd.f32 0.0, %v3967
        %3969 = vdwg.mxu0
        %v3970 = vrot.slane %v2958, 1
        %v3971 = vrot.slane %v2959, 1
        %v3972 = vrot.slane %v2960, 1
        %v3973 = vrot.slane %v2961, 1
        %v3974 = vrot.slane %v2962, 1
        %v3975 = vrot.slane %v2963, 1
        %v3976 = vrot.slane %v2964, 1
        %v3977 = vrot.slane %v2965, 1
        %v3978 = vrot.slane %v2966, 1
        %v3979 = vrot.slane %v2967, 1
        %v3980 = vrot.slane %v2968, 1
        %v3981 = vrot.slane %v2969, 1
        %v3982 = vrot.slane %v2970, 1
        %v3983 = vrot.slane %v2971, 1
        %v3984 = vrot.slane %v2972, 1
        %v3985 = vrot.slane %v2973, 1
        %v3986 = vsel %vm2747, %v3984, %v3985
        %v3987 = vsel %vm2747, %v3983, %v3984
        %v3988 = vsel %vm2747, %v3982, %v3983
        %v3989 = vsel %vm2747, %v3981, %v3982
        %v3990 = vsel %vm2747, %v3980, %v3981
        %v3991 = vsel %vm2747, %v3979, %v3980
        %v3992 = vsel %vm2747, %v3978, %v3979
        %v3993 = vsel %vm2747, %v3977, %v3978
        %v3994 = vsel %vm2747, %v3976, %v3977
        %v3995 = vsel %vm2747, %v3975, %v3976
        %v3996 = vsel %vm2747, %v3974, %v3975
        %v3997 = vsel %vm2747, %v3973, %v3974
        %v3998 = vsel %vm2747, %v3972, %v3973
        %v3999 = vsel %vm2747, %v3971, %v3972
        %v4000 = vsel %vm2747, %v3970, %v3971
        %v4001 = vsel %vm2747, %v3985, %v3970
        %v4002 = vrot.slane %v2958, 7
        %v4003 = vrot.slane %v2959, 7
        %v4004 = vrot.slane %v2960, 7
        %v4005 = vrot.slane %v2961, 7
        %v4006 = vrot.slane %v2962, 7
        %v4007 = vrot.slane %v2963, 7
        %v4008 = vrot.slane %v2964, 7
        %v4009 = vrot.slane %v2965, 7
        %v4010 = vrot.slane %v2966, 7
        %v4011 = vrot.slane %v2967, 7
        %v4012 = vrot.slane %v2968, 7
        %v4013 = vrot.slane %v2969, 7
        %v4014 = vrot.slane %v2970, 7
        %v4015 = vrot.slane %v2971, 7
        %v4016 = vrot.slane %v2972, 7
        %v4017 = vrot.slane %v2973, 7
        %v4018 = vsel %vm2780, %v4016, %v4017
        %v4019 = vsel %vm2780, %v4015, %v4016
        %v4020 = vsel %vm2780, %v4014, %v4015
        %v4021 = vsel %vm2780, %v4013, %v4014
        %v4022 = vsel %vm2780, %v4012, %v4013
        %v4023 = vsel %vm2780, %v4011, %v4012
        %v4024 = vsel %vm2780, %v4010, %v4011
        %v4025 = vsel %vm2780, %v4009, %v4010
        %v4026 = vsel %vm2780, %v4008, %v4009
        %v4027 = vsel %vm2780, %v4007, %v4008
        %v4028 = vsel %vm2780, %v4006, %v4007
        %v4029 = vsel %vm2780, %v4005, %v4006
        %v4030 = vsel %vm2780, %v4004, %v4005
        %v4031 = vsel %vm2780, %v4003, %v4004
        %v4032 = vsel %vm2780, %v4002, %v4003
        %v4033 = vsel %vm2780, %v4017, %v4002
        %v4034 = vsel %vm900, %v4000, %v4033
        %v4035 = vsel %vm901, %v3999, %v4032
        %v4036 = vsel %vm902, %v3998, %v4031
        %v4037 = vsel %vm903, %v3997, %v4030
        %v4038 = vsel %vm904, %v3996, %v4029
        %v4039 = vsel %vm905, %v3995, %v4028
        %v4040 = vsel %vm906, %v3994, %v4027
        %v4041 = vsel %vm907, %v3993, %v4026
        %v4042 = vsel %vm908, %v3992, %v4025
        %v4043 = vsel %vm909, %v3991, %v4024
        %v4044 = vsel %vm910, %v3990, %v4023
        %v4045 = vsel %vm911, %v3989, %v4022
        %v4046 = vsel %vm912, %v3988, %v4021
        %v4047 = vsel %vm913, %v3987, %v4020
        %v4048 = vsel %vm914, %v3986, %v4019
        %v4049 = vsel %vm915, %v4001, %v4018
        %v4050 = vsub.f32 %v3923, %v4034
        %v4051 = vsub.f32 %v3926, %v4035
        %v4052 = vsub.f32 %v3929, %v4036
        %v4053 = vsub.f32 %v3932, %v4037
        %v4054 = vsub.f32 %v3935, %v4038
        %v4055 = vsub.f32 %v3938, %v4039
        %v4056 = vsub.f32 %v3941, %v4040
        %v4057 = vsub.f32 %v3944, %v4041
        %v4058 = vsub.f32 %v3947, %v4042
        %v4059 = vsub.f32 %v3950, %v4043
        %v4060 = vsub.f32 %v3953, %v4044
        %v4061 = vsub.f32 %v3956, %v4045
        %v4062 = vsub.f32 %v3959, %v4046
        %v4063 = vsub.f32 %v3962, %v4047
        %v4064 = vsub.f32 %v3965, %v4048
        %v4065 = vsub.f32 %v3968, %v4049
        %v4067 = vsel %vm1020, %v4050, 0
        %v4070 = vsel %vm1020, %v4051, 0
        %v4073 = vsel %vm1020, %v4052, 0
        %v4076 = vsel %vm1020, %v4053, 0
        %v4079 = vsel %vm1020, %v4054, 0
        %v4082 = vsel %vm1020, %v4055, 0
        %v4085 = vsel %vm1020, %v4056, 0
        %v4088 = vsel %vm1020, %v4057, 0
        %v4091 = vsel %vm1020, %v4058, 0
        %v4094 = vsel %vm1020, %v4059, 0
        %v4097 = vsel %vm1020, %v4060, 0
        %v4100 = vsel %vm1020, %v4061, 0
        %v4103 = vsel %vm1020, %v4062, 0
        %v4106 = vsel %vm1020, %v4063, 0
        %v4109 = vsel %vm1020, %v4064, 0
        %v4112 = vsel %vm1020, %v4065, 0
        %4114 = vmatpush.msra.mxu0 0.0
        %4115 = vmatpush.msra.mxu0 0.0
        %4116 = vmatpush.msra.mxu0 0.0
        %4117 = vmatpush.msra.mxu0 0.0
        %4118 = vmatpush.msra.mxu0 0.0
        %4119 = vmatpush.msra.mxu0 0.0
        %4120 = vmatpush.msra.mxu0 0.0
        %4121 = vmatpush.msra.mxu0 0.0
        %4122 = vmatpush.msra.mxu0 0.0
        %4123 = vmatpush.msra.mxu0 0.0
        %4124 = vmatpush.msra.mxu0 0.0
        %4125 = vmatpush.msra.mxu0 0.0
        %4126 = vmatpush.msra.mxu0 %v678
        %4127 = vmatpush.msra.mxu0 %v677
        %4128 = vmatpush.msra.mxu0 %v676
        %4129 = vmatpush.msra.mxu0 %v675
        %4130 = vmatmul.f32.gmra.mxu0 %v4067
        %v4131 = vpop.f32.mrf.mxu0
        %v4132 = vadd.f32 0.0, %v4131
        %4133 = vmatmul.f32.gmra.mxu0 %v4070
        %v4134 = vpop.f32.mrf.mxu0
        %v4135 = vadd.f32 0.0, %v4134
        %4136 = vmatmul.f32.gmra.mxu0 %v4073
        %v4137 = vpop.f32.mrf.mxu0
        %v4138 = vadd.f32 0.0, %v4137
        %4139 = vmatmul.f32.gmra.mxu0 %v4076
        %v4140 = vpop.f32.mrf.mxu0
        %v4141 = vadd.f32 0.0, %v4140
        %4142 = vmatmul.f32.gmra.mxu0 %v4079
        %v4143 = vpop.f32.mrf.mxu0
        %v4144 = vadd.f32 0.0, %v4143
        %4145 = vmatmul.f32.gmra.mxu0 %v4082
        %v4146 = vpop.f32.mrf.mxu0
        %v4147 = vadd.f32 0.0, %v4146
        %4148 = vmatmul.f32.gmra.mxu0 %v4085
        %v4149 = vpop.f32.mrf.mxu0
        %v4150 = vadd.f32 0.0, %v4149
        %4151 = vmatmul.f32.gmra.mxu0 %v4088
        %v4152 = vpop.f32.mrf.mxu0
        %v4153 = vadd.f32 0.0, %v4152
        %4154 = vmatmul.f32.gmra.mxu0 %v4091
        %v4155 = vpop.f32.mrf.mxu0
        %v4156 = vadd.f32 0.0, %v4155
        %4157 = vmatmul.f32.gmra.mxu0 %v4094
        %v4158 = vpop.f32.mrf.mxu0
        %v4159 = vadd.f32 0.0, %v4158
        %4160 = vmatmul.f32.gmra.mxu0 %v4097
        %v4161 = vpop.f32.mrf.mxu0
        %v4162 = vadd.f32 0.0, %v4161
        %4163 = vmatmul.f32.gmra.mxu0 %v4100
        %v4164 = vpop.f32.mrf.mxu0
        %v4165 = vadd.f32 0.0, %v4164
        %4166 = vmatmul.f32.gmra.mxu0 %v4103
        %v4167 = vpop.f32.mrf.mxu0
        %v4168 = vadd.f32 0.0, %v4167
        %4169 = vmatmul.f32.gmra.mxu0 %v4106
        %v4170 = vpop.f32.mrf.mxu0
        %v4171 = vadd.f32 0.0, %v4170
        %4172 = vmatmul.f32.gmra.mxu0 %v4109
        %v4173 = vpop.f32.mrf.mxu0
        %v4174 = vadd.f32 0.0, %v4173
        %4175 = vmatmul.f32.gmra.mxu0 %v4112
        %v4176 = vpop.f32.mrf.mxu0
        %v4177 = vadd.f32 0.0, %v4176
        %4178 = vdwg.mxu0
        %v4179 = vadd.f32 %v1134, %v4132
        %v4180 = vadd.f32 %v1135, %v4135
        %v4181 = vadd.f32 %v1136, %v4138
        %v4182 = vadd.f32 %v1137, %v4141
        %v4183 = vadd.f32 %v1138, %v4144
        %v4184 = vadd.f32 %v1139, %v4147
        %v4185 = vadd.f32 %v1140, %v4150
        %v4186 = vadd.f32 %v1141, %v4153
        %v4187 = vadd.f32 %v1142, %v4156
        %v4188 = vadd.f32 %v1143, %v4159
        %v4189 = vadd.f32 %v1144, %v4162
        %v4190 = vadd.f32 %v1145, %v4165
        %v4191 = vadd.f32 %v1146, %v4168
        %v4192 = vadd.f32 %v1147, %v4171
        %v4193 = vadd.f32 %v1148, %v4174
        %v4194 = vadd.f32 %v1149, %v4177
        %v4195 = vmax.f32 %v4179, 0.0
        %v4196 = vmax.f32 %v4180, 0.0
        %v4197 = vmax.f32 %v4181, 0.0
        %v4198 = vmax.f32 %v4182, 0.0
        %v4199 = vmax.f32 %v4183, 0.0
        %v4200 = vmax.f32 %v4184, 0.0
        %v4201 = vmax.f32 %v4185, 0.0
        %v4202 = vmax.f32 %v4186, 0.0
        %v4203 = vmax.f32 %v4187, 0.0
        %v4204 = vmax.f32 %v4188, 0.0
        %v4205 = vmax.f32 %v4189, 0.0
        %v4206 = vmax.f32 %v4190, 0.0
        %v4207 = vmax.f32 %v4191, 0.0
        %v4208 = vmax.f32 %v4192, 0.0
        %v4209 = vmax.f32 %v4193, 0.0
        %v4210 = vmax.f32 %v4194, 0.0
        %4211 = vmatpush.msra.mxu0 %v4210
        %4212 = vmatpush.msra.mxu0 %v4209
        %4213 = vmatpush.msra.mxu0 %v4208
        %4214 = vmatpush.msra.mxu0 %v4207
        %4215 = vmatpush.msra.mxu0 %v4206
        %4216 = vmatpush.msra.mxu0 %v4205
        %4217 = vmatpush.msra.mxu0 %v4204
        %4218 = vmatpush.msra.mxu0 %v4203
        %4219 = vmatpush.msra.mxu0 %v4202
        %4220 = vmatpush.msra.mxu0 %v4201
        %4221 = vmatpush.msra.mxu0 %v4200
        %4222 = vmatpush.msra.mxu0 %v4199
        %4223 = vmatpush.msra.mxu0 %v4198
        %4224 = vmatpush.msra.mxu0 %v4197
        %4225 = vmatpush.msra.mxu0 %v4196
        %4226 = vmatpush.msra.mxu0 %v4195
        %4227 = vmatmul.f32.gmra.mxu0 %v622
        %v4228 = vpop.f32.mrf.mxu0
        %v4229 = vadd.f32 0.0, %v4228
        %4230 = vmatmul.f32.gmra.mxu0 %v623
        %v4231 = vpop.f32.mrf.mxu0
        %v4232 = vadd.f32 0.0, %v4231
        %4233 = vmatmul.f32.gmra.mxu0 %v624
        %v4234 = vpop.f32.mrf.mxu0
        %v4235 = vadd.f32 0.0, %v4234
        %4236 = vmatmul.f32.gmra.mxu0 %v625
        %v4237 = vpop.f32.mrf.mxu0
        %v4238 = vadd.f32 0.0, %v4237
        %4239 = vmatmul.f32.gmra.mxu0 %v626
        %v4240 = vpop.f32.mrf.mxu0
        %v4241 = vadd.f32 0.0, %v4240
        %4242 = vmatmul.f32.gmra.mxu0 %v627
        %v4243 = vpop.f32.mrf.mxu0
        %v4244 = vadd.f32 0.0, %v4243
        %4245 = vmatmul.f32.gmra.mxu0 %v628
        %v4246 = vpop.f32.mrf.mxu0
        %v4247 = vadd.f32 0.0, %v4246
        %4248 = vmatmul.f32.gmra.mxu0 %v629
        %v4249 = vpop.f32.mrf.mxu0
        %v4250 = vadd.f32 0.0, %v4249
        %4251 = vdwg.mxu0
        %4268 = vrot.lane.b32.xlu0 %v4195, 32
        %v4269 = vpop.permute.xlu0 %4268
        %4270 = vrot.lane.b32.xlu0 %v4196, 32
        %v4271 = vpop.permute.xlu0 %4270
        %4272 = vrot.lane.b32.xlu0 %v4197, 32
        %v4273 = vpop.permute.xlu0 %4272
        %4274 = vrot.lane.b32.xlu0 %v4198, 32
        %v4275 = vpop.permute.xlu0 %4274
        %4276 = vrot.lane.b32.xlu0 %v4199, 32
        %v4277 = vpop.permute.xlu0 %4276
        %4278 = vrot.lane.b32.xlu0 %v4200, 32
        %v4279 = vpop.permute.xlu0 %4278
        %4280 = vrot.lane.b32.xlu0 %v4201, 32
        %v4281 = vpop.permute.xlu0 %4280
        %4282 = vrot.lane.b32.xlu0 %v4202, 32
        %v4283 = vpop.permute.xlu0 %4282
        %4284 = vrot.lane.b32.xlu0 %v4203, 32
        %v4285 = vpop.permute.xlu0 %4284
        %4286 = vrot.lane.b32.xlu0 %v4204, 32
        %v4287 = vpop.permute.xlu0 %4286
        %4288 = vrot.lane.b32.xlu0 %v4205, 32
        %v4289 = vpop.permute.xlu0 %4288
        %4290 = vrot.lane.b32.xlu0 %v4206, 32
        %v4291 = vpop.permute.xlu0 %4290
        %4292 = vrot.lane.b32.xlu0 %v4207, 32
        %v4293 = vpop.permute.xlu0 %4292
        %4294 = vrot.lane.b32.xlu0 %v4208, 32
        %v4295 = vpop.permute.xlu0 %4294
        %4296 = vrot.lane.b32.xlu0 %v4209, 32
        %v4297 = vpop.permute.xlu0 %4296
        %4298 = vrot.lane.b32.xlu0 %v4210, 32
        %v4299 = vpop.permute.xlu0 %4298
        %4316 = vrot.lane.b32.xlu0 %v4195, 64
        %v4317 = vpop.permute.xlu0 %4316
        %4318 = vrot.lane.b32.xlu0 %v4196, 64
        %v4319 = vpop.permute.xlu0 %4318
        %4320 = vrot.lane.b32.xlu0 %v4197, 64
        %v4321 = vpop.permute.xlu0 %4320
        %4322 = vrot.lane.b32.xlu0 %v4198, 64
        %v4323 = vpop.permute.xlu0 %4322
        %4324 = vrot.lane.b32.xlu0 %v4199, 64
        %v4325 = vpop.permute.xlu0 %4324
        %4326 = vrot.lane.b32.xlu0 %v4200, 64
        %v4327 = vpop.permute.xlu0 %4326
        %4328 = vrot.lane.b32.xlu0 %v4201, 64
        %v4329 = vpop.permute.xlu0 %4328
        %4330 = vrot.lane.b32.xlu0 %v4202, 64
        %v4331 = vpop.permute.xlu0 %4330
        %4332 = vrot.lane.b32.xlu0 %v4203, 64
        %v4333 = vpop.permute.xlu0 %4332
        %4334 = vrot.lane.b32.xlu0 %v4204, 64
        %v4335 = vpop.permute.xlu0 %4334
        %4336 = vrot.lane.b32.xlu0 %v4205, 64
        %v4337 = vpop.permute.xlu0 %4336
        %4338 = vrot.lane.b32.xlu0 %v4206, 64
        %v4339 = vpop.permute.xlu0 %4338
        %4340 = vrot.lane.b32.xlu0 %v4207, 64
        %v4341 = vpop.permute.xlu0 %4340
        %4342 = vrot.lane.b32.xlu0 %v4208, 64
        %v4343 = vpop.permute.xlu0 %4342
        %4344 = vrot.lane.b32.xlu0 %v4209, 64
        %v4345 = vpop.permute.xlu0 %4344
        %4346 = vrot.lane.b32.xlu0 %v4210, 64
        %v4347 = vpop.permute.xlu0 %4346
        %4364 = vrot.lane.b32.xlu0 %v4195, 96
        %v4365 = vpop.permute.xlu0 %4364
        %4366 = vrot.lane.b32.xlu0 %v4196, 96
        %v4367 = vpop.permute.xlu0 %4366
        %4368 = vrot.lane.b32.xlu0 %v4197, 96
        %v4369 = vpop.permute.xlu0 %4368
        %4370 = vrot.lane.b32.xlu0 %v4198, 96
        %v4371 = vpop.permute.xlu0 %4370
        %4372 = vrot.lane.b32.xlu0 %v4199, 96
        %v4373 = vpop.permute.xlu0 %4372
        %4374 = vrot.lane.b32.xlu0 %v4200, 96
        %v4375 = vpop.permute.xlu0 %4374
        %4376 = vrot.lane.b32.xlu0 %v4201, 96
        %v4377 = vpop.permute.xlu0 %4376
        %4378 = vrot.lane.b32.xlu0 %v4202, 96
        %v4379 = vpop.permute.xlu0 %4378
        %4380 = vrot.lane.b32.xlu0 %v4203, 96
        %v4381 = vpop.permute.xlu0 %4380
        %4382 = vrot.lane.b32.xlu0 %v4204, 96
        %v4383 = vpop.permute.xlu0 %4382
        %4384 = vrot.lane.b32.xlu0 %v4205, 96
        %v4385 = vpop.permute.xlu0 %4384
        %4386 = vrot.lane.b32.xlu0 %v4206, 96
        %v4387 = vpop.permute.xlu0 %4386
        %4388 = vrot.lane.b32.xlu0 %v4207, 96
        %v4389 = vpop.permute.xlu0 %4388
        %4390 = vrot.lane.b32.xlu0 %v4208, 96
        %v4391 = vpop.permute.xlu0 %4390
        %4392 = vrot.lane.b32.xlu0 %v4209, 96
        %v4393 = vpop.permute.xlu0 %4392
        %4394 = vrot.lane.b32.xlu0 %v4210, 96
        %v4395 = vpop.permute.xlu0 %4394
        %v4412 = vsel %vm1020, %v4195, %v4269
        %v4413 = vsel %vm1020, %v4196, %v4271
        %v4414 = vsel %vm1020, %v4197, %v4273
        %v4415 = vsel %vm1020, %v4198, %v4275
        %v4416 = vsel %vm1020, %v4199, %v4277
        %v4417 = vsel %vm1020, %v4200, %v4279
        %v4418 = vsel %vm1020, %v4201, %v4281
        %v4419 = vsel %vm1020, %v4202, %v4283
        %v4420 = vsel %vm1020, %v4203, %v4285
        %v4421 = vsel %vm1020, %v4204, %v4287
        %v4422 = vsel %vm1020, %v4205, %v4289
        %v4423 = vsel %vm1020, %v4206, %v4291
        %v4424 = vsel %vm1020, %v4207, %v4293
        %v4425 = vsel %vm1020, %v4208, %v4295
        %v4426 = vsel %vm1020, %v4209, %v4297
        %v4427 = vsel %vm1020, %v4210, %v4299
        %v4428 = vsel %vm1367, %v4412, %v4317
        %v4429 = vsel %vm1367, %v4413, %v4319
        %v4430 = vsel %vm1367, %v4414, %v4321
        %v4431 = vsel %vm1367, %v4415, %v4323
        %v4432 = vsel %vm1367, %v4416, %v4325
        %v4433 = vsel %vm1367, %v4417, %v4327
        %v4434 = vsel %vm1367, %v4418, %v4329
        %v4435 = vsel %vm1367, %v4419, %v4331
        %v4436 = vsel %vm1367, %v4420, %v4333
        %v4437 = vsel %vm1367, %v4421, %v4335
        %v4438 = vsel %vm1367, %v4422, %v4337
        %v4439 = vsel %vm1367, %v4423, %v4339
        %v4440 = vsel %vm1367, %v4424, %v4341
        %v4441 = vsel %vm1367, %v4425, %v4343
        %v4442 = vsel %vm1367, %v4426, %v4345
        %v4443 = vsel %vm1367, %v4427, %v4347
        %v4444 = vsel %vm1384, %v4428, %v4365
        %v4445 = vsel %vm1384, %v4429, %v4367
        %v4446 = vsel %vm1384, %v4430, %v4369
        %v4447 = vsel %vm1384, %v4431, %v4371
        %v4448 = vsel %vm1384, %v4432, %v4373
        %v4449 = vsel %vm1384, %v4433, %v4375
        %v4450 = vsel %vm1384, %v4434, %v4377
        %v4451 = vsel %vm1384, %v4435, %v4379
        %v4452 = vsel %vm1384, %v4436, %v4381
        %v4453 = vsel %vm1384, %v4437, %v4383
        %v4454 = vsel %vm1384, %v4438, %v4385
        %v4455 = vsel %vm1384, %v4439, %v4387
        %v4456 = vsel %vm1384, %v4440, %v4389
        %v4457 = vsel %vm1384, %v4441, %v4391
        %v4458 = vsel %vm1384, %v4442, %v4393
        %v4459 = vsel %vm1384, %v4443, %v4395
        %v4460 = vsel %vm1657, %v4444, -3e+38
        %v4461 = vsel %vm1658, %v4445, -3e+38
        %v4462 = vsel %vm1659, %v4446, -3e+38
        %v4463 = vsel %vm1660, %v4447, -3e+38
        %v4464 = vsel %vm1661, %v4448, -3e+38
        %v4465 = vsel %vm1662, %v4449, -3e+38
        %v4466 = vsel %vm1663, %v4450, -3e+38
        %v4467 = vsel %vm1664, %v4451, -3e+38
        %v4468 = vsel %vm1665, %v4452, -3e+38
        %v4469 = vsel %vm1666, %v4453, -3e+38
        %v4470 = vsel %vm1667, %v4454, -3e+38
        %v4471 = vsel %vm1668, %v4455, -3e+38
        %v4472 = vsel %vm1669, %v4456, -3e+38
        %v4473 = vsel %vm1670, %v4457, -3e+38
        %v4474 = vsel %vm1671, %v4458, -3e+38
        %v4475 = vsel %vm1672, %v4459, -3e+38
        %v4476 = vsel %vm1673, %v4444, -3e+38
        %v4477 = vsel %vm1674, %v4445, -3e+38
        %v4478 = vsel %vm1675, %v4446, -3e+38
        %v4479 = vsel %vm1676, %v4447, -3e+38
        %v4480 = vsel %vm1677, %v4448, -3e+38
        %v4481 = vsel %vm1678, %v4449, -3e+38
        %v4482 = vsel %vm1679, %v4450, -3e+38
        %v4483 = vsel %vm1680, %v4451, -3e+38
        %v4484 = vsel %vm1681, %v4452, -3e+38
        %v4485 = vsel %vm1682, %v4453, -3e+38
        %v4486 = vsel %vm1683, %v4454, -3e+38
        %v4487 = vsel %vm1684, %v4455, -3e+38
        %v4488 = vsel %vm1685, %v4456, -3e+38
        %v4489 = vsel %vm1686, %v4457, -3e+38
        %v4490 = vsel %vm1687, %v4458, -3e+38
        %v4491 = vsel %vm1688, %v4459, -3e+38
        %v4492 = vsel %vm1689, %v4444, -3e+38
        %v4493 = vsel %vm1690, %v4445, -3e+38
        %v4494 = vsel %vm1691, %v4446, -3e+38
        %v4495 = vsel %vm1692, %v4447, -3e+38
        %v4496 = vsel %vm1693, %v4448, -3e+38
        %v4497 = vsel %vm1694, %v4449, -3e+38
        %v4498 = vsel %vm1695, %v4450, -3e+38
        %v4499 = vsel %vm1696, %v4451, -3e+38
        %v4500 = vsel %vm1697, %v4452, -3e+38
        %v4501 = vsel %vm1698, %v4453, -3e+38
        %v4502 = vsel %vm1699, %v4454, -3e+38
        %v4503 = vsel %vm1700, %v4455, -3e+38
        %v4504 = vsel %vm1701, %v4456, -3e+38
        %v4505 = vsel %vm1702, %v4457, -3e+38
        %v4506 = vsel %vm1703, %v4458, -3e+38
        %v4507 = vsel %vm1704, %v4459, -3e+38
        %v4508 = vsel %vm1705, %v4444, -3e+38
        %v4509 = vsel %vm1706, %v4445, -3e+38
        %v4510 = vsel %vm1707, %v4446, -3e+38
        %v4511 = vsel %vm1708, %v4447, -3e+38
        %v4512 = vsel %vm1709, %v4448, -3e+38
        %v4513 = vsel %vm1710, %v4449, -3e+38
        %v4514 = vsel %vm1711, %v4450, -3e+38
        %v4515 = vsel %vm1712, %v4451, -3e+38
        %v4516 = vsel %vm1713, %v4452, -3e+38
        %v4517 = vsel %vm1714, %v4453, -3e+38
        %v4518 = vsel %vm1715, %v4454, -3e+38
        %v4519 = vsel %vm1716, %v4455, -3e+38
        %v4520 = vsel %vm1717, %v4456, -3e+38
        %v4521 = vsel %vm1718, %v4457, -3e+38
        %v4522 = vsel %vm1719, %v4458, -3e+38
        %v4523 = vsel %vm1720, %v4459, -3e+38
        %v4524 = vsel %vm1721, %v4444, -3e+38
        %v4525 = vsel %vm1722, %v4445, -3e+38
        %v4526 = vsel %vm1723, %v4446, -3e+38
        %v4527 = vsel %vm1724, %v4447, -3e+38
        %v4528 = vsel %vm1725, %v4448, -3e+38
        %v4529 = vsel %vm1726, %v4449, -3e+38
        %v4530 = vsel %vm1727, %v4450, -3e+38
        %v4531 = vsel %vm1728, %v4451, -3e+38
        %v4532 = vsel %vm1729, %v4452, -3e+38
        %v4533 = vsel %vm1730, %v4453, -3e+38
        %v4534 = vsel %vm1731, %v4454, -3e+38
        %v4535 = vsel %vm1732, %v4455, -3e+38
        %v4536 = vsel %vm1733, %v4456, -3e+38
        %v4537 = vsel %vm1734, %v4457, -3e+38
        %v4538 = vsel %vm1735, %v4458, -3e+38
        %v4539 = vsel %vm1736, %v4459, -3e+38
        %v4540 = vsel %vm1737, %v4444, -3e+38
        %v4541 = vsel %vm1738, %v4445, -3e+38
        %v4542 = vsel %vm1739, %v4446, -3e+38
        %v4543 = vsel %vm1740, %v4447, -3e+38
        %v4544 = vsel %vm1741, %v4448, -3e+38
        %v4545 = vsel %vm1742, %v4449, -3e+38
        %v4546 = vsel %vm1743, %v4450, -3e+38
        %v4547 = vsel %vm1744, %v4451, -3e+38
        %v4548 = vsel %vm1745, %v4452, -3e+38
        %v4549 = vsel %vm1746, %v4453, -3e+38
        %v4550 = vsel %vm1747, %v4454, -3e+38
        %v4551 = vsel %vm1748, %v4455, -3e+38
        %v4552 = vsel %vm1749, %v4456, -3e+38
        %v4553 = vsel %vm1750, %v4457, -3e+38
        %v4554 = vsel %vm1751, %v4458, -3e+38
        %v4555 = vsel %vm1752, %v4459, -3e+38
        %v4556 = vsel %vm1753, %v4444, -3e+38
        %v4557 = vsel %vm1754, %v4445, -3e+38
        %v4558 = vsel %vm1755, %v4446, -3e+38
        %v4559 = vsel %vm1756, %v4447, -3e+38
        %v4560 = vsel %vm1757, %v4448, -3e+38
        %v4561 = vsel %vm1758, %v4449, -3e+38
        %v4562 = vsel %vm1759, %v4450, -3e+38
        %v4563 = vsel %vm1760, %v4451, -3e+38
        %v4564 = vsel %vm1761, %v4452, -3e+38
        %v4565 = vsel %vm1762, %v4453, -3e+38
        %v4566 = vsel %vm1763, %v4454, -3e+38
        %v4567 = vsel %vm1764, %v4455, -3e+38
        %v4568 = vsel %vm1765, %v4456, -3e+38
        %v4569 = vsel %vm1766, %v4457, -3e+38
        %v4570 = vsel %vm1767, %v4458, -3e+38
        %v4571 = vsel %vm1768, %v4459, -3e+38
        %v4572 = vsel %vm1769, %v4444, -3e+38
        %v4573 = vsel %vm1770, %v4445, -3e+38
        %v4574 = vsel %vm1771, %v4446, -3e+38
        %v4575 = vsel %vm1772, %v4447, -3e+38
        %v4576 = vsel %vm1773, %v4448, -3e+38
        %v4577 = vsel %vm1774, %v4449, -3e+38
        %v4578 = vsel %vm1775, %v4450, -3e+38
        %v4579 = vsel %vm1776, %v4451, -3e+38
        %v4580 = vsel %vm1777, %v4452, -3e+38
        %v4581 = vsel %vm1778, %v4453, -3e+38
        %v4582 = vsel %vm1779, %v4454, -3e+38
        %v4583 = vsel %vm1780, %v4455, -3e+38
        %v4584 = vsel %vm1781, %v4456, -3e+38
        %v4585 = vsel %vm1782, %v4457, -3e+38
        %v4586 = vsel %vm1783, %v4458, -3e+38
        %v4587 = vsel %vm1784, %v4459, -3e+38
        %v4588 = vsel %vm1785, %v4444, -3e+38
        %v4589 = vsel %vm1786, %v4445, -3e+38
        %v4590 = vsel %vm1787, %v4446, -3e+38
        %v4591 = vsel %vm1788, %v4447, -3e+38
        %v4592 = vsel %vm1789, %v4448, -3e+38
        %v4593 = vsel %vm1790, %v4449, -3e+38
        %v4594 = vsel %vm1791, %v4450, -3e+38
        %v4595 = vsel %vm1792, %v4451, -3e+38
        %v4596 = vsel %vm1793, %v4452, -3e+38
        %v4597 = vsel %vm1794, %v4453, -3e+38
        %v4598 = vsel %vm1795, %v4454, -3e+38
        %v4599 = vsel %vm1796, %v4455, -3e+38
        %v4600 = vsel %vm1797, %v4456, -3e+38
        %v4601 = vsel %vm1798, %v4457, -3e+38
        %v4602 = vsel %vm1799, %v4458, -3e+38
        %v4603 = vsel %vm1800, %v4459, -3e+38
        %v4604 = vsel %vm1801, %v4444, -3e+38
        %v4605 = vsel %vm1802, %v4445, -3e+38
        %v4606 = vsel %vm1803, %v4446, -3e+38
        %v4607 = vsel %vm1804, %v4447, -3e+38
        %v4608 = vsel %vm1805, %v4448, -3e+38
        %v4609 = vsel %vm1806, %v4449, -3e+38
        %v4610 = vsel %vm1807, %v4450, -3e+38
        %v4611 = vsel %vm1808, %v4451, -3e+38
        %v4612 = vsel %vm1809, %v4452, -3e+38
        %v4613 = vsel %vm1810, %v4453, -3e+38
        %v4614 = vsel %vm1811, %v4454, -3e+38
        %v4615 = vsel %vm1812, %v4455, -3e+38
        %v4616 = vsel %vm1813, %v4456, -3e+38
        %v4617 = vsel %vm1814, %v4457, -3e+38
        %v4618 = vsel %vm1815, %v4458, -3e+38
        %v4619 = vsel %vm1816, %v4459, -3e+38
        %v4620 = vsel %vm1817, %v4444, -3e+38
        %v4621 = vsel %vm1818, %v4445, -3e+38
        %v4622 = vsel %vm1819, %v4446, -3e+38
        %v4623 = vsel %vm1820, %v4447, -3e+38
        %v4624 = vsel %vm1821, %v4448, -3e+38
        %v4625 = vsel %vm1822, %v4449, -3e+38
        %v4626 = vsel %vm1823, %v4450, -3e+38
        %v4627 = vsel %vm1824, %v4451, -3e+38
        %v4628 = vsel %vm1825, %v4452, -3e+38
        %v4629 = vsel %vm1826, %v4453, -3e+38
        %v4630 = vsel %vm1827, %v4454, -3e+38
        %v4631 = vsel %vm1828, %v4455, -3e+38
        %v4632 = vsel %vm1829, %v4456, -3e+38
        %v4633 = vsel %vm1830, %v4457, -3e+38
        %v4634 = vsel %vm1831, %v4458, -3e+38
        %v4635 = vsel %vm1832, %v4459, -3e+38
        %v4636 = vsel %vm1833, %v4444, -3e+38
        %v4637 = vsel %vm1834, %v4445, -3e+38
        %v4638 = vsel %vm1835, %v4446, -3e+38
        %v4639 = vsel %vm1836, %v4447, -3e+38
        %v4640 = vsel %vm1837, %v4448, -3e+38
        %v4641 = vsel %vm1838, %v4449, -3e+38
        %v4642 = vsel %vm1839, %v4450, -3e+38
        %v4643 = vsel %vm1840, %v4451, -3e+38
        %v4644 = vsel %vm1841, %v4452, -3e+38
        %v4645 = vsel %vm1842, %v4453, -3e+38
        %v4646 = vsel %vm1843, %v4454, -3e+38
        %v4647 = vsel %vm1844, %v4455, -3e+38
        %v4648 = vsel %vm1845, %v4456, -3e+38
        %v4649 = vsel %vm1846, %v4457, -3e+38
        %v4650 = vsel %vm1847, %v4458, -3e+38
        %v4651 = vsel %vm1848, %v4459, -3e+38
        %v4652 = vsel %vm1849, %v4444, -3e+38
        %v4653 = vsel %vm1850, %v4445, -3e+38
        %v4654 = vsel %vm1851, %v4446, -3e+38
        %v4655 = vsel %vm1852, %v4447, -3e+38
        %v4656 = vsel %vm1853, %v4448, -3e+38
        %v4657 = vsel %vm1854, %v4449, -3e+38
        %v4658 = vsel %vm1855, %v4450, -3e+38
        %v4659 = vsel %vm1856, %v4451, -3e+38
        %v4660 = vsel %vm1857, %v4452, -3e+38
        %v4661 = vsel %vm1858, %v4453, -3e+38
        %v4662 = vsel %vm1859, %v4454, -3e+38
        %v4663 = vsel %vm1860, %v4455, -3e+38
        %v4664 = vsel %vm1861, %v4456, -3e+38
        %v4665 = vsel %vm1862, %v4457, -3e+38
        %v4666 = vsel %vm1863, %v4458, -3e+38
        %v4667 = vsel %vm1864, %v4459, -3e+38
        %v4668 = vsel %vm1865, %v4444, -3e+38
        %v4669 = vsel %vm1866, %v4445, -3e+38
        %v4670 = vsel %vm1867, %v4446, -3e+38
        %v4671 = vsel %vm1868, %v4447, -3e+38
        %v4672 = vsel %vm1869, %v4448, -3e+38
        %v4673 = vsel %vm1870, %v4449, -3e+38
        %v4674 = vsel %vm1871, %v4450, -3e+38
        %v4675 = vsel %vm1872, %v4451, -3e+38
        %v4676 = vsel %vm1873, %v4452, -3e+38
        %v4677 = vsel %vm1874, %v4453, -3e+38
        %v4678 = vsel %vm1875, %v4454, -3e+38
        %v4679 = vsel %vm1876, %v4455, -3e+38
        %v4680 = vsel %vm1877, %v4456, -3e+38
        %v4681 = vsel %vm1878, %v4457, -3e+38
        %v4682 = vsel %vm1879, %v4458, -3e+38
        %v4683 = vsel %vm1880, %v4459, -3e+38
        %v4684 = vsel %vm1881, %v4444, -3e+38
        %v4685 = vsel %vm1882, %v4445, -3e+38
        %v4686 = vsel %vm1883, %v4446, -3e+38
        %v4687 = vsel %vm1884, %v4447, -3e+38
        %v4688 = vsel %vm1885, %v4448, -3e+38
        %v4689 = vsel %vm1886, %v4449, -3e+38
        %v4690 = vsel %vm1887, %v4450, -3e+38
        %v4691 = vsel %vm1888, %v4451, -3e+38
        %v4692 = vsel %vm1889, %v4452, -3e+38
        %v4693 = vsel %vm1890, %v4453, -3e+38
        %v4694 = vsel %vm1891, %v4454, -3e+38
        %v4695 = vsel %vm1892, %v4455, -3e+38
        %v4696 = vsel %vm1893, %v4456, -3e+38
        %v4697 = vsel %vm1894, %v4457, -3e+38
        %v4698 = vsel %vm1895, %v4458, -3e+38
        %v4699 = vsel %vm1896, %v4459, -3e+38
        %v4700 = vsel %vm1897, %v4444, -3e+38
        %v4701 = vsel %vm1898, %v4445, -3e+38
        %v4702 = vsel %vm1899, %v4446, -3e+38
        %v4703 = vsel %vm1900, %v4447, -3e+38
        %v4704 = vsel %vm1901, %v4448, -3e+38
        %v4705 = vsel %vm1902, %v4449, -3e+38
        %v4706 = vsel %vm1903, %v4450, -3e+38
        %v4707 = vsel %vm1904, %v4451, -3e+38
        %v4708 = vsel %vm1905, %v4452, -3e+38
        %v4709 = vsel %vm1906, %v4453, -3e+38
        %v4710 = vsel %vm1907, %v4454, -3e+38
        %v4711 = vsel %vm1908, %v4455, -3e+38
        %v4712 = vsel %vm1909, %v4456, -3e+38
        %v4713 = vsel %vm1910, %v4457, -3e+38
        %v4714 = vsel %vm1911, %v4458, -3e+38
        %v4715 = vsel %vm1912, %v4459, -3e+38
        %v4716 = vmax.f32 %v4460, %v4461
        %v4717 = vmax.f32 %v4716, %v4462
        %v4718 = vmax.f32 %v4717, %v4463
        %v4719 = vmax.f32 %v4718, %v4464
        %v4720 = vmax.f32 %v4719, %v4465
        %v4721 = vmax.f32 %v4720, %v4466
        %v4722 = vmax.f32 %v4721, %v4467
        %v4723 = vmax.f32 %v4722, %v4468
        %v4724 = vmax.f32 %v4723, %v4469
        %v4725 = vmax.f32 %v4724, %v4470
        %v4726 = vmax.f32 %v4725, %v4471
        %v4727 = vmax.f32 %v4726, %v4472
        %v4728 = vmax.f32 %v4727, %v4473
        %v4729 = vmax.f32 %v4728, %v4474
        %v4730 = vmax.f32 %v4729, %v4475
        %v4731 = vrot.slane %v4730, 4
        %v4732 = vmax.f32 %v4730, %v4731
        %v4733 = vrot.slane %v4732, 2
        %v4734 = vmax.f32 %v4732, %v4733
        %v4735 = vrot.slane %v4734, 1
        %v4736 = vmax.f32 %v4734, %v4735
        %v4737 = vmax.f32 %v4476, %v4477
        %v4738 = vmax.f32 %v4737, %v4478
        %v4739 = vmax.f32 %v4738, %v4479
        %v4740 = vmax.f32 %v4739, %v4480
        %v4741 = vmax.f32 %v4740, %v4481
        %v4742 = vmax.f32 %v4741, %v4482
        %v4743 = vmax.f32 %v4742, %v4483
        %v4744 = vmax.f32 %v4743, %v4484
        %v4745 = vmax.f32 %v4744, %v4485
        %v4746 = vmax.f32 %v4745, %v4486
        %v4747 = vmax.f32 %v4746, %v4487
        %v4748 = vmax.f32 %v4747, %v4488
        %v4749 = vmax.f32 %v4748, %v4489
        %v4750 = vmax.f32 %v4749, %v4490
        %v4751 = vmax.f32 %v4750, %v4491
        %v4752 = vrot.slane %v4751, 4
        %v4753 = vmax.f32 %v4751, %v4752
        %v4754 = vrot.slane %v4753, 2
        %v4755 = vmax.f32 %v4753, %v4754
        %v4756 = vrot.slane %v4755, 1
        %v4757 = vmax.f32 %v4755, %v4756
        %v4758 = vmax.f32 %v4492, %v4493
        %v4759 = vmax.f32 %v4758, %v4494
        %v4760 = vmax.f32 %v4759, %v4495
        %v4761 = vmax.f32 %v4760, %v4496
        %v4762 = vmax.f32 %v4761, %v4497
        %v4763 = vmax.f32 %v4762, %v4498
        %v4764 = vmax.f32 %v4763, %v4499
        %v4765 = vmax.f32 %v4764, %v4500
        %v4766 = vmax.f32 %v4765, %v4501
        %v4767 = vmax.f32 %v4766, %v4502
        %v4768 = vmax.f32 %v4767, %v4503
        %v4769 = vmax.f32 %v4768, %v4504
        %v4770 = vmax.f32 %v4769, %v4505
        %v4771 = vmax.f32 %v4770, %v4506
        %v4772 = vmax.f32 %v4771, %v4507
        %v4773 = vrot.slane %v4772, 4
        %v4774 = vmax.f32 %v4772, %v4773
        %v4775 = vrot.slane %v4774, 2
        %v4776 = vmax.f32 %v4774, %v4775
        %v4777 = vrot.slane %v4776, 1
        %v4778 = vmax.f32 %v4776, %v4777
        %v4779 = vmax.f32 %v4508, %v4509
        %v4780 = vmax.f32 %v4779, %v4510
        %v4781 = vmax.f32 %v4780, %v4511
        %v4782 = vmax.f32 %v4781, %v4512
        %v4783 = vmax.f32 %v4782, %v4513
        %v4784 = vmax.f32 %v4783, %v4514
        %v4785 = vmax.f32 %v4784, %v4515
        %v4786 = vmax.f32 %v4785, %v4516
        %v4787 = vmax.f32 %v4786, %v4517
        %v4788 = vmax.f32 %v4787, %v4518
        %v4789 = vmax.f32 %v4788, %v4519
        %v4790 = vmax.f32 %v4789, %v4520
        %v4791 = vmax.f32 %v4790, %v4521
        %v4792 = vmax.f32 %v4791, %v4522
        %v4793 = vmax.f32 %v4792, %v4523
        %v4794 = vrot.slane %v4793, 4
        %v4795 = vmax.f32 %v4793, %v4794
        %v4796 = vrot.slane %v4795, 2
        %v4797 = vmax.f32 %v4795, %v4796
        %v4798 = vrot.slane %v4797, 1
        %v4799 = vmax.f32 %v4797, %v4798
        %v4800 = vmax.f32 %v4524, %v4525
        %v4801 = vmax.f32 %v4800, %v4526
        %v4802 = vmax.f32 %v4801, %v4527
        %v4803 = vmax.f32 %v4802, %v4528
        %v4804 = vmax.f32 %v4803, %v4529
        %v4805 = vmax.f32 %v4804, %v4530
        %v4806 = vmax.f32 %v4805, %v4531
        %v4807 = vmax.f32 %v4806, %v4532
        %v4808 = vmax.f32 %v4807, %v4533
        %v4809 = vmax.f32 %v4808, %v4534
        %v4810 = vmax.f32 %v4809, %v4535
        %v4811 = vmax.f32 %v4810, %v4536
        %v4812 = vmax.f32 %v4811, %v4537
        %v4813 = vmax.f32 %v4812, %v4538
        %v4814 = vmax.f32 %v4813, %v4539
        %v4815 = vrot.slane %v4814, 4
        %v4816 = vmax.f32 %v4814, %v4815
        %v4817 = vrot.slane %v4816, 2
        %v4818 = vmax.f32 %v4816, %v4817
        %v4819 = vrot.slane %v4818, 1
        %v4820 = vmax.f32 %v4818, %v4819
        %v4821 = vmax.f32 %v4540, %v4541
        %v4822 = vmax.f32 %v4821, %v4542
        %v4823 = vmax.f32 %v4822, %v4543
        %v4824 = vmax.f32 %v4823, %v4544
        %v4825 = vmax.f32 %v4824, %v4545
        %v4826 = vmax.f32 %v4825, %v4546
        %v4827 = vmax.f32 %v4826, %v4547
        %v4828 = vmax.f32 %v4827, %v4548
        %v4829 = vmax.f32 %v4828, %v4549
        %v4830 = vmax.f32 %v4829, %v4550
        %v4831 = vmax.f32 %v4830, %v4551
        %v4832 = vmax.f32 %v4831, %v4552
        %v4833 = vmax.f32 %v4832, %v4553
        %v4834 = vmax.f32 %v4833, %v4554
        %v4835 = vmax.f32 %v4834, %v4555
        %v4836 = vrot.slane %v4835, 4
        %v4837 = vmax.f32 %v4835, %v4836
        %v4838 = vrot.slane %v4837, 2
        %v4839 = vmax.f32 %v4837, %v4838
        %v4840 = vrot.slane %v4839, 1
        %v4841 = vmax.f32 %v4839, %v4840
        %v4842 = vmax.f32 %v4556, %v4557
        %v4843 = vmax.f32 %v4842, %v4558
        %v4844 = vmax.f32 %v4843, %v4559
        %v4845 = vmax.f32 %v4844, %v4560
        %v4846 = vmax.f32 %v4845, %v4561
        %v4847 = vmax.f32 %v4846, %v4562
        %v4848 = vmax.f32 %v4847, %v4563
        %v4849 = vmax.f32 %v4848, %v4564
        %v4850 = vmax.f32 %v4849, %v4565
        %v4851 = vmax.f32 %v4850, %v4566
        %v4852 = vmax.f32 %v4851, %v4567
        %v4853 = vmax.f32 %v4852, %v4568
        %v4854 = vmax.f32 %v4853, %v4569
        %v4855 = vmax.f32 %v4854, %v4570
        %v4856 = vmax.f32 %v4855, %v4571
        %v4857 = vrot.slane %v4856, 4
        %v4858 = vmax.f32 %v4856, %v4857
        %v4859 = vrot.slane %v4858, 2
        %v4860 = vmax.f32 %v4858, %v4859
        %v4861 = vrot.slane %v4860, 1
        %v4862 = vmax.f32 %v4860, %v4861
        %v4863 = vmax.f32 %v4572, %v4573
        %v4864 = vmax.f32 %v4863, %v4574
        %v4865 = vmax.f32 %v4864, %v4575
        %v4866 = vmax.f32 %v4865, %v4576
        %v4867 = vmax.f32 %v4866, %v4577
        %v4868 = vmax.f32 %v4867, %v4578
        %v4869 = vmax.f32 %v4868, %v4579
        %v4870 = vmax.f32 %v4869, %v4580
        %v4871 = vmax.f32 %v4870, %v4581
        %v4872 = vmax.f32 %v4871, %v4582
        %v4873 = vmax.f32 %v4872, %v4583
        %v4874 = vmax.f32 %v4873, %v4584
        %v4875 = vmax.f32 %v4874, %v4585
        %v4876 = vmax.f32 %v4875, %v4586
        %v4877 = vmax.f32 %v4876, %v4587
        %v4878 = vrot.slane %v4877, 4
        %v4879 = vmax.f32 %v4877, %v4878
        %v4880 = vrot.slane %v4879, 2
        %v4881 = vmax.f32 %v4879, %v4880
        %v4882 = vrot.slane %v4881, 1
        %v4883 = vmax.f32 %v4881, %v4882
        %v4884 = vmax.f32 %v4588, %v4589
        %v4885 = vmax.f32 %v4884, %v4590
        %v4886 = vmax.f32 %v4885, %v4591
        %v4887 = vmax.f32 %v4886, %v4592
        %v4888 = vmax.f32 %v4887, %v4593
        %v4889 = vmax.f32 %v4888, %v4594
        %v4890 = vmax.f32 %v4889, %v4595
        %v4891 = vmax.f32 %v4890, %v4596
        %v4892 = vmax.f32 %v4891, %v4597
        %v4893 = vmax.f32 %v4892, %v4598
        %v4894 = vmax.f32 %v4893, %v4599
        %v4895 = vmax.f32 %v4894, %v4600
        %v4896 = vmax.f32 %v4895, %v4601
        %v4897 = vmax.f32 %v4896, %v4602
        %v4898 = vmax.f32 %v4897, %v4603
        %v4899 = vrot.slane %v4898, 4
        %v4900 = vmax.f32 %v4898, %v4899
        %v4901 = vrot.slane %v4900, 2
        %v4902 = vmax.f32 %v4900, %v4901
        %v4903 = vrot.slane %v4902, 1
        %v4904 = vmax.f32 %v4902, %v4903
        %v4905 = vmax.f32 %v4604, %v4605
        %v4906 = vmax.f32 %v4905, %v4606
        %v4907 = vmax.f32 %v4906, %v4607
        %v4908 = vmax.f32 %v4907, %v4608
        %v4909 = vmax.f32 %v4908, %v4609
        %v4910 = vmax.f32 %v4909, %v4610
        %v4911 = vmax.f32 %v4910, %v4611
        %v4912 = vmax.f32 %v4911, %v4612
        %v4913 = vmax.f32 %v4912, %v4613
        %v4914 = vmax.f32 %v4913, %v4614
        %v4915 = vmax.f32 %v4914, %v4615
        %v4916 = vmax.f32 %v4915, %v4616
        %v4917 = vmax.f32 %v4916, %v4617
        %v4918 = vmax.f32 %v4917, %v4618
        %v4919 = vmax.f32 %v4918, %v4619
        %v4920 = vrot.slane %v4919, 4
        %v4921 = vmax.f32 %v4919, %v4920
        %v4922 = vrot.slane %v4921, 2
        %v4923 = vmax.f32 %v4921, %v4922
        %v4924 = vrot.slane %v4923, 1
        %v4925 = vmax.f32 %v4923, %v4924
        %v4926 = vmax.f32 %v4620, %v4621
        %v4927 = vmax.f32 %v4926, %v4622
        %v4928 = vmax.f32 %v4927, %v4623
        %v4929 = vmax.f32 %v4928, %v4624
        %v4930 = vmax.f32 %v4929, %v4625
        %v4931 = vmax.f32 %v4930, %v4626
        %v4932 = vmax.f32 %v4931, %v4627
        %v4933 = vmax.f32 %v4932, %v4628
        %v4934 = vmax.f32 %v4933, %v4629
        %v4935 = vmax.f32 %v4934, %v4630
        %v4936 = vmax.f32 %v4935, %v4631
        %v4937 = vmax.f32 %v4936, %v4632
        %v4938 = vmax.f32 %v4937, %v4633
        %v4939 = vmax.f32 %v4938, %v4634
        %v4940 = vmax.f32 %v4939, %v4635
        %v4941 = vrot.slane %v4940, 4
        %v4942 = vmax.f32 %v4940, %v4941
        %v4943 = vrot.slane %v4942, 2
        %v4944 = vmax.f32 %v4942, %v4943
        %v4945 = vrot.slane %v4944, 1
        %v4946 = vmax.f32 %v4944, %v4945
        %v4947 = vmax.f32 %v4636, %v4637
        %v4948 = vmax.f32 %v4947, %v4638
        %v4949 = vmax.f32 %v4948, %v4639
        %v4950 = vmax.f32 %v4949, %v4640
        %v4951 = vmax.f32 %v4950, %v4641
        %v4952 = vmax.f32 %v4951, %v4642
        %v4953 = vmax.f32 %v4952, %v4643
        %v4954 = vmax.f32 %v4953, %v4644
        %v4955 = vmax.f32 %v4954, %v4645
        %v4956 = vmax.f32 %v4955, %v4646
        %v4957 = vmax.f32 %v4956, %v4647
        %v4958 = vmax.f32 %v4957, %v4648
        %v4959 = vmax.f32 %v4958, %v4649
        %v4960 = vmax.f32 %v4959, %v4650
        %v4961 = vmax.f32 %v4960, %v4651
        %v4962 = vrot.slane %v4961, 4
        %v4963 = vmax.f32 %v4961, %v4962
        %v4964 = vrot.slane %v4963, 2
        %v4965 = vmax.f32 %v4963, %v4964
        %v4966 = vrot.slane %v4965, 1
        %v4967 = vmax.f32 %v4965, %v4966
        %v4968 = vmax.f32 %v4652, %v4653
        %v4969 = vmax.f32 %v4968, %v4654
        %v4970 = vmax.f32 %v4969, %v4655
        %v4971 = vmax.f32 %v4970, %v4656
        %v4972 = vmax.f32 %v4971, %v4657
        %v4973 = vmax.f32 %v4972, %v4658
        %v4974 = vmax.f32 %v4973, %v4659
        %v4975 = vmax.f32 %v4974, %v4660
        %v4976 = vmax.f32 %v4975, %v4661
        %v4977 = vmax.f32 %v4976, %v4662
        %v4978 = vmax.f32 %v4977, %v4663
        %v4979 = vmax.f32 %v4978, %v4664
        %v4980 = vmax.f32 %v4979, %v4665
        %v4981 = vmax.f32 %v4980, %v4666
        %v4982 = vmax.f32 %v4981, %v4667
        %v4983 = vrot.slane %v4982, 4
        %v4984 = vmax.f32 %v4982, %v4983
        %v4985 = vrot.slane %v4984, 2
        %v4986 = vmax.f32 %v4984, %v4985
        %v4987 = vrot.slane %v4986, 1
        %v4988 = vmax.f32 %v4986, %v4987
        %v4989 = vmax.f32 %v4668, %v4669
        %v4990 = vmax.f32 %v4989, %v4670
        %v4991 = vmax.f32 %v4990, %v4671
        %v4992 = vmax.f32 %v4991, %v4672
        %v4993 = vmax.f32 %v4992, %v4673
        %v4994 = vmax.f32 %v4993, %v4674
        %v4995 = vmax.f32 %v4994, %v4675
        %v4996 = vmax.f32 %v4995, %v4676
        %v4997 = vmax.f32 %v4996, %v4677
        %v4998 = vmax.f32 %v4997, %v4678
        %v4999 = vmax.f32 %v4998, %v4679
        %v5000 = vmax.f32 %v4999, %v4680
        %v5001 = vmax.f32 %v5000, %v4681
        %v5002 = vmax.f32 %v5001, %v4682
        %v5003 = vmax.f32 %v5002, %v4683
        %v5004 = vrot.slane %v5003, 4
        %v5005 = vmax.f32 %v5003, %v5004
        %v5006 = vrot.slane %v5005, 2
        %v5007 = vmax.f32 %v5005, %v5006
        %v5008 = vrot.slane %v5007, 1
        %v5009 = vmax.f32 %v5007, %v5008
        %v5010 = vmax.f32 %v4684, %v4685
        %v5011 = vmax.f32 %v5010, %v4686
        %v5012 = vmax.f32 %v5011, %v4687
        %v5013 = vmax.f32 %v5012, %v4688
        %v5014 = vmax.f32 %v5013, %v4689
        %v5015 = vmax.f32 %v5014, %v4690
        %v5016 = vmax.f32 %v5015, %v4691
        %v5017 = vmax.f32 %v5016, %v4692
        %v5018 = vmax.f32 %v5017, %v4693
        %v5019 = vmax.f32 %v5018, %v4694
        %v5020 = vmax.f32 %v5019, %v4695
        %v5021 = vmax.f32 %v5020, %v4696
        %v5022 = vmax.f32 %v5021, %v4697
        %v5023 = vmax.f32 %v5022, %v4698
        %v5024 = vmax.f32 %v5023, %v4699
        %v5025 = vrot.slane %v5024, 4
        %v5026 = vmax.f32 %v5024, %v5025
        %v5027 = vrot.slane %v5026, 2
        %v5028 = vmax.f32 %v5026, %v5027
        %v5029 = vrot.slane %v5028, 1
        %v5030 = vmax.f32 %v5028, %v5029
        %v5031 = vmax.f32 %v4700, %v4701
        %v5032 = vmax.f32 %v5031, %v4702
        %v5033 = vmax.f32 %v5032, %v4703
        %v5034 = vmax.f32 %v5033, %v4704
        %v5035 = vmax.f32 %v5034, %v4705
        %v5036 = vmax.f32 %v5035, %v4706
        %v5037 = vmax.f32 %v5036, %v4707
        %v5038 = vmax.f32 %v5037, %v4708
        %v5039 = vmax.f32 %v5038, %v4709
        %v5040 = vmax.f32 %v5039, %v4710
        %v5041 = vmax.f32 %v5040, %v4711
        %v5042 = vmax.f32 %v5041, %v4712
        %v5043 = vmax.f32 %v5042, %v4713
        %v5044 = vmax.f32 %v5043, %v4714
        %v5045 = vmax.f32 %v5044, %v4715
        %v5046 = vrot.slane %v5045, 4
        %v5047 = vmax.f32 %v5045, %v5046
        %v5048 = vrot.slane %v5047, 2
        %v5049 = vmax.f32 %v5047, %v5048
        %v5050 = vrot.slane %v5049, 1
        %v5051 = vmax.f32 %v5049, %v5050
        %v5052 = vmax.f32 %v4736, -3e+38
        %v5053 = vmax.f32 %v4757, -3e+38
        %v5054 = vmax.f32 %v4778, -3e+38
        %v5055 = vmax.f32 %v4799, -3e+38
        %v5056 = vmax.f32 %v4820, -3e+38
        %v5057 = vmax.f32 %v4841, -3e+38
        %v5058 = vmax.f32 %v4862, -3e+38
        %v5059 = vmax.f32 %v4883, -3e+38
        %v5060 = vmax.f32 %v4904, -3e+38
        %v5061 = vmax.f32 %v4925, -3e+38
        %v5062 = vmax.f32 %v4946, -3e+38
        %v5063 = vmax.f32 %v4967, -3e+38
        %v5064 = vmax.f32 %v4988, -3e+38
        %v5065 = vmax.f32 %v5009, -3e+38
        %v5066 = vmax.f32 %v5030, -3e+38
        %v5067 = vmax.f32 %v5051, -3e+38
        %v5084 = vsel %vm2537, %v5053, %v5052
        %v5085 = vsel %vm2539, %v5054, %v5084
        %v5086 = vsel %vm2541, %v5055, %v5085
        %v5087 = vsel %vm2543, %v5056, %v5086
        %v5088 = vsel %vm2545, %v5057, %v5087
        %v5089 = vsel %vm2547, %v5058, %v5088
        %v5090 = vsel %vm2549, %v5059, %v5089
        %v5091 = vsel %vm2537, %v5061, %v5060
        %v5092 = vsel %vm2539, %v5062, %v5091
        %v5093 = vsel %vm2541, %v5063, %v5092
        %v5094 = vsel %vm2543, %v5064, %v5093
        %v5095 = vsel %vm2545, %v5065, %v5094
        %v5096 = vsel %vm2547, %v5066, %v5095
        %v5097 = vsel %vm2549, %v5067, %v5096
        %5100 = vrot.lane.b32.xlu0 %v5090, 96
        %v5101 = vpop.permute.xlu0 %5100
        %5102 = vrot.lane.b32.xlu0 %v5097, 96
        %v5103 = vpop.permute.xlu0 %5102
        %5106 = vrot.lane.b32.xlu0 %v5090, 64
        %v5107 = vpop.permute.xlu0 %5106
        %5108 = vrot.lane.b32.xlu0 %v5097, 64
        %v5109 = vpop.permute.xlu0 %5108
        %5112 = vrot.lane.b32.xlu0 %v5090, 32
        %v5113 = vpop.permute.xlu0 %5112
        %5114 = vrot.lane.b32.xlu0 %v5097, 32
        %v5115 = vpop.permute.xlu0 %5114
        %v5118 = vsel %vm2586, %v5090, 0.0
        %v5119 = vsel %vm2587, %v5097, 0.0
        %v5120 = vsel %vm2588, %v5101, 0.0
        %v5121 = vsel %vm2589, %v5103, 0.0
        %v5122 = vsel %vm2590, %v5107, 0.0
        %v5123 = vsel %vm2591, %v5109, 0.0
        %v5124 = vsel %vm2592, %v5113, 0.0
        %v5125 = vsel %vm2593, %v5115, 0.0
        %v5126 = vmul.f32 %v4229, %v5118
        %v5127 = vmul.f32 %v4232, %v5119
        %v5128 = vmul.f32 %v4235, %v5120
        %v5129 = vmul.f32 %v4238, %v5121
        %v5130 = vmul.f32 %v4241, %v5122
        %v5131 = vmul.f32 %v4244, %v5123
        %v5132 = vmul.f32 %v4247, %v5124
        %v5133 = vmul.f32 %v4250, %v5125
        %v5135 = vsel %vm1020, %v3897, 0
        %v5138 = vsel %vm1020, %v3898, 0
        %v5141 = vsel %vm1020, %v3899, 0
        %v5144 = vsel %vm1020, %v3900, 0
        %v5147 = vsel %vm1020, %v3901, 0
        %v5150 = vsel %vm1020, %v3902, 0
        %v5153 = vsel %vm1020, %v3903, 0
        %v5156 = vsel %vm1020, %v3904, 0
        %5158 = vmatpush.msra.mxu0 0.0
        %5159 = vmatpush.msra.mxu0 0.0
        %5160 = vmatpush.msra.mxu0 0.0
        %5161 = vmatpush.msra.mxu0 0.0
        %5162 = vmatpush.msra.mxu0 0.0
        %5163 = vmatpush.msra.mxu0 0.0
        %5164 = vmatpush.msra.mxu0 0.0
        %5165 = vmatpush.msra.mxu0 0.0
        %5166 = vmatpush.msra.mxu0 0.0
        %5167 = vmatpush.msra.mxu0 0.0
        %5168 = vmatpush.msra.mxu0 0.0
        %5169 = vmatpush.msra.mxu0 0.0
        %5170 = vmatpush.msra.mxu0 %v686
        %5171 = vmatpush.msra.mxu0 %v685
        %5172 = vmatpush.msra.mxu0 %v684
        %5173 = vmatpush.msra.mxu0 %v683
        %5174 = vmatmul.f32.gmra.mxu0 %v5135
        %v5175 = vpop.f32.mrf.mxu0
        %v5176 = vadd.f32 0.0, %v5175
        %5177 = vmatmul.f32.gmra.mxu0 %v5138
        %v5178 = vpop.f32.mrf.mxu0
        %v5179 = vadd.f32 0.0, %v5178
        %5180 = vmatmul.f32.gmra.mxu0 %v5141
        %v5181 = vpop.f32.mrf.mxu0
        %v5182 = vadd.f32 0.0, %v5181
        %5183 = vmatmul.f32.gmra.mxu0 %v5144
        %v5184 = vpop.f32.mrf.mxu0
        %v5185 = vadd.f32 0.0, %v5184
        %5186 = vmatmul.f32.gmra.mxu0 %v5147
        %v5187 = vpop.f32.mrf.mxu0
        %v5188 = vadd.f32 0.0, %v5187
        %5189 = vmatmul.f32.gmra.mxu0 %v5150
        %v5190 = vpop.f32.mrf.mxu0
        %v5191 = vadd.f32 0.0, %v5190
        %5192 = vmatmul.f32.gmra.mxu0 %v5153
        %v5193 = vpop.f32.mrf.mxu0
        %v5194 = vadd.f32 0.0, %v5193
        %5195 = vmatmul.f32.gmra.mxu0 %v5156
        %v5196 = vpop.f32.mrf.mxu0
        %v5197 = vadd.f32 0.0, %v5196
        %5198 = vdwg.mxu0
        %v5200 = vsel %vm1020, %v5126, 0
        %v5203 = vsel %vm1020, %v5127, 0
        %v5206 = vsel %vm1020, %v5128, 0
        %v5209 = vsel %vm1020, %v5129, 0
        %v5212 = vsel %vm1020, %v5130, 0
        %v5215 = vsel %vm1020, %v5131, 0
        %v5218 = vsel %vm1020, %v5132, 0
        %v5221 = vsel %vm1020, %v5133, 0
        %5223 = vmatpush.msra.mxu0 0.0
        %5224 = vmatpush.msra.mxu0 0.0
        %5225 = vmatpush.msra.mxu0 0.0
        %5226 = vmatpush.msra.mxu0 0.0
        %5227 = vmatpush.msra.mxu0 0.0
        %5228 = vmatpush.msra.mxu0 0.0
        %5229 = vmatpush.msra.mxu0 0.0
        %5230 = vmatpush.msra.mxu0 0.0
        %5231 = vmatpush.msra.mxu0 0.0
        %5232 = vmatpush.msra.mxu0 0.0
        %5233 = vmatpush.msra.mxu0 0.0
        %5234 = vmatpush.msra.mxu0 0.0
        %5235 = vmatpush.msra.mxu0 %v682
        %5236 = vmatpush.msra.mxu0 %v681
        %5237 = vmatpush.msra.mxu0 %v680
        %5238 = vmatpush.msra.mxu0 %v679
        %5239 = vmatmul.f32.gmra.mxu0 %v5200
        %v5240 = vpop.f32.mrf.mxu0
        %v5241 = vadd.f32 %v5176, %v5240
        %5242 = vmatmul.f32.gmra.mxu0 %v5203
        %v5243 = vpop.f32.mrf.mxu0
        %v5244 = vadd.f32 %v5179, %v5243
        %5245 = vmatmul.f32.gmra.mxu0 %v5206
        %v5246 = vpop.f32.mrf.mxu0
        %v5247 = vadd.f32 %v5182, %v5246
        %5248 = vmatmul.f32.gmra.mxu0 %v5209
        %v5249 = vpop.f32.mrf.mxu0
        %v5250 = vadd.f32 %v5185, %v5249
        %5251 = vmatmul.f32.gmra.mxu0 %v5212
        %v5252 = vpop.f32.mrf.mxu0
        %v5253 = vadd.f32 %v5188, %v5252
        %5254 = vmatmul.f32.gmra.mxu0 %v5215
        %v5255 = vpop.f32.mrf.mxu0
        %v5256 = vadd.f32 %v5191, %v5255
        %5257 = vmatmul.f32.gmra.mxu0 %v5218
        %v5258 = vpop.f32.mrf.mxu0
        %v5259 = vadd.f32 %v5194, %v5258
        %5260 = vmatmul.f32.gmra.mxu0 %v5221
        %v5261 = vpop.f32.mrf.mxu0
        %v5262 = vadd.f32 %v5197, %v5261
        %5263 = vdwg.mxu0
        %v5265 = vsel %vm1020, %v992, 0
        %v5268 = vsel %vm1020, %v993, 0
        %v5271 = vsel %vm1020, %v994, 0
        %v5274 = vsel %vm1020, %v995, 0
        %v5277 = vsel %vm1020, %v996, 0
        %v5280 = vsel %vm1020, %v997, 0
        %v5283 = vsel %vm1020, %v998, 0
        %v5286 = vsel %vm1020, %v999, 0
        %5288 = vmatpush.msra.mxu0 0.0
        %5289 = vmatpush.msra.mxu0 0.0
        %5290 = vmatpush.msra.mxu0 0.0
        %5291 = vmatpush.msra.mxu0 0.0
        %5292 = vmatpush.msra.mxu0 0.0
        %5293 = vmatpush.msra.mxu0 0.0
        %5294 = vmatpush.msra.mxu0 0.0
        %5295 = vmatpush.msra.mxu0 0.0
        %5296 = vmatpush.msra.mxu0 0.0
        %5297 = vmatpush.msra.mxu0 0.0
        %5298 = vmatpush.msra.mxu0 0.0
        %5299 = vmatpush.msra.mxu0 0.0
        %5300 = vmatpush.msra.mxu0 %v690
        %5301 = vmatpush.msra.mxu0 %v689
        %5302 = vmatpush.msra.mxu0 %v688
        %5303 = vmatpush.msra.mxu0 %v687
        %5304 = vmatmul.f32.gmra.mxu0 %v5265
        %v5305 = vpop.f32.mrf.mxu0
        %v5306 = vadd.f32 0.0, %v5305
        %5307 = vmatmul.f32.gmra.mxu0 %v5268
        %v5308 = vpop.f32.mrf.mxu0
        %v5309 = vadd.f32 0.0, %v5308
        %5310 = vmatmul.f32.gmra.mxu0 %v5271
        %v5311 = vpop.f32.mrf.mxu0
        %v5312 = vadd.f32 0.0, %v5311
        %5313 = vmatmul.f32.gmra.mxu0 %v5274
        %v5314 = vpop.f32.mrf.mxu0
        %v5315 = vadd.f32 0.0, %v5314
        %5316 = vmatmul.f32.gmra.mxu0 %v5277
        %v5317 = vpop.f32.mrf.mxu0
        %v5318 = vadd.f32 0.0, %v5317
        %5319 = vmatmul.f32.gmra.mxu0 %v5280
        %v5320 = vpop.f32.mrf.mxu0
        %v5321 = vadd.f32 0.0, %v5320
        %5322 = vmatmul.f32.gmra.mxu0 %v5283
        %v5323 = vpop.f32.mrf.mxu0
        %v5324 = vadd.f32 0.0, %v5323
        %5325 = vmatmul.f32.gmra.mxu0 %v5286
        %v5326 = vpop.f32.mrf.mxu0
        %v5327 = vadd.f32 0.0, %v5326
        %5328 = vdwg.mxu0
        %v5329 = vadd.f32 %v5241, %v5306
        %v5330 = vadd.f32 %v5244, %v5309
        %v5331 = vadd.f32 %v5247, %v5312
        %v5332 = vadd.f32 %v5250, %v5315
        %v5333 = vadd.f32 %v5253, %v5318
        %v5334 = vadd.f32 %v5256, %v5321
        %v5335 = vadd.f32 %v5259, %v5324
        %v5336 = vadd.f32 %v5262, %v5327
        %v5337 = vmax.f32 %v5329, 0.0
        %v5338 = vmax.f32 %v5330, 0.0
        %v5339 = vmax.f32 %v5331, 0.0
        %v5340 = vmax.f32 %v5332, 0.0
        %v5341 = vmax.f32 %v5333, 0.0
        %v5342 = vmax.f32 %v5334, 0.0
        %v5343 = vmax.f32 %v5335, 0.0
        %v5344 = vmax.f32 %v5336, 0.0
        %v5346 = vsel %vm1367, %v670, 0
        %5348 = vmatpush.msra.mxu0 0.0
        %5349 = vmatpush.msra.mxu0 0.0
        %5350 = vmatpush.msra.mxu0 0.0
        %5351 = vmatpush.msra.mxu0 0.0
        %5352 = vmatpush.msra.mxu0 0.0
        %5353 = vmatpush.msra.mxu0 0.0
        %5354 = vmatpush.msra.mxu0 0.0
        %5355 = vmatpush.msra.mxu0 0.0
        %5356 = vmatpush.msra.mxu0 %v5344
        %5357 = vmatpush.msra.mxu0 %v5343
        %5358 = vmatpush.msra.mxu0 %v5342
        %5359 = vmatpush.msra.mxu0 %v5341
        %5360 = vmatpush.msra.mxu0 %v5340
        %5361 = vmatpush.msra.mxu0 %v5339
        %5362 = vmatpush.msra.mxu0 %v5338
        %5363 = vmatpush.msra.mxu0 %v5337
        %5364 = vmatmul.f32.gmra.mxu0 %v5346
        %v5365 = vpop.f32.mrf.mxu0
        %v5366 = vadd.f32 0.0, %v5365
        %5367 = vdwg.mxu0
        %v5368 = vld [vmem:[%s10] sm:$0xff]
        %v5369 = vld [vmem:[%s10 + $0x8] sm:$0xff]
        %v5370 = vld [vmem:[%s10 + $0x10] sm:$0xff]
        %v5371 = vld [vmem:[%s10 + $0x18] sm:$0xff]
        %v5373 = vsel %vm1020, %v5366, 0
        %5375 = vmatpush.msra.mxu0 0.0
        %5376 = vmatpush.msra.mxu0 0.0
        %5377 = vmatpush.msra.mxu0 0.0
        %5378 = vmatpush.msra.mxu0 0.0
        %5379 = vmatpush.msra.mxu0 0.0
        %5380 = vmatpush.msra.mxu0 0.0
        %5381 = vmatpush.msra.mxu0 0.0
        %5382 = vmatpush.msra.mxu0 0.0
        %5383 = vmatpush.msra.mxu0 0.0
        %5384 = vmatpush.msra.mxu0 0.0
        %5385 = vmatpush.msra.mxu0 0.0
        %5386 = vmatpush.msra.mxu0 0.0
        %5387 = vmatpush.msra.mxu0 %v5371
        %5388 = vmatpush.msra.mxu0 %v5370
        %5389 = vmatpush.msra.mxu0 %v5369
        %5390 = vmatpush.msra.mxu0 %v5368
        %5391 = vmatmul.f32.gmra.mxu0 %v5373
        %v5392 = vpop.f32.mrf.mxu0
        %v5393 = vadd.f32 0.0, %v5392
        %5394 = vdwg.mxu0
        %v5395 = vmax.f32 %v5393, 0.0
        %v5396 = vld [vmem:[%s11] sm:$0xff]
        %v5397 = vld [vmem:[%s11 + $0x8] sm:$0xff]
        %v5399 = vsel %vm926, %v5395, 0
        %5401 = vmatpush.msra.mxu0 0.0
        %5402 = vmatpush.msra.mxu0 0.0
        %5403 = vmatpush.msra.mxu0 0.0
        %5404 = vmatpush.msra.mxu0 0.0
        %5405 = vmatpush.msra.mxu0 0.0
        %5406 = vmatpush.msra.mxu0 0.0
        %5407 = vmatpush.msra.mxu0 0.0
        %5408 = vmatpush.msra.mxu0 0.0
        %5409 = vmatpush.msra.mxu0 0.0
        %5410 = vmatpush.msra.mxu0 0.0
        %5411 = vmatpush.msra.mxu0 0.0
        %5412 = vmatpush.msra.mxu0 0.0
        %5413 = vmatpush.msra.mxu0 0.0
        %5414 = vmatpush.msra.mxu0 0.0
        %5415 = vmatpush.msra.mxu0 %v5397
        %5416 = vmatpush.msra.mxu0 %v5396
        %5417 = vmatmul.f32.gmra.mxu0 %v5399
        %v5418 = vpop.f32.mrf.mxu0
        %v5419 = vadd.f32 0.0, %v5418
        %5420 = vdwg.mxu0
        %v5421 = vxor.u32 %v5419, 2147483648
        %v5422 = vmul.f32 %v5421, 1.442695
        %v5423 = vpow.pop %v5422
        %v5424 = vadd.f32 %v5423, 1.0
        %v5425 = vrcp.pop %v5424
        %v5426 = vmul.f32 %v5424, %v5425
        %v5427 = vsub.f32 1.0, %v5426
        %v5428 = vmul.f32 %v5425, %v5427
        %v5429 = vadd.f32 %v5425, %v5428
        %vm5430 = vweird.f32 %v5424
        %vm5431 = vweird.f32 %v5425
        %vm5432 = vmor %vm5430, %vm5431
        %v5433 = vsel %vm5432, %v5425, %v5429
        %v5434 = vand.u32 2147483647, %v5424
        %vm5435 = vcmp.eq.f32.partialorder %v5434, 8.507059e+37
        %v5436 = vand.u32 %v5424, 2147483648
        %v5437 = vor.u32 1.1754944e-38, %v5436
        %v5438 = vsel %vm5435, %v5437, %v5433
        %v5439 = vmul.f32 1.0, %v5438
        %5441 = vset.pattern.permute.xlu0 0
        %5442 = vperm.xlu0 %5441, %v5439
        %v5443 = vpop.permute.xlu0 %5442
        %5445 = vst [vmem:[%s606] sm:$0xff] %v5443
        %s5446 = sand.u32 %s324, 1
        %s5447 = scalar_lea.sflag [#allocation4], %s5446
        %s5448 = sand.u32 %s324, 1
        %s5449 = smul.addr %s5448, 8
        %s5450 = scalar_lea.vmem [#allocation13], %s5449
        // Predicated region
        $region93: #{tpu_custom_call.1} parent=67 // pred_check
          %p5451 = pneg %p334
        $region94: #{tpu_custom_call.1} parent=67 // pred_check_branch
          %5453 = sbr.rel (%p5451) target = $region96
        $region95: #{tpu_custom_call.1} parent=67 // pred_region
          %5455 = vsyncadd %s5447, 0
          %s5456 = smul.addr %s34, 8
          %s5457 = scalar_lea.hbm %s12, %s5456
          %s5459 = sshll.u32 %s5450, 4
          %s5460 = int_to_ptr.vmem [resolvable:$true] %s5459
          %s5461 = sshll.u32 %s5457, 4
          %s5462 = int_to_ptr.hbm [resolvable:$true] %s5461
          %5464 = dma.vmem_to_hbm [thread:$0]  %s5460, 128, %s5462, %s5447
        $region96: #{tpu_custom_call.1} parent=67 // pred_fallthru
          _
      $region68: #{tpu_custom_call.1} parent=5 // pred_fallthru
        _
      %p5465 = scmp.le.s32.totalorder 2, %s29
      // Predicated region
      $region97: #{tpu_custom_call.1} parent=5 // pred_check
        %p5466 = pneg %p5465
      $region98: #{tpu_custom_call.1} parent=5 // pred_check_branch
        %5468 = sbr.rel (%p5466) target = $region100
      $region99: #{tpu_custom_call.1} parent=5 // pred_region
        %s5469 = ssub.s32 %s29, 2
        // Predicated region
        $region101: #{tpu_custom_call.1} parent=99 // pred_check
          %p5470 = pneg %p340
        $region102: #{tpu_custom_call.1} parent=99 // pred_check_branch
          %5472 = sbr.rel (%p5470) target = $region104
        $region103: #{tpu_custom_call.1} parent=99 // pred_region
          %s5473 = sand.u32 %s325, 1
          %s5474 = scalar_lea.sflag [#allocation4], %s5473
          %s5475 = sand.u32 %s325, 1
          %s5476 = smul.addr %s5475, 8
          %s5477 = scalar_lea.vmem [#allocation13], %s5476
          %5479 = dma.done %s5474, 128
        $region104: #{tpu_custom_call.1} parent=99 // pred_fallthru
          _
      $region100: #{tpu_custom_call.1} parent=5 // pred_fallthru
        _
    $region6: #{tpu_custom_call.1} parent=1 // loop_footer
      %s33 = sadd.s32 1, %s29
    $region7: #{tpu_custom_call.1} parent=1 // loop_footer_branch
      %28 = sbr.rel target = $region3
    $region8: #{tpu_custom_call.1} parent=1 // loop_exit
      _
    %5480 = vsyncpa [#allocation3], 1
    %s5481 = scalar_lea.sflag [#allocation3], 1
    %5482 = vsyncpa %s5481, 1
    %5483 = vsyncpa [#allocation6], 1
    %s5484 = scalar_lea.sflag [#allocation6], 1
    %5485 = vsyncpa %s5484, 1
    %5486 = vsyncpa [#allocation9], 1
    %5487 = vsyncpa [#allocation12], 1
    %5488 = vsyncpa [#allocation4], 1
    %s5489 = scalar_lea.sflag [#allocation4], 1
    %5490 = vsyncpa %s5489, 1

</llo_original>
